<compile_context>
chip_gen: v6e
topology: v6e:2x2x1
jax: 0.10.0
libtpu: 0.0.40
codegen_flags: <defaults>
</compile_context>

<pallas_src>
import functools

import numpy as np
import jax
import jax.numpy as jnp
from jax.experimental import pallas as pl
from jax.experimental.pallas import tpu as pltpu


# ----------------------------- Pallas kernel -----------------------------

def _fused_mha_kernel(xq_ref, xk_ref, xv_ref,
                      wq_ref, wk_ref, wv_ref, wf_ref, mask_ref,
                      o_ref,
                      *, n_head, d_k, d_v, H, W, ksize, pad, block_b):
    """Fused multi-head local attention for `block_b` whole batch elements.

    xq/xk/xv : (block_b, d_model, H*W)  channels on sublanes, spatial on lanes
    wq/wk    : (n_head*d_k, d_model)    wq pre-scaled by 1/temperature
    wv       : (n_head*d_v, d_model)
    wf       : (d_model, n_head*d_v)    output 1x1 conv
    mask     : (K*K, H*W)               1.0 where the (dy,dx) neighbour is in-bounds
    o        : (block_b, d_model, H*W)  residual already added
    """
    HW = H * W
    KK = ksize * ksize
    # Flat lane offset of each (dy, dx) neighbour.
    shifts = [(dy - pad) * W + (dx - pad) for dy in range(ksize) for dx in range(ksize)]

    def lane_shift(x, d):
        # x[:, p] <- x[:, p + d] (circular; wrapped positions are masked out below)
        s = (-d) % HW
        return x if s == 0 else pltpu.roll(x, shift=s, axis=1)

    mask = mask_ref[...]                  # (KK, HW), hoisted out of every loop
    wq = wq_ref[...]
    wk = wk_ref[...]
    wv = wv_ref[...]
    wf = wf_ref[...]

    for b in range(block_b):              # whole images per grid step
        xq = xq_ref[b]                    # (d_model, HW), also the residual
        xk = xk_ref[b]
        xv = xv_ref[b]

        # Head-batched 1x1-conv projections: one MXU push each, lane-dense outputs.
        qh_all = jnp.dot(wq, xq, preferred_element_type=jnp.float32)   # (n_head*d_k, HW), already /temperature
        kh_all = jnp.dot(wk, xk, preferred_element_type=jnp.float32)   # (n_head*d_k, HW)
        vh_all = jnp.dot(wv, xv, preferred_element_type=jnp.float32)   # (n_head*d_v, HW)

        # TODO(synk): for large n_head move heads onto a grid axis (or lax.fori_loop)
        # to bound vreg live ranges; the static unroll is fine for small n_head.
        head_outs = []
        for h in range(n_head):
            qh = qh_all[h * d_k:(h + 1) * d_k]                          # (d_k, HW)
            kh = kh_all[h * d_k:(h + 1) * d_k]                          # (d_k, HW)
            vh = vh_all[h * d_v:(h + 1) * d_v]                          # (d_v, HW)

            # KxK correlation scores packed as one sublane-stacked (KK, HW) block.
            # Out-of-bounds neighbours get score exactly 0 (zero-padding semantics
            # of the reference; NOT a masked softmax).
            rows = []
            for d in shifts:
                ks = lane_shift(kh, d)                                  # XLU roll
                rows.append(jnp.sum(qh * ks, axis=0, keepdims=True))    # (1, HW)
            scores = jnp.concatenate(rows, axis=0) * mask               # (KK, HW)

            smax = jnp.max(scores, axis=0, keepdims=True)               # (1, HW)
            e = jnp.exp(scores - smax)                                  # one EUP stream
            denom = jnp.sum(e, axis=0, keepdims=True)                   # (1, HW)
            inv = pl.reciprocal(denom, approx=True)                     # EUP slot
            inv = inv * (2.0 - denom * inv)                             # one Newton step -> f32-accurate
            w = e * (inv * mask)                                        # (KK, HW); zero-padded values drop out

            # Softmax-weighted aggregation of the value neighbourhood.
            acc = w[0:1] * lane_shift(vh, shifts[0])                    # (d_v, HW)
            for p in range(1, KK):
                acc = acc + w[p:p + 1] * lane_shift(vh, shifts[p])
            head_outs.append(acc)

        agg = jnp.concatenate(head_outs, axis=0)                        # (n_head*d_v, HW)
        # Output 1x1 conv (single MXU push) fused with the residual add.
        o_ref[b] = xq + jnp.dot(wf, agg, preferred_element_type=jnp.float32)


# ----------------------------- Module wrapper -----------------------------

def _pick_block_batch(batch, hw, target_lanes=2048):
    """Largest divisor of `batch` whose per-step lane footprint stays near target."""
    best = 1
    for bt in range(1, batch + 1):
        if batch % bt == 0 and bt * hw <= max(target_lanes, hw):
            best = bt
    return best


class MultiHeadAttention:
    """JAX/Pallas reimplementation of the PyTorch MultiHeadAttention forward pass."""

    def __init__(self, n_head, d_model, d_k, d_v, kernel, pad, norm=False, key=None):
        assert kernel == 2 * pad + 1, "same-size local attention requires kernel == 2*pad + 1"
        self.n_head, self.d_model, self.d_k, self.d_v = n_head, d_model, d_k, d_v
        self.kernel, self.pad = kernel, pad
        self.norm = norm
        self.temperature = d_k ** 0.5

        key = jax.random.PRNGKey(42) if key is None else key
        k1, k2, k3, k4 = jax.random.split(key, 4)

        def init(k, cout, cin):
            bound = 1.0 / (cin ** 0.5)  # kaiming-uniform-like scale for a 1x1 conv
            return jax.random.uniform(k, (cout, cin), jnp.float32, -bound, bound)

        # torch-layout conv weights (Cout, Cin)
        self.w_qs = init(k1, n_head * d_k, d_model)
        self.w_ks = init(k2, n_head * d_k, d_model)
        self.w_vs = init(k3, n_head * d_v, d_model)
        self.w_fc = init(k4, d_model, n_head * d_v)

        # Kernel-layout weights prepared ONCE at init:
        #  - head-batched layout: projections are single (n_head*d_k, d_model) dots
        #  - 1/temperature folded into w_qs (removes H*W*K*K per-element scales)
        self.wq_cat = self.w_qs / self.temperature        # (n_head*d_k, d_model)
        self.wk_cat = self.w_ks                           # (n_head*d_k, d_model)
        self.wv_cat = self.w_vs                           # (n_head*d_v, d_model)
        self.wf_cat = self.w_fc                           # (d_model, n_head*d_v)
        # TODO(synk): BatchNorm2d (norm=True path) is not implemented; module is used with norm=False.
        # TODO(synk): on v6e/v7x cast q/k/v + weights to bf16 for HBM->VMEM / MXU inputs
        # (keep f32 accumulation) once the caller accepts the looser tolerance.

    def _neighbour_masks(self, H, W):
        # TODO(synk): for very large H*W generate these in-kernel from iota compares
        # instead of streaming a (K*K, H*W) f32 input.
        K, P = self.kernel, self.pad
        ys, xs = np.meshgrid(np.arange(H), np.arange(W), indexing="ij")
        m = []
        for dy in range(K):
            for dx in range(K):
                oy, ox = dy - P, dx - P
                valid = (ys + oy >= 0) & (ys + oy < H) & (xs + ox >= 0) & (xs + ox < W)
                m.append(valid.reshape(-1))
        return jnp.asarray(np.stack(m).astype(np.float32))          # (K*K, H*W)

    def __call__(self, q, k, v):
        # q, k, v: NCHW float32 (PyTorch convention), all (B, d_model, H, W)
        n_head, d_k, d_v, d_model = self.n_head, self.d_k, self.d_v, self.d_model
        B, C, H, W = q.shape
        assert C == d_model
        HW = H * W
        KK = self.kernel * self.kernel
        masks = self._neighbour_masks(H, W)

        # Block several whole images per grid step (bigger DMAs, fewer step overheads).
        block_b = _pick_block_batch(B, HW)
        grid = (B // block_b,)

        kern = functools.partial(
            _fused_mha_kernel,
            n_head=n_head, d_k=d_k, d_v=d_v, H=H, W=W,
            ksize=self.kernel, pad=self.pad, block_b=block_b)

        # TODO(synk): for very large H*W add a spatial grid axis with halo exchange so
        # a block stays inside v7x's 64 MiB VMEM (roll+mask is only valid for whole images).
        out = pl.pallas_call(
            kern,
            out_shape=jax.ShapeDtypeStruct((B, d_model, HW), jnp.float32),
            grid=grid,
            in_specs=[
                pl.BlockSpec((block_b, d_model, HW), lambda i: (i, 0, 0)),      # q (also residual)
                pl.BlockSpec((block_b, d_model, HW), lambda i: (i, 0, 0)),      # k
                pl.BlockSpec((block_b, d_model, HW), lambda i: (i, 0, 0)),      # v
                pl.BlockSpec((n_head * d_k, d_model), lambda i: (0, 0)),        # wq (pre-scaled)
                pl.BlockSpec((n_head * d_k, d_model), lambda i: (0, 0)),        # wk
                pl.BlockSpec((n_head * d_v, d_model), lambda i: (0, 0)),        # wv
                pl.BlockSpec((d_model, n_head * d_v), lambda i: (0, 0)),        # wf
                pl.BlockSpec((KK, HW), lambda i: (0, 0)),                       # neighbour masks
            ],
            out_specs=pl.BlockSpec((block_b, d_model, HW), lambda i: (i, 0, 0)),
            compiler_params=pltpu.CompilerParams(
                # batch blocks are independent -> shard across TensorCores (v7x megacore)
                dimension_semantics=("parallel",),
                vmem_limit_bytes=32 * 1024 * 1024,
            ),
        )(q.reshape(B, d_model, HW), k.reshape(B, d_model, HW), v.reshape(B, d_model, HW),
          self.wq_cat, self.wk_cat, self.wv_cat, self.wf_cat, masks)

        return out.reshape(B, d_model, H, W)   # NCHW, matches the PyTorch module


# ----------------------------- pure-JAX reference -----------------------------

def reference_forward(mha, q, k, v):
    n_head, d_k, d_v = mha.n_head, mha.d_k, mha.d_v
    K, P = mha.kernel, mha.pad
    B, _, H, W = q.shape
    qn = jnp.transpose(q, (0, 2, 3, 1))
    kn = jnp.transpose(k, (0, 2, 3, 1))
    vn = jnp.transpose(v, (0, 2, 3, 1))
    qp = jnp.einsum("bhwc,oc->bhwo", qn, mha.w_qs)
    kp = jnp.einsum("bhwc,oc->bhwo", kn, mha.w_ks)
    vp = jnp.einsum("bhwc,oc->bhwo", vn, mha.w_vs)
    outs = []
    for i in range(n_head):
        qi = qp[..., i * d_k:(i + 1) * d_k]
        ki = kp[..., i * d_k:(i + 1) * d_k]
        vi = vp[..., i * d_v:(i + 1) * d_v]
        kpad = jnp.pad(ki, ((0, 0), (P, P), (P, P), (0, 0)))
        vpad = jnp.pad(vi, ((0, 0), (P, P), (P, P), (0, 0)))
        scores = []
        for dy in range(K):
            for dx in range(K):
                scores.append(jnp.sum(qi * kpad[:, dy:dy + H, dx:dx + W, :], axis=-1))
        s = jnp.stack(scores, axis=-1) / mha.temperature
        attn = jax.nn.softmax(s, axis=-1)
        acc = jnp.zeros((B, H, W, d_v), jnp.float32)
        p = 0
        for dy in range(K):
            for dx in range(K):
                acc = acc + attn[..., p:p + 1] * vpad[:, dy:dy + H, dx:dx + W, :]
                p += 1
        outs.append(acc)
    on = jnp.concatenate(outs, axis=-1)
    out = jnp.einsum("bhwc,oc->bhwo", on, mha.w_fc) + qn
    return jnp.transpose(out, (0, 3, 1, 2))


# ----------------------------- main -----------------------------

if __name__ == "__main__":
    key = jax.random.PRNGKey(0)
    kq, kk, kv, kw = jax.random.split(key, 4)

    B, d_model, H, W = 2, 8, 16, 16
    n_head, d_k, d_v = 2, 4, 4
    kernel, pad = 3, 1

    q = jax.random.normal(kq, (B, d_model, H, W), jnp.float32)
    k = jax.random.normal(kk, (B, d_model, H, W), jnp.float32)
    v = jax.random.normal(kv, (B, d_model, H, W), jnp.float32)

    mha = MultiHeadAttention(n_head, d_model, d_k, d_v, kernel, pad, norm=False, key=kw)

    out = mha(q, k, v)
    out = jax.block_until_ready(out)
    assert out.shape == (B, d_model, H, W)

    ref = reference_forward(mha, q, k, v)
    assert jnp.allclose(out, ref, atol=1e-4, rtol=1e-4), float(jnp.max(jnp.abs(out - ref)))

    print("KERNEL_OK")
</pallas_src>

<mosaic_0001>
module attributes {stable_mosaic.version = 11 : i64} {
  func.func @_fused_mha_kernel(%arg0: i32, %arg1: memref<2x8x256xf32, #tpu.memory_space<vmem>>, %arg2: memref<2x8x256xf32, #tpu.memory_space<vmem>>, %arg3: memref<2x8x256xf32, #tpu.memory_space<vmem>>, %arg4: memref<8x8xf32, #tpu.memory_space<vmem>>, %arg5: memref<8x8xf32, #tpu.memory_space<vmem>>, %arg6: memref<8x8xf32, #tpu.memory_space<vmem>>, %arg7: memref<8x8xf32, #tpu.memory_space<vmem>>, %arg8: memref<9x256xf32, #tpu.memory_space<vmem>>, %arg9: memref<2x8x256xf32, #tpu.memory_space<vmem>>) attributes {dimension_semantics = [#tpu.dimension_semantics<parallel>], iteration_bounds = array<i64: 1>, scalar_prefetch = 0 : i64, scratch_operands = 0 : i64, tpu.core_type = #tpu.core_type<tc>, window_params = [{transform_indices = @transform_0, window_bounds = array<i64: 2, 8, 256>}, {transform_indices = @transform_1, window_bounds = array<i64: 2, 8, 256>}, {transform_indices = @transform_2, window_bounds = array<i64: 2, 8, 256>}, {pipeline_mode = #tpu.pipeline_mode<synchronous>, transform_indices = @transform_3, window_bounds = array<i64: 8, 8>}, {pipeline_mode = #tpu.pipeline_mode<synchronous>, transform_indices = @transform_4, window_bounds = array<i64: 8, 8>}, {pipeline_mode = #tpu.pipeline_mode<synchronous>, transform_indices = @transform_5, window_bounds = array<i64: 8, 8>}, {pipeline_mode = #tpu.pipeline_mode<synchronous>, transform_indices = @transform_6, window_bounds = array<i64: 8, 8>}, {pipeline_mode = #tpu.pipeline_mode<synchronous>, transform_indices = @transform_7, window_bounds = array<i64: 9, 256>}, {transform_indices = @transform_8, window_bounds = array<i64: 2, 8, 256>}]} {
    %c0 = arith.constant 0 : index
    %c0_0 = arith.constant 0 : index
    %0 = vector.load %arg8[%c0, %c0_0] : memref<9x256xf32, #tpu.memory_space<vmem>>, vector<9x256xf32>
    %c0_1 = arith.constant 0 : index
    %c0_2 = arith.constant 0 : index
    %1 = vector.load %arg4[%c0_1, %c0_2] : memref<8x8xf32, #tpu.memory_space<vmem>>, vector<8x8xf32>
    %c0_3 = arith.constant 0 : index
    %c0_4 = arith.constant 0 : index
    %2 = vector.load %arg5[%c0_3, %c0_4] : memref<8x8xf32, #tpu.memory_space<vmem>>, vector<8x8xf32>
    %c0_5 = arith.constant 0 : index
    %c0_6 = arith.constant 0 : index
    %3 = vector.load %arg6[%c0_5, %c0_6] : memref<8x8xf32, #tpu.memory_space<vmem>>, vector<8x8xf32>
    %c0_7 = arith.constant 0 : index
    %c0_8 = arith.constant 0 : index
    %4 = vector.load %arg7[%c0_7, %c0_8] : memref<8x8xf32, #tpu.memory_space<vmem>>, vector<8x8xf32>
    %c0_9 = arith.constant 0 : index
    %c0_10 = arith.constant 0 : index
    %c0_11 = arith.constant 0 : index
    %5 = vector.load %arg1[%c0_9, %c0_10, %c0_11] : memref<2x8x256xf32, #tpu.memory_space<vmem>>, vector<1x8x256xf32>
    %6 = vector.shape_cast %5 : vector<1x8x256xf32> to vector<8x256xf32>
    %c0_12 = arith.constant 0 : index
    %c0_13 = arith.constant 0 : index
    %c0_14 = arith.constant 0 : index
    %7 = vector.load %arg2[%c0_12, %c0_13, %c0_14] : memref<2x8x256xf32, #tpu.memory_space<vmem>>, vector<1x8x256xf32>
    %8 = vector.shape_cast %7 : vector<1x8x256xf32> to vector<8x256xf32>
    %c0_15 = arith.constant 0 : index
    %c0_16 = arith.constant 0 : index
    %c0_17 = arith.constant 0 : index
    %9 = vector.load %arg3[%c0_15, %c0_16, %c0_17] : memref<2x8x256xf32, #tpu.memory_space<vmem>>, vector<1x8x256xf32>
    %10 = vector.shape_cast %9 : vector<1x8x256xf32> to vector<8x256xf32>
    %cst = arith.constant dense<0.000000e+00> : vector<8x256xf32>
    %11 = tpu.matmul %1, %6, %cst {dimension_numbers = #tpu.dot_dimension_numbers<[1], [0], [0], [1], [0, 0, 1, 1], [], []>} : vector<8x8xf32>, vector<8x256xf32>, vector<8x256xf32> -> vector<8x256xf32>
    %cst_18 = arith.constant dense<0.000000e+00> : vector<8x256xf32>
    %12 = tpu.matmul %2, %8, %cst_18 {dimension_numbers = #tpu.dot_dimension_numbers<[1], [0], [0], [1], [0, 0, 1, 1], [], []>} : vector<8x8xf32>, vector<8x256xf32>, vector<8x256xf32> -> vector<8x256xf32>
    %cst_19 = arith.constant dense<0.000000e+00> : vector<8x256xf32>
    %13 = tpu.matmul %3, %10, %cst_19 {dimension_numbers = #tpu.dot_dimension_numbers<[1], [0], [0], [1], [0, 0, 1, 1], [], []>} : vector<8x8xf32>, vector<8x256xf32>, vector<8x256xf32> -> vector<8x256xf32>
    %14 = vector.extract_strided_slice %11 {offsets = [0, 0], sizes = [4, 256], strides = [1, 1]} : vector<8x256xf32> to vector<4x256xf32>
    %15 = vector.extract_strided_slice %12 {offsets = [0, 0], sizes = [4, 256], strides = [1, 1]} : vector<8x256xf32> to vector<4x256xf32>
    %16 = vector.extract_strided_slice %13 {offsets = [0, 0], sizes = [4, 256], strides = [1, 1]} : vector<8x256xf32> to vector<4x256xf32>
    %c17_i32 = arith.constant 17 : i32
    %17 = tpu.dynamic_rotate %15 by %c17_i32 dim 1 : vector<4x256xf32>, i32 -> vector<4x256xf32>
    %18 = arith.mulf %14, %17 : vector<4x256xf32>
    %cst_20 = arith.constant dense<0.000000e+00> : vector<256xf32>
    %19 = vector.multi_reduction <add>, %18, %cst_20 [0] : vector<4x256xf32> to vector<256xf32>
    %20 = vector.shape_cast %19 : vector<256xf32> to vector<1x256xf32>
    %c16_i32 = arith.constant 16 : i32
    %21 = tpu.dynamic_rotate %15 by %c16_i32 dim 1 : vector<4x256xf32>, i32 -> vector<4x256xf32>
    %22 = arith.mulf %14, %21 : vector<4x256xf32>
    %cst_21 = arith.constant dense<0.000000e+00> : vector<256xf32>
    %23 = vector.multi_reduction <add>, %22, %cst_21 [0] : vector<4x256xf32> to vector<256xf32>
    %24 = vector.shape_cast %23 : vector<256xf32> to vector<1x256xf32>
    %c15_i32 = arith.constant 15 : i32
    %25 = tpu.dynamic_rotate %15 by %c15_i32 dim 1 : vector<4x256xf32>, i32 -> vector<4x256xf32>
    %26 = arith.mulf %14, %25 : vector<4x256xf32>
    %cst_22 = arith.constant dense<0.000000e+00> : vector<256xf32>
    %27 = vector.multi_reduction <add>, %26, %cst_22 [0] : vector<4x256xf32> to vector<256xf32>
    %28 = vector.shape_cast %27 : vector<256xf32> to vector<1x256xf32>
    %c1_i32 = arith.constant 1 : i32
    %29 = tpu.dynamic_rotate %15 by %c1_i32 dim 1 : vector<4x256xf32>, i32 -> vector<4x256xf32>
    %30 = arith.mulf %14, %29 : vector<4x256xf32>
    %cst_23 = arith.constant dense<0.000000e+00> : vector<256xf32>
    %31 = vector.multi_reduction <add>, %30, %cst_23 [0] : vector<4x256xf32> to vector<256xf32>
    %32 = vector.shape_cast %31 : vector<256xf32> to vector<1x256xf32>
    %33 = arith.mulf %14, %15 : vector<4x256xf32>
    %cst_24 = arith.constant dense<0.000000e+00> : vector<256xf32>
    %34 = vector.multi_reduction <add>, %33, %cst_24 [0] : vector<4x256xf32> to vector<256xf32>
    %35 = vector.shape_cast %34 : vector<256xf32> to vector<1x256xf32>
    %c255_i32 = arith.constant 255 : i32
    %36 = tpu.dynamic_rotate %15 by %c255_i32 dim 1 : vector<4x256xf32>, i32 -> vector<4x256xf32>
    %37 = arith.mulf %14, %36 : vector<4x256xf32>
    %cst_25 = arith.constant dense<0.000000e+00> : vector<256xf32>
    %38 = vector.multi_reduction <add>, %37, %cst_25 [0] : vector<4x256xf32> to vector<256xf32>
    %39 = vector.shape_cast %38 : vector<256xf32> to vector<1x256xf32>
    %c241_i32 = arith.constant 241 : i32
    %40 = tpu.dynamic_rotate %15 by %c241_i32 dim 1 : vector<4x256xf32>, i32 -> vector<4x256xf32>
    %41 = arith.mulf %14, %40 : vector<4x256xf32>
    %cst_26 = arith.constant dense<0.000000e+00> : vector<256xf32>
    %42 = vector.multi_reduction <add>, %41, %cst_26 [0] : vector<4x256xf32> to vector<256xf32>
    %43 = vector.shape_cast %42 : vector<256xf32> to vector<1x256xf32>
    %c240_i32 = arith.constant 240 : i32
    %44 = tpu.dynamic_rotate %15 by %c240_i32 dim 1 : vector<4x256xf32>, i32 -> vector<4x256xf32>
    %45 = arith.mulf %14, %44 : vector<4x256xf32>
    %cst_27 = arith.constant dense<0.000000e+00> : vector<256xf32>
    %46 = vector.multi_reduction <add>, %45, %cst_27 [0] : vector<4x256xf32> to vector<256xf32>
    %47 = vector.shape_cast %46 : vector<256xf32> to vector<1x256xf32>
    %c239_i32 = arith.constant 239 : i32
    %48 = tpu.dynamic_rotate %15 by %c239_i32 dim 1 : vector<4x256xf32>, i32 -> vector<4x256xf32>
    %49 = arith.mulf %14, %48 : vector<4x256xf32>
    %cst_28 = arith.constant dense<0.000000e+00> : vector<256xf32>
    %50 = vector.multi_reduction <add>, %49, %cst_28 [0] : vector<4x256xf32> to vector<256xf32>
    %51 = vector.shape_cast %50 : vector<256xf32> to vector<1x256xf32>
    %52 = tpu.concatenate %20, %24, %28, %32, %35, %39, %43, %47, %51 in 0 : vector<1x256xf32>, vector<1x256xf32>, vector<1x256xf32>, vector<1x256xf32>, vector<1x256xf32>, vector<1x256xf32>, vector<1x256xf32>, vector<1x256xf32>, vector<1x256xf32> -> vector<9x256xf32>
    %53 = arith.mulf %52, %0 : vector<9x256xf32>
    %cst_29 = arith.constant dense<0xFF800000> : vector<256xf32>
    %54 = vector.multi_reduction <maximumf>, %53, %cst_29 [0] : vector<9x256xf32> to vector<256xf32>
    %55 = vector.shape_cast %54 : vector<256xf32> to vector<1x256xf32>
    %56 = vector.broadcast %55 : vector<1x256xf32> to vector<9x256xf32>
    %57 = arith.subf %53, %56 : vector<9x256xf32>
    %58 = math.exp %57 : vector<9x256xf32>
    %cst_30 = arith.constant dense<0.000000e+00> : vector<256xf32>
    %59 = vector.multi_reduction <add>, %58, %cst_30 [0] : vector<9x256xf32> to vector<256xf32>
    %60 = vector.shape_cast %59 : vector<256xf32> to vector<1x256xf32>
    %61 = tpu.reciprocal %60 {approx = true} : vector<1x256xf32> -> vector<1x256xf32>
    %62 = arith.mulf %60, %61 : vector<1x256xf32>
    %cst_31 = arith.constant 2.000000e+00 : f32
    %63 = vector.broadcast %cst_31 : f32 to vector<1x256xf32>
    %64 = arith.subf %63, %62 : vector<1x256xf32>
    %65 = arith.mulf %61, %64 : vector<1x256xf32>
    %66 = vector.broadcast %65 : vector<1x256xf32> to vector<9x256xf32>
    %67 = arith.mulf %66, %0 : vector<9x256xf32>
    %68 = arith.mulf %58, %67 : vector<9x256xf32>
    %69 = vector.extract_strided_slice %68 {offsets = [0, 0], sizes = [1, 256], strides = [1, 1]} : vector<9x256xf32> to vector<1x256xf32>
    %c17_i32_32 = arith.constant 17 : i32
    %70 = tpu.dynamic_rotate %16 by %c17_i32_32 dim 1 : vector<4x256xf32>, i32 -> vector<4x256xf32>
    %71 = vector.broadcast %69 : vector<1x256xf32> to vector<4x256xf32>
    %72 = arith.mulf %71, %70 : vector<4x256xf32>
    %73 = vector.extract_strided_slice %68 {offsets = [1, 0], sizes = [1, 256], strides = [1, 1]} : vector<9x256xf32> to vector<1x256xf32>
    %c16_i32_33 = arith.constant 16 : i32
    %74 = tpu.dynamic_rotate %16 by %c16_i32_33 dim 1 : vector<4x256xf32>, i32 -> vector<4x256xf32>
    %75 = vector.broadcast %73 : vector<1x256xf32> to vector<4x256xf32>
    %76 = arith.mulf %75, %74 : vector<4x256xf32>
    %77 = arith.addf %72, %76 : vector<4x256xf32>
    %78 = vector.extract_strided_slice %68 {offsets = [2, 0], sizes = [1, 256], strides = [1, 1]} : vector<9x256xf32> to vector<1x256xf32>
    %c15_i32_34 = arith.constant 15 : i32
    %79 = tpu.dynamic_rotate %16 by %c15_i32_34 dim 1 : vector<4x256xf32>, i32 -> vector<4x256xf32>
    %80 = vector.broadcast %78 : vector<1x256xf32> to vector<4x256xf32>
    %81 = arith.mulf %80, %79 : vector<4x256xf32>
    %82 = arith.addf %77, %81 : vector<4x256xf32>
    %83 = vector.extract_strided_slice %68 {offsets = [3, 0], sizes = [1, 256], strides = [1, 1]} : vector<9x256xf32> to vector<1x256xf32>
    %c1_i32_35 = arith.constant 1 : i32
    %84 = tpu.dynamic_rotate %16 by %c1_i32_35 dim 1 : vector<4x256xf32>, i32 -> vector<4x256xf32>
    %85 = vector.broadcast %83 : vector<1x256xf32> to vector<4x256xf32>
    %86 = arith.mulf %85, %84 : vector<4x256xf32>
    %87 = arith.addf %82, %86 : vector<4x256xf32>
    %88 = vector.extract_strided_slice %68 {offsets = [4, 0], sizes = [1, 256], strides = [1, 1]} : vector<9x256xf32> to vector<1x256xf32>
    %89 = vector.broadcast %88 : vector<1x256xf32> to vector<4x256xf32>
    %90 = arith.mulf %89, %16 : vector<4x256xf32>
    %91 = arith.addf %87, %90 : vector<4x256xf32>
    %92 = vector.extract_strided_slice %68 {offsets = [5, 0], sizes = [1, 256], strides = [1, 1]} : vector<9x256xf32> to vector<1x256xf32>
    %c255_i32_36 = arith.constant 255 : i32
    %93 = tpu.dynamic_rotate %16 by %c255_i32_36 dim 1 : vector<4x256xf32>, i32 -> vector<4x256xf32>
    %94 = vector.broadcast %92 : vector<1x256xf32> to vector<4x256xf32>
    %95 = arith.mulf %94, %93 : vector<4x256xf32>
    %96 = arith.addf %91, %95 : vector<4x256xf32>
    %97 = vector.extract_strided_slice %68 {offsets = [6, 0], sizes = [1, 256], strides = [1, 1]} : vector<9x256xf32> to vector<1x256xf32>
    %c241_i32_37 = arith.constant 241 : i32
    %98 = tpu.dynamic_rotate %16 by %c241_i32_37 dim 1 : vector<4x256xf32>, i32 -> vector<4x256xf32>
    %99 = vector.broadcast %97 : vector<1x256xf32> to vector<4x256xf32>
    %100 = arith.mulf %99, %98 : vector<4x256xf32>
    %101 = arith.addf %96, %100 : vector<4x256xf32>
    %102 = vector.extract_strided_slice %68 {offsets = [7, 0], sizes = [1, 256], strides = [1, 1]} : vector<9x256xf32> to vector<1x256xf32>
    %c240_i32_38 = arith.constant 240 : i32
    %103 = tpu.dynamic_rotate %16 by %c240_i32_38 dim 1 : vector<4x256xf32>, i32 -> vector<4x256xf32>
    %104 = vector.broadcast %102 : vector<1x256xf32> to vector<4x256xf32>
    %105 = arith.mulf %104, %103 : vector<4x256xf32>
    %106 = arith.addf %101, %105 : vector<4x256xf32>
    %107 = vector.extract_strided_slice %68 {offsets = [8, 0], sizes = [1, 256], strides = [1, 1]} : vector<9x256xf32> to vector<1x256xf32>
    %c239_i32_39 = arith.constant 239 : i32
    %108 = tpu.dynamic_rotate %16 by %c239_i32_39 dim 1 : vector<4x256xf32>, i32 -> vector<4x256xf32>
    %109 = vector.broadcast %107 : vector<1x256xf32> to vector<4x256xf32>
    %110 = arith.mulf %109, %108 : vector<4x256xf32>
    %111 = arith.addf %106, %110 : vector<4x256xf32>
    %112 = vector.extract_strided_slice %11 {offsets = [4, 0], sizes = [4, 256], strides = [1, 1]} : vector<8x256xf32> to vector<4x256xf32>
    %113 = vector.extract_strided_slice %12 {offsets = [4, 0], sizes = [4, 256], strides = [1, 1]} : vector<8x256xf32> to vector<4x256xf32>
    %114 = vector.extract_strided_slice %13 {offsets = [4, 0], sizes = [4, 256], strides = [1, 1]} : vector<8x256xf32> to vector<4x256xf32>
    %c17_i32_40 = arith.constant 17 : i32
    %115 = tpu.dynamic_rotate %113 by %c17_i32_40 dim 1 : vector<4x256xf32>, i32 -> vector<4x256xf32>
    %116 = arith.mulf %112, %115 : vector<4x256xf32>
    %cst_41 = arith.constant dense<0.000000e+00> : vector<256xf32>
    %117 = vector.multi_reduction <add>, %116, %cst_41 [0] : vector<4x256xf32> to vector<256xf32>
    %118 = vector.shape_cast %117 : vector<256xf32> to vector<1x256xf32>
    %c16_i32_42 = arith.constant 16 : i32
    %119 = tpu.dynamic_rotate %113 by %c16_i32_42 dim 1 : vector<4x256xf32>, i32 -> vector<4x256xf32>
    %120 = arith.mulf %112, %119 : vector<4x256xf32>
    %cst_43 = arith.constant dense<0.000000e+00> : vector<256xf32>
    %121 = vector.multi_reduction <add>, %120, %cst_43 [0] : vector<4x256xf32> to vector<256xf32>
    %122 = vector.shape_cast %121 : vector<256xf32> to vector<1x256xf32>
    %c15_i32_44 = arith.constant 15 : i32
    %123 = tpu.dynamic_rotate %113 by %c15_i32_44 dim 1 : vector<4x256xf32>, i32 -> vector<4x256xf32>
    %124 = arith.mulf %112, %123 : vector<4x256xf32>
    %cst_45 = arith.constant dense<0.000000e+00> : vector<256xf32>
    %125 = vector.multi_reduction <add>, %124, %cst_45 [0] : vector<4x256xf32> to vector<256xf32>
    %126 = vector.shape_cast %125 : vector<256xf32> to vector<1x256xf32>
    %c1_i32_46 = arith.constant 1 : i32
    %127 = tpu.dynamic_rotate %113 by %c1_i32_46 dim 1 : vector<4x256xf32>, i32 -> vector<4x256xf32>
    %128 = arith.mulf %112, %127 : vector<4x256xf32>
    %cst_47 = arith.constant dense<0.000000e+00> : vector<256xf32>
    %129 = vector.multi_reduction <add>, %128, %cst_47 [0] : vector<4x256xf32> to vector<256xf32>
    %130 = vector.shape_cast %129 : vector<256xf32> to vector<1x256xf32>
    %131 = arith.mulf %112, %113 : vector<4x256xf32>
    %cst_48 = arith.constant dense<0.000000e+00> : vector<256xf32>
    %132 = vector.multi_reduction <add>, %131, %cst_48 [0] : vector<4x256xf32> to vector<256xf32>
    %133 = vector.shape_cast %132 : vector<256xf32> to vector<1x256xf32>
    %c255_i32_49 = arith.constant 255 : i32
    %134 = tpu.dynamic_rotate %113 by %c255_i32_49 dim 1 : vector<4x256xf32>, i32 -> vector<4x256xf32>
    %135 = arith.mulf %112, %134 : vector<4x256xf32>
    %cst_50 = arith.constant dense<0.000000e+00> : vector<256xf32>
    %136 = vector.multi_reduction <add>, %135, %cst_50 [0] : vector<4x256xf32> to vector<256xf32>
    %137 = vector.shape_cast %136 : vector<256xf32> to vector<1x256xf32>
    %c241_i32_51 = arith.constant 241 : i32
    %138 = tpu.dynamic_rotate %113 by %c241_i32_51 dim 1 : vector<4x256xf32>, i32 -> vector<4x256xf32>
    %139 = arith.mulf %112, %138 : vector<4x256xf32>
    %cst_52 = arith.constant dense<0.000000e+00> : vector<256xf32>
    %140 = vector.multi_reduction <add>, %139, %cst_52 [0] : vector<4x256xf32> to vector<256xf32>
    %141 = vector.shape_cast %140 : vector<256xf32> to vector<1x256xf32>
    %c240_i32_53 = arith.constant 240 : i32
    %142 = tpu.dynamic_rotate %113 by %c240_i32_53 dim 1 : vector<4x256xf32>, i32 -> vector<4x256xf32>
    %143 = arith.mulf %112, %142 : vector<4x256xf32>
    %cst_54 = arith.constant dense<0.000000e+00> : vector<256xf32>
    %144 = vector.multi_reduction <add>, %143, %cst_54 [0] : vector<4x256xf32> to vector<256xf32>
    %145 = vector.shape_cast %144 : vector<256xf32> to vector<1x256xf32>
    %c239_i32_55 = arith.constant 239 : i32
    %146 = tpu.dynamic_rotate %113 by %c239_i32_55 dim 1 : vector<4x256xf32>, i32 -> vector<4x256xf32>
    %147 = arith.mulf %112, %146 : vector<4x256xf32>
    %cst_56 = arith.constant dense<0.000000e+00> : vector<256xf32>
    %148 = vector.multi_reduction <add>, %147, %cst_56 [0] : vector<4x256xf32> to vector<256xf32>
    %149 = vector.shape_cast %148 : vector<256xf32> to vector<1x256xf32>
    %150 = tpu.concatenate %118, %122, %126, %130, %133, %137, %141, %145, %149 in 0 : vector<1x256xf32>, vector<1x256xf32>, vector<1x256xf32>, vector<1x256xf32>, vector<1x256xf32>, vector<1x256xf32>, vector<1x256xf32>, vector<1x256xf32>, vector<1x256xf32> -> vector<9x256xf32>
    %151 = arith.mulf %150, %0 : vector<9x256xf32>
    %cst_57 = arith.constant dense<0xFF800000> : vector<256xf32>
    %152 = vector.multi_reduction <maximumf>, %151, %cst_57 [0] : vector<9x256xf32> to vector<256xf32>
    %153 = vector.shape_cast %152 : vector<256xf32> to vector<1x256xf32>
    %154 = vector.broadcast %153 : vector<1x256xf32> to vector<9x256xf32>
    %155 = arith.subf %151, %154 : vector<9x256xf32>
    %156 = math.exp %155 : vector<9x256xf32>
    %cst_58 = arith.constant dense<0.000000e+00> : vector<256xf32>
    %157 = vector.multi_reduction <add>, %156, %cst_58 [0] : vector<9x256xf32> to vector<256xf32>
    %158 = vector.shape_cast %157 : vector<256xf32> to vector<1x256xf32>
    %159 = tpu.reciprocal %158 {approx = true} : vector<1x256xf32> -> vector<1x256xf32>
    %160 = arith.mulf %158, %159 : vector<1x256xf32>
    %cst_59 = arith.constant 2.000000e+00 : f32
    %161 = vector.broadcast %cst_59 : f32 to vector<1x256xf32>
    %162 = arith.subf %161, %160 : vector<1x256xf32>
    %163 = arith.mulf %159, %162 : vector<1x256xf32>
    %164 = vector.broadcast %163 : vector<1x256xf32> to vector<9x256xf32>
    %165 = arith.mulf %164, %0 : vector<9x256xf32>
    %166 = arith.mulf %156, %165 : vector<9x256xf32>
    %167 = vector.extract_strided_slice %166 {offsets = [0, 0], sizes = [1, 256], strides = [1, 1]} : vector<9x256xf32> to vector<1x256xf32>
    %c17_i32_60 = arith.constant 17 : i32
    %168 = tpu.dynamic_rotate %114 by %c17_i32_60 dim 1 : vector<4x256xf32>, i32 -> vector<4x256xf32>
    %169 = vector.broadcast %167 : vector<1x256xf32> to vector<4x256xf32>
    %170 = arith.mulf %169, %168 : vector<4x256xf32>
    %171 = vector.extract_strided_slice %166 {offsets = [1, 0], sizes = [1, 256], strides = [1, 1]} : vector<9x256xf32> to vector<1x256xf32>
    %c16_i32_61 = arith.constant 16 : i32
    %172 = tpu.dynamic_rotate %114 by %c16_i32_61 dim 1 : vector<4x256xf32>, i32 -> vector<4x256xf32>
    %173 = vector.broadcast %171 : vector<1x256xf32> to vector<4x256xf32>
    %174 = arith.mulf %173, %172 : vector<4x256xf32>
    %175 = arith.addf %170, %174 : vector<4x256xf32>
    %176 = vector.extract_strided_slice %166 {offsets = [2, 0], sizes = [1, 256], strides = [1, 1]} : vector<9x256xf32> to vector<1x256xf32>
    %c15_i32_62 = arith.constant 15 : i32
    %177 = tpu.dynamic_rotate %114 by %c15_i32_62 dim 1 : vector<4x256xf32>, i32 -> vector<4x256xf32>
    %178 = vector.broadcast %176 : vector<1x256xf32> to vector<4x256xf32>
    %179 = arith.mulf %178, %177 : vector<4x256xf32>
    %180 = arith.addf %175, %179 : vector<4x256xf32>
    %181 = vector.extract_strided_slice %166 {offsets = [3, 0], sizes = [1, 256], strides = [1, 1]} : vector<9x256xf32> to vector<1x256xf32>
    %c1_i32_63 = arith.constant 1 : i32
    %182 = tpu.dynamic_rotate %114 by %c1_i32_63 dim 1 : vector<4x256xf32>, i32 -> vector<4x256xf32>
    %183 = vector.broadcast %181 : vector<1x256xf32> to vector<4x256xf32>
    %184 = arith.mulf %183, %182 : vector<4x256xf32>
    %185 = arith.addf %180, %184 : vector<4x256xf32>
    %186 = vector.extract_strided_slice %166 {offsets = [4, 0], sizes = [1, 256], strides = [1, 1]} : vector<9x256xf32> to vector<1x256xf32>
    %187 = vector.broadcast %186 : vector<1x256xf32> to vector<4x256xf32>
    %188 = arith.mulf %187, %114 : vector<4x256xf32>
    %189 = arith.addf %185, %188 : vector<4x256xf32>
    %190 = vector.extract_strided_slice %166 {offsets = [5, 0], sizes = [1, 256], strides = [1, 1]} : vector<9x256xf32> to vector<1x256xf32>
    %c255_i32_64 = arith.constant 255 : i32
    %191 = tpu.dynamic_rotate %114 by %c255_i32_64 dim 1 : vector<4x256xf32>, i32 -> vector<4x256xf32>
    %192 = vector.broadcast %190 : vector<1x256xf32> to vector<4x256xf32>
    %193 = arith.mulf %192, %191 : vector<4x256xf32>
    %194 = arith.addf %189, %193 : vector<4x256xf32>
    %195 = vector.extract_strided_slice %166 {offsets = [6, 0], sizes = [1, 256], strides = [1, 1]} : vector<9x256xf32> to vector<1x256xf32>
    %c241_i32_65 = arith.constant 241 : i32
    %196 = tpu.dynamic_rotate %114 by %c241_i32_65 dim 1 : vector<4x256xf32>, i32 -> vector<4x256xf32>
    %197 = vector.broadcast %195 : vector<1x256xf32> to vector<4x256xf32>
    %198 = arith.mulf %197, %196 : vector<4x256xf32>
    %199 = arith.addf %194, %198 : vector<4x256xf32>
    %200 = vector.extract_strided_slice %166 {offsets = [7, 0], sizes = [1, 256], strides = [1, 1]} : vector<9x256xf32> to vector<1x256xf32>
    %c240_i32_66 = arith.constant 240 : i32
    %201 = tpu.dynamic_rotate %114 by %c240_i32_66 dim 1 : vector<4x256xf32>, i32 -> vector<4x256xf32>
    %202 = vector.broadcast %200 : vector<1x256xf32> to vector<4x256xf32>
    %203 = arith.mulf %202, %201 : vector<4x256xf32>
    %204 = arith.addf %199, %203 : vector<4x256xf32>
    %205 = vector.extract_strided_slice %166 {offsets = [8, 0], sizes = [1, 256], strides = [1, 1]} : vector<9x256xf32> to vector<1x256xf32>
    %c239_i32_67 = arith.constant 239 : i32
    %206 = tpu.dynamic_rotate %114 by %c239_i32_67 dim 1 : vector<4x256xf32>, i32 -> vector<4x256xf32>
    %207 = vector.broadcast %205 : vector<1x256xf32> to vector<4x256xf32>
    %208 = arith.mulf %207, %206 : vector<4x256xf32>
    %209 = arith.addf %204, %208 : vector<4x256xf32>
    %210 = tpu.concatenate %111, %209 in 0 : vector<4x256xf32>, vector<4x256xf32> -> vector<8x256xf32>
    %cst_68 = arith.constant dense<0.000000e+00> : vector<8x256xf32>
    %211 = tpu.matmul %4, %210, %cst_68 {dimension_numbers = #tpu.dot_dimension_numbers<[1], [0], [0], [1], [0, 0, 1, 1], [], []>} : vector<8x8xf32>, vector<8x256xf32>, vector<8x256xf32> -> vector<8x256xf32>
    %212 = arith.addf %6, %211 : vector<8x256xf32>
    %c0_69 = arith.constant 0 : index
    %c0_70 = arith.constant 0 : index
    %c0_71 = arith.constant 0 : index
    %213 = vector.load %arg9[%c0_69, %c0_70, %c0_71] : memref<2x8x256xf32, #tpu.memory_space<vmem>>, vector<1x8x256xf32>
    %214 = vector.shape_cast %213 : vector<1x8x256xf32> to vector<8x256xf32>
    %215 = vector.shape_cast %212 : vector<8x256xf32> to vector<1x8x256xf32>
    tpu.vector_store %arg9[%c0_69, %c0_70, %c0_71], %215 {strides = array<i32>} : memref<2x8x256xf32, #tpu.memory_space<vmem>>, vector<1x8x256xf32>,
    %c1 = arith.constant 1 : index
    %c0_72 = arith.constant 0 : index
    %c0_73 = arith.constant 0 : index
    %216 = vector.load %arg1[%c1, %c0_72, %c0_73] : memref<2x8x256xf32, #tpu.memory_space<vmem>>, vector<1x8x256xf32>
    %217 = vector.shape_cast %216 : vector<1x8x256xf32> to vector<8x256xf32>
    %c1_74 = arith.constant 1 : index
    %c0_75 = arith.constant 0 : index
    %c0_76 = arith.constant 0 : index
    %218 = vector.load %arg2[%c1_74, %c0_75, %c0_76] : memref<2x8x256xf32, #tpu.memory_space<vmem>>, vector<1x8x256xf32>
    %219 = vector.shape_cast %218 : vector<1x8x256xf32> to vector<8x256xf32>
    %c1_77 = arith.constant 1 : index
    %c0_78 = arith.constant 0 : index
    %c0_79 = arith.constant 0 : index
    %220 = vector.load %arg3[%c1_77, %c0_78, %c0_79] : memref<2x8x256xf32, #tpu.memory_space<vmem>>, vector<1x8x256xf32>
    %221 = vector.shape_cast %220 : vector<1x8x256xf32> to vector<8x256xf32>
    %cst_80 = arith.constant dense<0.000000e+00> : vector<8x256xf32>
    %222 = tpu.matmul %1, %217, %cst_80 {dimension_numbers = #tpu.dot_dimension_numbers<[1], [0], [0], [1], [0, 0, 1, 1], [], []>} : vector<8x8xf32>, vector<8x256xf32>, vector<8x256xf32> -> vector<8x256xf32>
    %cst_81 = arith.constant dense<0.000000e+00> : vector<8x256xf32>
    %223 = tpu.matmul %2, %219, %cst_81 {dimension_numbers = #tpu.dot_dimension_numbers<[1], [0], [0], [1], [0, 0, 1, 1], [], []>} : vector<8x8xf32>, vector<8x256xf32>, vector<8x256xf32> -> vector<8x256xf32>
    %cst_82 = arith.constant dense<0.000000e+00> : vector<8x256xf32>
    %224 = tpu.matmul %3, %221, %cst_82 {dimension_numbers = #tpu.dot_dimension_numbers<[1], [0], [0], [1], [0, 0, 1, 1], [], []>} : vector<8x8xf32>, vector<8x256xf32>, vector<8x256xf32> -> vector<8x256xf32>
    %225 = vector.extract_strided_slice %222 {offsets = [0, 0], sizes = [4, 256], strides = [1, 1]} : vector<8x256xf32> to vector<4x256xf32>
    %226 = vector.extract_strided_slice %223 {offsets = [0, 0], sizes = [4, 256], strides = [1, 1]} : vector<8x256xf32> to vector<4x256xf32>
    %227 = vector.extract_strided_slice %224 {offsets = [0, 0], sizes = [4, 256], strides = [1, 1]} : vector<8x256xf32> to vector<4x256xf32>
    %c17_i32_83 = arith.constant 17 : i32
    %228 = tpu.dynamic_rotate %226 by %c17_i32_83 dim 1 : vector<4x256xf32>, i32 -> vector<4x256xf32>
    %229 = arith.mulf %225, %228 : vector<4x256xf32>
    %cst_84 = arith.constant dense<0.000000e+00> : vector<256xf32>
    %230 = vector.multi_reduction <add>, %229, %cst_84 [0] : vector<4x256xf32> to vector<256xf32>
    %231 = vector.shape_cast %230 : vector<256xf32> to vector<1x256xf32>
    %c16_i32_85 = arith.constant 16 : i32
    %232 = tpu.dynamic_rotate %226 by %c16_i32_85 dim 1 : vector<4x256xf32>, i32 -> vector<4x256xf32>
    %233 = arith.mulf %225, %232 : vector<4x256xf32>
    %cst_86 = arith.constant dense<0.000000e+00> : vector<256xf32>
    %234 = vector.multi_reduction <add>, %233, %cst_86 [0] : vector<4x256xf32> to vector<256xf32>
    %235 = vector.shape_cast %234 : vector<256xf32> to vector<1x256xf32>
    %c15_i32_87 = arith.constant 15 : i32
    %236 = tpu.dynamic_rotate %226 by %c15_i32_87 dim 1 : vector<4x256xf32>, i32 -> vector<4x256xf32>
    %237 = arith.mulf %225, %236 : vector<4x256xf32>
    %cst_88 = arith.constant dense<0.000000e+00> : vector<256xf32>
    %238 = vector.multi_reduction <add>, %237, %cst_88 [0] : vector<4x256xf32> to vector<256xf32>
    %239 = vector.shape_cast %238 : vector<256xf32> to vector<1x256xf32>
    %c1_i32_89 = arith.constant 1 : i32
    %240 = tpu.dynamic_rotate %226 by %c1_i32_89 dim 1 : vector<4x256xf32>, i32 -> vector<4x256xf32>
    %241 = arith.mulf %225, %240 : vector<4x256xf32>
    %cst_90 = arith.constant dense<0.000000e+00> : vector<256xf32>
    %242 = vector.multi_reduction <add>, %241, %cst_90 [0] : vector<4x256xf32> to vector<256xf32>
    %243 = vector.shape_cast %242 : vector<256xf32> to vector<1x256xf32>
    %244 = arith.mulf %225, %226 : vector<4x256xf32>
    %cst_91 = arith.constant dense<0.000000e+00> : vector<256xf32>
    %245 = vector.multi_reduction <add>, %244, %cst_91 [0] : vector<4x256xf32> to vector<256xf32>
    %246 = vector.shape_cast %245 : vector<256xf32> to vector<1x256xf32>
    %c255_i32_92 = arith.constant 255 : i32
    %247 = tpu.dynamic_rotate %226 by %c255_i32_92 dim 1 : vector<4x256xf32>, i32 -> vector<4x256xf32>
    %248 = arith.mulf %225, %247 : vector<4x256xf32>
    %cst_93 = arith.constant dense<0.000000e+00> : vector<256xf32>
    %249 = vector.multi_reduction <add>, %248, %cst_93 [0] : vector<4x256xf32> to vector<256xf32>
    %250 = vector.shape_cast %249 : vector<256xf32> to vector<1x256xf32>
    %c241_i32_94 = arith.constant 241 : i32
    %251 = tpu.dynamic_rotate %226 by %c241_i32_94 dim 1 : vector<4x256xf32>, i32 -> vector<4x256xf32>
    %252 = arith.mulf %225, %251 : vector<4x256xf32>
    %cst_95 = arith.constant dense<0.000000e+00> : vector<256xf32>
    %253 = vector.multi_reduction <add>, %252, %cst_95 [0] : vector<4x256xf32> to vector<256xf32>
    %254 = vector.shape_cast %253 : vector<256xf32> to vector<1x256xf32>
    %c240_i32_96 = arith.constant 240 : i32
    %255 = tpu.dynamic_rotate %226 by %c240_i32_96 dim 1 : vector<4x256xf32>, i32 -> vector<4x256xf32>
    %256 = arith.mulf %225, %255 : vector<4x256xf32>
    %cst_97 = arith.constant dense<0.000000e+00> : vector<256xf32>
    %257 = vector.multi_reduction <add>, %256, %cst_97 [0] : vector<4x256xf32> to vector<256xf32>
    %258 = vector.shape_cast %257 : vector<256xf32> to vector<1x256xf32>
    %c239_i32_98 = arith.constant 239 : i32
    %259 = tpu.dynamic_rotate %226 by %c239_i32_98 dim 1 : vector<4x256xf32>, i32 -> vector<4x256xf32>
    %260 = arith.mulf %225, %259 : vector<4x256xf32>
    %cst_99 = arith.constant dense<0.000000e+00> : vector<256xf32>
    %261 = vector.multi_reduction <add>, %260, %cst_99 [0] : vector<4x256xf32> to vector<256xf32>
    %262 = vector.shape_cast %261 : vector<256xf32> to vector<1x256xf32>
    %263 = tpu.concatenate %231, %235, %239, %243, %246, %250, %254, %258, %262 in 0 : vector<1x256xf32>, vector<1x256xf32>, vector<1x256xf32>, vector<1x256xf32>, vector<1x256xf32>, vector<1x256xf32>, vector<1x256xf32>, vector<1x256xf32>, vector<1x256xf32> -> vector<9x256xf32>
    %264 = arith.mulf %263, %0 : vector<9x256xf32>
    %cst_100 = arith.constant dense<0xFF800000> : vector<256xf32>
    %265 = vector.multi_reduction <maximumf>, %264, %cst_100 [0] : vector<9x256xf32> to vector<256xf32>
    %266 = vector.shape_cast %265 : vector<256xf32> to vector<1x256xf32>
    %267 = vector.broadcast %266 : vector<1x256xf32> to vector<9x256xf32>
    %268 = arith.subf %264, %267 : vector<9x256xf32>
    %269 = math.exp %268 : vector<9x256xf32>
    %cst_101 = arith.constant dense<0.000000e+00> : vector<256xf32>
    %270 = vector.multi_reduction <add>, %269, %cst_101 [0] : vector<9x256xf32> to vector<256xf32>
    %271 = vector.shape_cast %270 : vector<256xf32> to vector<1x256xf32>
    %272 = tpu.reciprocal %271 {approx = true} : vector<1x256xf32> -> vector<1x256xf32>
    %273 = arith.mulf %271, %272 : vector<1x256xf32>
    %cst_102 = arith.constant 2.000000e+00 : f32
    %274 = vector.broadcast %cst_102 : f32 to vector<1x256xf32>
    %275 = arith.subf %274, %273 : vector<1x256xf32>
    %276 = arith.mulf %272, %275 : vector<1x256xf32>
    %277 = vector.broadcast %276 : vector<1x256xf32> to vector<9x256xf32>
    %278 = arith.mulf %277, %0 : vector<9x256xf32>
    %279 = arith.mulf %269, %278 : vector<9x256xf32>
    %280 = vector.extract_strided_slice %279 {offsets = [0, 0], sizes = [1, 256], strides = [1, 1]} : vector<9x256xf32> to vector<1x256xf32>
    %c17_i32_103 = arith.constant 17 : i32
    %281 = tpu.dynamic_rotate %227 by %c17_i32_103 dim 1 : vector<4x256xf32>, i32 -> vector<4x256xf32>
    %282 = vector.broadcast %280 : vector<1x256xf32> to vector<4x256xf32>
    %283 = arith.mulf %282, %281 : vector<4x256xf32>
    %284 = vector.extract_strided_slice %279 {offsets = [1, 0], sizes = [1, 256], strides = [1, 1]} : vector<9x256xf32> to vector<1x256xf32>
    %c16_i32_104 = arith.constant 16 : i32
    %285 = tpu.dynamic_rotate %227 by %c16_i32_104 dim 1 : vector<4x256xf32>, i32 -> vector<4x256xf32>
    %286 = vector.broadcast %284 : vector<1x256xf32> to vector<4x256xf32>
    %287 = arith.mulf %286, %285 : vector<4x256xf32>
    %288 = arith.addf %283, %287 : vector<4x256xf32>
    %289 = vector.extract_strided_slice %279 {offsets = [2, 0], sizes = [1, 256], strides = [1, 1]} : vector<9x256xf32> to vector<1x256xf32>
    %c15_i32_105 = arith.constant 15 : i32
    %290 = tpu.dynamic_rotate %227 by %c15_i32_105 dim 1 : vector<4x256xf32>, i32 -> vector<4x256xf32>
    %291 = vector.broadcast %289 : vector<1x256xf32> to vector<4x256xf32>
    %292 = arith.mulf %291, %290 : vector<4x256xf32>
    %293 = arith.addf %288, %292 : vector<4x256xf32>
    %294 = vector.extract_strided_slice %279 {offsets = [3, 0], sizes = [1, 256], strides = [1, 1]} : vector<9x256xf32> to vector<1x256xf32>
    %c1_i32_106 = arith.constant 1 : i32
    %295 = tpu.dynamic_rotate %227 by %c1_i32_106 dim 1 : vector<4x256xf32>, i32 -> vector<4x256xf32>
    %296 = vector.broadcast %294 : vector<1x256xf32> to vector<4x256xf32>
    %297 = arith.mulf %296, %295 : vector<4x256xf32>
    %298 = arith.addf %293, %297 : vector<4x256xf32>
    %299 = vector.extract_strided_slice %279 {offsets = [4, 0], sizes = [1, 256], strides = [1, 1]} : vector<9x256xf32> to vector<1x256xf32>
    %300 = vector.broadcast %299 : vector<1x256xf32> to vector<4x256xf32>
    %301 = arith.mulf %300, %227 : vector<4x256xf32>
    %302 = arith.addf %298, %301 : vector<4x256xf32>
    %303 = vector.extract_strided_slice %279 {offsets = [5, 0], sizes = [1, 256], strides = [1, 1]} : vector<9x256xf32> to vector<1x256xf32>
    %c255_i32_107 = arith.constant 255 : i32
    %304 = tpu.dynamic_rotate %227 by %c255_i32_107 dim 1 : vector<4x256xf32>, i32 -> vector<4x256xf32>
    %305 = vector.broadcast %303 : vector<1x256xf32> to vector<4x256xf32>
    %306 = arith.mulf %305, %304 : vector<4x256xf32>
    %307 = arith.addf %302, %306 : vector<4x256xf32>
    %308 = vector.extract_strided_slice %279 {offsets = [6, 0], sizes = [1, 256], strides = [1, 1]} : vector<9x256xf32> to vector<1x256xf32>
    %c241_i32_108 = arith.constant 241 : i32
    %309 = tpu.dynamic_rotate %227 by %c241_i32_108 dim 1 : vector<4x256xf32>, i32 -> vector<4x256xf32>
    %310 = vector.broadcast %308 : vector<1x256xf32> to vector<4x256xf32>
    %311 = arith.mulf %310, %309 : vector<4x256xf32>
    %312 = arith.addf %307, %311 : vector<4x256xf32>
    %313 = vector.extract_strided_slice %279 {offsets = [7, 0], sizes = [1, 256], strides = [1, 1]} : vector<9x256xf32> to vector<1x256xf32>
    %c240_i32_109 = arith.constant 240 : i32
    %314 = tpu.dynamic_rotate %227 by %c240_i32_109 dim 1 : vector<4x256xf32>, i32 -> vector<4x256xf32>
    %315 = vector.broadcast %313 : vector<1x256xf32> to vector<4x256xf32>
    %316 = arith.mulf %315, %314 : vector<4x256xf32>
    %317 = arith.addf %312, %316 : vector<4x256xf32>
    %318 = vector.extract_strided_slice %279 {offsets = [8, 0], sizes = [1, 256], strides = [1, 1]} : vector<9x256xf32> to vector<1x256xf32>
    %c239_i32_110 = arith.constant 239 : i32
    %319 = tpu.dynamic_rotate %227 by %c239_i32_110 dim 1 : vector<4x256xf32>, i32 -> vector<4x256xf32>
    %320 = vector.broadcast %318 : vector<1x256xf32> to vector<4x256xf32>
    %321 = arith.mulf %320, %319 : vector<4x256xf32>
    %322 = arith.addf %317, %321 : vector<4x256xf32>
    %323 = vector.extract_strided_slice %222 {offsets = [4, 0], sizes = [4, 256], strides = [1, 1]} : vector<8x256xf32> to vector<4x256xf32>
    %324 = vector.extract_strided_slice %223 {offsets = [4, 0], sizes = [4, 256], strides = [1, 1]} : vector<8x256xf32> to vector<4x256xf32>
    %325 = vector.extract_strided_slice %224 {offsets = [4, 0], sizes = [4, 256], strides = [1, 1]} : vector<8x256xf32> to vector<4x256xf32>
    %c17_i32_111 = arith.constant 17 : i32
    %326 = tpu.dynamic_rotate %324 by %c17_i32_111 dim 1 : vector<4x256xf32>, i32 -> vector<4x256xf32>
    %327 = arith.mulf %323, %326 : vector<4x256xf32>
    %cst_112 = arith.constant dense<0.000000e+00> : vector<256xf32>
    %328 = vector.multi_reduction <add>, %327, %cst_112 [0] : vector<4x256xf32> to vector<256xf32>
    %329 = vector.shape_cast %328 : vector<256xf32> to vector<1x256xf32>
    %c16_i32_113 = arith.constant 16 : i32
    %330 = tpu.dynamic_rotate %324 by %c16_i32_113 dim 1 : vector<4x256xf32>, i32 -> vector<4x256xf32>
    %331 = arith.mulf %323, %330 : vector<4x256xf32>
    %cst_114 = arith.constant dense<0.000000e+00> : vector<256xf32>
    %332 = vector.multi_reduction <add>, %331, %cst_114 [0] : vector<4x256xf32> to vector<256xf32>
    %333 = vector.shape_cast %332 : vector<256xf32> to vector<1x256xf32>
    %c15_i32_115 = arith.constant 15 : i32
    %334 = tpu.dynamic_rotate %324 by %c15_i32_115 dim 1 : vector<4x256xf32>, i32 -> vector<4x256xf32>
    %335 = arith.mulf %323, %334 : vector<4x256xf32>
    %cst_116 = arith.constant dense<0.000000e+00> : vector<256xf32>
    %336 = vector.multi_reduction <add>, %335, %cst_116 [0] : vector<4x256xf32> to vector<256xf32>
    %337 = vector.shape_cast %336 : vector<256xf32> to vector<1x256xf32>
    %c1_i32_117 = arith.constant 1 : i32
    %338 = tpu.dynamic_rotate %324 by %c1_i32_117 dim 1 : vector<4x256xf32>, i32 -> vector<4x256xf32>
    %339 = arith.mulf %323, %338 : vector<4x256xf32>
    %cst_118 = arith.constant dense<0.000000e+00> : vector<256xf32>
    %340 = vector.multi_reduction <add>, %339, %cst_118 [0] : vector<4x256xf32> to vector<256xf32>
    %341 = vector.shape_cast %340 : vector<256xf32> to vector<1x256xf32>
    %342 = arith.mulf %323, %324 : vector<4x256xf32>
    %cst_119 = arith.constant dense<0.000000e+00> : vector<256xf32>
    %343 = vector.multi_reduction <add>, %342, %cst_119 [0] : vector<4x256xf32> to vector<256xf32>
    %344 = vector.shape_cast %343 : vector<256xf32> to vector<1x256xf32>
    %c255_i32_120 = arith.constant 255 : i32
    %345 = tpu.dynamic_rotate %324 by %c255_i32_120 dim 1 : vector<4x256xf32>, i32 -> vector<4x256xf32>
    %346 = arith.mulf %323, %345 : vector<4x256xf32>
    %cst_121 = arith.constant dense<0.000000e+00> : vector<256xf32>
    %347 = vector.multi_reduction <add>, %346, %cst_121 [0] : vector<4x256xf32> to vector<256xf32>
    %348 = vector.shape_cast %347 : vector<256xf32> to vector<1x256xf32>
    %c241_i32_122 = arith.constant 241 : i32
    %349 = tpu.dynamic_rotate %324 by %c241_i32_122 dim 1 : vector<4x256xf32>, i32 -> vector<4x256xf32>
    %350 = arith.mulf %323, %349 : vector<4x256xf32>
    %cst_123 = arith.constant dense<0.000000e+00> : vector<256xf32>
    %351 = vector.multi_reduction <add>, %350, %cst_123 [0] : vector<4x256xf32> to vector<256xf32>
    %352 = vector.shape_cast %351 : vector<256xf32> to vector<1x256xf32>
    %c240_i32_124 = arith.constant 240 : i32
    %353 = tpu.dynamic_rotate %324 by %c240_i32_124 dim 1 : vector<4x256xf32>, i32 -> vector<4x256xf32>
    %354 = arith.mulf %323, %353 : vector<4x256xf32>
    %cst_125 = arith.constant dense<0.000000e+00> : vector<256xf32>
    %355 = vector.multi_reduction <add>, %354, %cst_125 [0] : vector<4x256xf32> to vector<256xf32>
    %356 = vector.shape_cast %355 : vector<256xf32> to vector<1x256xf32>
    %c239_i32_126 = arith.constant 239 : i32
    %357 = tpu.dynamic_rotate %324 by %c239_i32_126 dim 1 : vector<4x256xf32>, i32 -> vector<4x256xf32>
    %358 = arith.mulf %323, %357 : vector<4x256xf32>
    %cst_127 = arith.constant dense<0.000000e+00> : vector<256xf32>
    %359 = vector.multi_reduction <add>, %358, %cst_127 [0] : vector<4x256xf32> to vector<256xf32>
    %360 = vector.shape_cast %359 : vector<256xf32> to vector<1x256xf32>
    %361 = tpu.concatenate %329, %333, %337, %341, %344, %348, %352, %356, %360 in 0 : vector<1x256xf32>, vector<1x256xf32>, vector<1x256xf32>, vector<1x256xf32>, vector<1x256xf32>, vector<1x256xf32>, vector<1x256xf32>, vector<1x256xf32>, vector<1x256xf32> -> vector<9x256xf32>
    %362 = arith.mulf %361, %0 : vector<9x256xf32>
    %cst_128 = arith.constant dense<0xFF800000> : vector<256xf32>
    %363 = vector.multi_reduction <maximumf>, %362, %cst_128 [0] : vector<9x256xf32> to vector<256xf32>
    %364 = vector.shape_cast %363 : vector<256xf32> to vector<1x256xf32>
    %365 = vector.broadcast %364 : vector<1x256xf32> to vector<9x256xf32>
    %366 = arith.subf %362, %365 : vector<9x256xf32>
    %367 = math.exp %366 : vector<9x256xf32>
    %cst_129 = arith.constant dense<0.000000e+00> : vector<256xf32>
    %368 = vector.multi_reduction <add>, %367, %cst_129 [0] : vector<9x256xf32> to vector<256xf32>
    %369 = vector.shape_cast %368 : vector<256xf32> to vector<1x256xf32>
    %370 = tpu.reciprocal %369 {approx = true} : vector<1x256xf32> -> vector<1x256xf32>
    %371 = arith.mulf %369, %370 : vector<1x256xf32>
    %cst_130 = arith.constant 2.000000e+00 : f32
    %372 = vector.broadcast %cst_130 : f32 to vector<1x256xf32>
    %373 = arith.subf %372, %371 : vector<1x256xf32>
    %374 = arith.mulf %370, %373 : vector<1x256xf32>
    %375 = vector.broadcast %374 : vector<1x256xf32> to vector<9x256xf32>
    %376 = arith.mulf %375, %0 : vector<9x256xf32>
    %377 = arith.mulf %367, %376 : vector<9x256xf32>
    %378 = vector.extract_strided_slice %377 {offsets = [0, 0], sizes = [1, 256], strides = [1, 1]} : vector<9x256xf32> to vector<1x256xf32>
    %c17_i32_131 = arith.constant 17 : i32
    %379 = tpu.dynamic_rotate %325 by %c17_i32_131 dim 1 : vector<4x256xf32>, i32 -> vector<4x256xf32>
    %380 = vector.broadcast %378 : vector<1x256xf32> to vector<4x256xf32>
    %381 = arith.mulf %380, %379 : vector<4x256xf32>
    %382 = vector.extract_strided_slice %377 {offsets = [1, 0], sizes = [1, 256], strides = [1, 1]} : vector<9x256xf32> to vector<1x256xf32>
    %c16_i32_132 = arith.constant 16 : i32
    %383 = tpu.dynamic_rotate %325 by %c16_i32_132 dim 1 : vector<4x256xf32>, i32 -> vector<4x256xf32>
    %384 = vector.broadcast %382 : vector<1x256xf32> to vector<4x256xf32>
    %385 = arith.mulf %384, %383 : vector<4x256xf32>
    %386 = arith.addf %381, %385 : vector<4x256xf32>
    %387 = vector.extract_strided_slice %377 {offsets = [2, 0], sizes = [1, 256], strides = [1, 1]} : vector<9x256xf32> to vector<1x256xf32>
    %c15_i32_133 = arith.constant 15 : i32
    %388 = tpu.dynamic_rotate %325 by %c15_i32_133 dim 1 : vector<4x256xf32>, i32 -> vector<4x256xf32>
    %389 = vector.broadcast %387 : vector<1x256xf32> to vector<4x256xf32>
    %390 = arith.mulf %389, %388 : vector<4x256xf32>
    %391 = arith.addf %386, %390 : vector<4x256xf32>
    %392 = vector.extract_strided_slice %377 {offsets = [3, 0], sizes = [1, 256], strides = [1, 1]} : vector<9x256xf32> to vector<1x256xf32>
    %c1_i32_134 = arith.constant 1 : i32
    %393 = tpu.dynamic_rotate %325 by %c1_i32_134 dim 1 : vector<4x256xf32>, i32 -> vector<4x256xf32>
    %394 = vector.broadcast %392 : vector<1x256xf32> to vector<4x256xf32>
    %395 = arith.mulf %394, %393 : vector<4x256xf32>
    %396 = arith.addf %391, %395 : vector<4x256xf32>
    %397 = vector.extract_strided_slice %377 {offsets = [4, 0], sizes = [1, 256], strides = [1, 1]} : vector<9x256xf32> to vector<1x256xf32>
    %398 = vector.broadcast %397 : vector<1x256xf32> to vector<4x256xf32>
    %399 = arith.mulf %398, %325 : vector<4x256xf32>
    %400 = arith.addf %396, %399 : vector<4x256xf32>
    %401 = vector.extract_strided_slice %377 {offsets = [5, 0], sizes = [1, 256], strides = [1, 1]} : vector<9x256xf32> to vector<1x256xf32>
    %c255_i32_135 = arith.constant 255 : i32
    %402 = tpu.dynamic_rotate %325 by %c255_i32_135 dim 1 : vector<4x256xf32>, i32 -> vector<4x256xf32>
    %403 = vector.broadcast %401 : vector<1x256xf32> to vector<4x256xf32>
    %404 = arith.mulf %403, %402 : vector<4x256xf32>
    %405 = arith.addf %400, %404 : vector<4x256xf32>
    %406 = vector.extract_strided_slice %377 {offsets = [6, 0], sizes = [1, 256], strides = [1, 1]} : vector<9x256xf32> to vector<1x256xf32>
    %c241_i32_136 = arith.constant 241 : i32
    %407 = tpu.dynamic_rotate %325 by %c241_i32_136 dim 1 : vector<4x256xf32>, i32 -> vector<4x256xf32>
    %408 = vector.broadcast %406 : vector<1x256xf32> to vector<4x256xf32>
    %409 = arith.mulf %408, %407 : vector<4x256xf32>
    %410 = arith.addf %405, %409 : vector<4x256xf32>
    %411 = vector.extract_strided_slice %377 {offsets = [7, 0], sizes = [1, 256], strides = [1, 1]} : vector<9x256xf32> to vector<1x256xf32>
    %c240_i32_137 = arith.constant 240 : i32
    %412 = tpu.dynamic_rotate %325 by %c240_i32_137 dim 1 : vector<4x256xf32>, i32 -> vector<4x256xf32>
    %413 = vector.broadcast %411 : vector<1x256xf32> to vector<4x256xf32>
    %414 = arith.mulf %413, %412 : vector<4x256xf32>
    %415 = arith.addf %410, %414 : vector<4x256xf32>
    %416 = vector.extract_strided_slice %377 {offsets = [8, 0], sizes = [1, 256], strides = [1, 1]} : vector<9x256xf32> to vector<1x256xf32>
    %c239_i32_138 = arith.constant 239 : i32
    %417 = tpu.dynamic_rotate %325 by %c239_i32_138 dim 1 : vector<4x256xf32>, i32 -> vector<4x256xf32>
    %418 = vector.broadcast %416 : vector<1x256xf32> to vector<4x256xf32>
    %419 = arith.mulf %418, %417 : vector<4x256xf32>
    %420 = arith.addf %415, %419 : vector<4x256xf32>
    %421 = tpu.concatenate %322, %420 in 0 : vector<4x256xf32>, vector<4x256xf32> -> vector<8x256xf32>
    %cst_139 = arith.constant dense<0.000000e+00> : vector<8x256xf32>
    %422 = tpu.matmul %4, %421, %cst_139 {dimension_numbers = #tpu.dot_dimension_numbers<[1], [0], [0], [1], [0, 0, 1, 1], [], []>} : vector<8x8xf32>, vector<8x256xf32>, vector<8x256xf32> -> vector<8x256xf32>
    %423 = arith.addf %217, %422 : vector<8x256xf32>
    %c1_140 = arith.constant 1 : index
    %c0_141 = arith.constant 0 : index
    %c0_142 = arith.constant 0 : index
    %424 = vector.load %arg9[%c1_140, %c0_141, %c0_142] : memref<2x8x256xf32, #tpu.memory_space<vmem>>, vector<1x8x256xf32>
    %425 = vector.shape_cast %424 : vector<1x8x256xf32> to vector<8x256xf32>
    %426 = vector.shape_cast %423 : vector<8x256xf32> to vector<1x8x256xf32>
    tpu.vector_store %arg9[%c1_140, %c0_141, %c0_142], %426 {strides = array<i32>} : memref<2x8x256xf32, #tpu.memory_space<vmem>>, vector<1x8x256xf32>,
    return
  }
  func.func @transform_0(%arg0: i32) -> (i32, i32, i32) {
    %c0_i32 = arith.constant 0 : i32
    %c0_i32_0 = arith.constant 0 : i32
    %c0_i32_1 = arith.constant 0 : i32
    return %arg0, %c0_i32, %c0_i32_0 : i32, i32, i32
  }
  func.func @transform_1(%arg0: i32) -> (i32, i32, i32) {
    %c0_i32 = arith.constant 0 : i32
    %c0_i32_0 = arith.constant 0 : i32
    %c0_i32_1 = arith.constant 0 : i32
    return %arg0, %c0_i32, %c0_i32_0 : i32, i32, i32
  }
  func.func @transform_2(%arg0: i32) -> (i32, i32, i32) {
    %c0_i32 = arith.constant 0 : i32
    %c0_i32_0 = arith.constant 0 : i32
    %c0_i32_1 = arith.constant 0 : i32
    return %arg0, %c0_i32, %c0_i32_0 : i32, i32, i32
  }
  func.func @transform_3(%arg0: i32) -> (i32, i32) {
    %c0_i32 = arith.constant 0 : i32
    %c0_i32_0 = arith.constant 0 : i32
    %c0_i32_1 = arith.constant 0 : i32
    return %c0_i32, %c0_i32_0 : i32, i32
  }
  func.func @transform_4(%arg0: i32) -> (i32, i32) {
    %c0_i32 = arith.constant 0 : i32
    %c0_i32_0 = arith.constant 0 : i32
    %c0_i32_1 = arith.constant 0 : i32
    return %c0_i32, %c0_i32_0 : i32, i32
  }
  func.func @transform_5(%arg0: i32) -> (i32, i32) {
    %c0_i32 = arith.constant 0 : i32
    %c0_i32_0 = arith.constant 0 : i32
    %c0_i32_1 = arith.constant 0 : i32
    return %c0_i32, %c0_i32_0 : i32, i32
  }
  func.func @transform_6(%arg0: i32) -> (i32, i32) {
    %c0_i32 = arith.constant 0 : i32
    %c0_i32_0 = arith.constant 0 : i32
    %c0_i32_1 = arith.constant 0 : i32
    return %c0_i32, %c0_i32_0 : i32, i32
  }
  func.func @transform_7(%arg0: i32) -> (i32, i32) {
    %c0_i32 = arith.constant 0 : i32
    %c0_i32_0 = arith.constant 0 : i32
    %c0_i32_1 = arith.constant 0 : i32
    return %c0_i32, %c0_i32_0 : i32, i32
  }
  func.func @transform_8(%arg0: i32) -> (i32, i32, i32) {
    %c0_i32 = arith.constant 0 : i32
    %c0_i32_0 = arith.constant 0 : i32
    %c0_i32_1 = arith.constant 0 : i32
    return %arg0, %c0_i32, %c0_i32_0 : i32, i32, i32
  }
}

</mosaic_0001>

<llo_original>
// kernel: tpu_custom_call.1
$region0: #{tpu_custom_call.1}
  #allocation0 [shape = 'u32[]', space=smem, size = 0x4, offset = 0x4, fixed_abs, tag = 'smem constant byte address 0x4 - core index']
  #allocation1 [shape = 'u32[144,128]{1,0:T(1,128)}', space=vmem, size = 0x12000, scoped, tag = 'internal scratch']
  %s0 = inlined_call_operand.hbm [shape: f32[2,8,256], index: 0, kind: input, shape index: {}]
  %s1 = inlined_call_operand.hbm [shape: f32[2,8,256], index: 1, kind: input, shape index: {}]
  %s2 = inlined_call_operand.hbm [shape: f32[2,8,256], index: 2, kind: input, shape index: {}]
  %s3 = inlined_call_operand.hbm [shape: f32[8,8], index: 3, kind: input, shape index: {}]
  %s4 = inlined_call_operand.hbm [shape: f32[8,8], index: 4, kind: input, shape index: {}]
  %s5 = inlined_call_operand.vmem [shape: f32[8,8], index: 5, kind: input, shape index: {}]
  %s6 = inlined_call_operand.hbm [shape: f32[8,8], index: 6, kind: input, shape index: {}]
  %s7 = inlined_call_operand.hbm [shape: f32[9,256], index: 7, kind: input, shape index: {}]
  %s8 = inlined_call_operand.hbm [shape: f32[2,8,256], index: 8, kind: output, shape index: {}]
  %s9 = sld [smem:[#allocation0]]
  $region70: #{tpu_custom_call.1} parent=0
    _
  %s11 = ssub.s32 1, %s9
  %s12 = scalar_select 0, %s11, %s9
  $region1: #{tpu_custom_call.1} parent=0
    #allocation2 [shape = 'u8[16384]{0}', space=vmem, size = 0x4000, scoped, tag = 'input window, operand 0, single buffered']
    #allocation3 [shape = 's32[1]{0}', space=sflag, size = 0x4, scoped, tag = 'scoped memory for tpu_custom_call.1']
    #allocation4 [shape = 's32[1]{0}', space=sflag, size = 0x4, scoped, tag = 'scoped memory for tpu_custom_call.1']
    #allocation5 [shape = 'u8[16384]{0}', space=vmem, size = 0x4000, scoped, tag = 'input window, operand 1, single buffered']
    #allocation6 [shape = 's32[1]{0}', space=sflag, size = 0x4, scoped, tag = 'scoped memory for tpu_custom_call.1']
    #allocation7 [shape = 'u8[16384]{0}', space=vmem, size = 0x4000, scoped, tag = 'input window, operand 2, single buffered']
    #allocation8 [shape = 'u8[4096]{0}', space=vmem, size = 0x1000, scoped, tag = 'input window, operand 3, single buffered']
    #allocation9 [shape = 's32[1]{0}', space=sflag, size = 0x4, scoped, tag = 'scoped memory for tpu_custom_call.1']
    #allocation10 [shape = 'u8[4096]{0}', space=vmem, size = 0x1000, scoped, tag = 'input window, operand 4, single buffered']
    #allocation11 [shape = 'u8[4096]{0}', space=vmem, size = 0x1000, scoped, tag = 'input window, operand 6, single buffered']
    #allocation12 [shape = 's32[1]{0}', space=sflag, size = 0x4, scoped, tag = 'scoped memory for tpu_custom_call.1']
    #allocation13 [shape = 'u8[16384]{0}', space=vmem, size = 0x4000, scoped, tag = 'input window, operand 7, single buffered']
    #allocation14 [shape = 'u8[16384]{0}', space=vmem, size = 0x4000, scoped, tag = 'output window, operand 0, single buffered']
    %13 = vsyncpa [#allocation3], 0
    %14 = vsyncpa [#allocation6], 0
    %15 = vsyncpa [#allocation9], 0
    %16 = vsyncpa [#allocation12], 0
    %17 = vsyncpa [#allocation4], 0
    // Predicated region
    $region2: #{tpu_custom_call.1} parent=1 // pred_check
      _
    $region3: #{tpu_custom_call.1} parent=1 // pred_check_branch
      %19 = sbr.rel (0) target = $region5
    $region4: #{tpu_custom_call.1} parent=1 // pred_region
      %s21 = ssub.s32 512, 512
      %22 = vsyncadd [#allocation3], %s21
      %s23 = sshll.u32 [#allocation2], 4
      %s24 = int_to_ptr.vmem [resolvable:$true] %s23
      %29 = dma.hbm_to_vmem [thread:$0]  %s0, 512, %s24, [#allocation3], 256, 256, 16
    $region5: #{tpu_custom_call.1} parent=1 // pred_fallthru
      _
    // Predicated region
    $region6: #{tpu_custom_call.1} parent=1 // pred_check
      _
    $region7: #{tpu_custom_call.1} parent=1 // pred_check_branch
      %31 = sbr.rel (0) target = $region9
    $region8: #{tpu_custom_call.1} parent=1 // pred_region
      %s33 = ssub.s32 512, 512
      %34 = vsyncadd [#allocation6], %s33
      %s35 = sshll.u32 [#allocation5], 4
      %s36 = int_to_ptr.vmem [resolvable:$true] %s35
      %41 = dma.hbm_to_vmem [thread:$0]  %s1, 512, %s36, [#allocation6], 256, 256, 16
    $region9: #{tpu_custom_call.1} parent=1 // pred_fallthru
      _
    // Predicated region
    $region10: #{tpu_custom_call.1} parent=1 // pred_check
      _
    $region11: #{tpu_custom_call.1} parent=1 // pred_check_branch
      %43 = sbr.rel (0) target = $region13
    $region12: #{tpu_custom_call.1} parent=1 // pred_region
      %s45 = ssub.s32 512, 512
      %46 = vsyncadd [#allocation6], %s45
      %s47 = sshll.u32 [#allocation7], 4
      %s48 = int_to_ptr.vmem [resolvable:$true] %s47
      %53 = dma.hbm_to_vmem [thread:$0]  %s2, 512, %s48, [#allocation6], 256, 256, 16
    $region13: #{tpu_custom_call.1} parent=1 // pred_fallthru
      _
    // Predicated region
    $region14: #{tpu_custom_call.1} parent=1 // pred_check
      _
    $region15: #{tpu_custom_call.1} parent=1 // pred_check_branch
      %55 = sbr.rel (0) target = $region17
    $region16: #{tpu_custom_call.1} parent=1 // pred_region
      %s57 = ssub.s32 128, 128
      %58 = vsyncadd [#allocation9], %s57
      %s60 = sshll.u32 [#allocation8], 4
      %s61 = int_to_ptr.vmem [resolvable:$true] %s60
      %63 = dma.hbm_to_vmem [thread:$0]  %s3, 128, %s61, [#allocation9]
    $region17: #{tpu_custom_call.1} parent=1 // pred_fallthru
      _
    // Predicated region
    $region18: #{tpu_custom_call.1} parent=1 // pred_check
      _
    $region19: #{tpu_custom_call.1} parent=1 // pred_check_branch
      %65 = sbr.rel (0) target = $region21
    $region20: #{tpu_custom_call.1} parent=1 // pred_region
      %s67 = ssub.s32 128, 128
      %68 = vsyncadd [#allocation9], %s67
      %s70 = sshll.u32 [#allocation10], 4
      %s71 = int_to_ptr.vmem [resolvable:$true] %s70
      %73 = dma.hbm_to_vmem [thread:$0]  %s4, 128, %s71, [#allocation9]
    $region21: #{tpu_custom_call.1} parent=1 // pred_fallthru
      _
    // Predicated region
    $region22: #{tpu_custom_call.1} parent=1 // pred_check
      _
    $region23: #{tpu_custom_call.1} parent=1 // pred_check_branch
      %75 = sbr.rel (0) target = $region25
    $region24: #{tpu_custom_call.1} parent=1 // pred_region
      _
    $region25: #{tpu_custom_call.1} parent=1 // pred_fallthru
      _
    // Predicated region
    $region26: #{tpu_custom_call.1} parent=1 // pred_check
      _
    $region27: #{tpu_custom_call.1} parent=1 // pred_check_branch
      %77 = sbr.rel (0) target = $region29
    $region28: #{tpu_custom_call.1} parent=1 // pred_region
      %s79 = ssub.s32 128, 128
      %80 = vsyncadd [#allocation12], %s79
      %s82 = sshll.u32 [#allocation11], 4
      %s83 = int_to_ptr.vmem [resolvable:$true] %s82
      %85 = dma.hbm_to_vmem [thread:$0]  %s6, 128, %s83, [#allocation12]
    $region29: #{tpu_custom_call.1} parent=1 // pred_fallthru
      _
    // Predicated region
    $region30: #{tpu_custom_call.1} parent=1 // pred_check
      _
    $region31: #{tpu_custom_call.1} parent=1 // pred_check_branch
      %87 = sbr.rel (0) target = $region33
    $region32: #{tpu_custom_call.1} parent=1 // pred_region
      %s89 = ssub.s32 512, 512
      %90 = vsyncadd [#allocation12], %s89
      %s91 = sshll.u32 [#allocation13], 4
      %s92 = int_to_ptr.vmem [resolvable:$true] %s91
      %97 = dma.hbm_to_vmem [thread:$0]  %s7, 512, %s92, [#allocation12], 256, 256, 16
    $region33: #{tpu_custom_call.1} parent=1 // pred_fallthru
      _
    // Predicated region
    $region34: #{tpu_custom_call.1} parent=1 // pred_check
      _
    $region35: #{tpu_custom_call.1} parent=1 // pred_check_branch
      %99 = sbr.rel (0) target = $region37
    $region36: #{tpu_custom_call.1} parent=1 // pred_region
      %100 = dma.done [#allocation3], 512
    $region37: #{tpu_custom_call.1} parent=1 // pred_fallthru
      _
    // Predicated region
    $region38: #{tpu_custom_call.1} parent=1 // pred_check
      _
    $region39: #{tpu_custom_call.1} parent=1 // pred_check_branch
      %102 = sbr.rel (0) target = $region41
    $region40: #{tpu_custom_call.1} parent=1 // pred_region
      %103 = dma.done [#allocation6], 512
    $region41: #{tpu_custom_call.1} parent=1 // pred_fallthru
      _
    // Predicated region
    $region42: #{tpu_custom_call.1} parent=1 // pred_check
      _
    $region43: #{tpu_custom_call.1} parent=1 // pred_check_branch
      %105 = sbr.rel (0) target = $region45
    $region44: #{tpu_custom_call.1} parent=1 // pred_region
      %106 = dma.done [#allocation6], 512
    $region45: #{tpu_custom_call.1} parent=1 // pred_fallthru
      _
    // Predicated region
    $region46: #{tpu_custom_call.1} parent=1 // pred_check
      _
    $region47: #{tpu_custom_call.1} parent=1 // pred_check_branch
      %108 = sbr.rel (0) target = $region49
    $region48: #{tpu_custom_call.1} parent=1 // pred_region
      %109 = dma.done [#allocation9], 128
    $region49: #{tpu_custom_call.1} parent=1 // pred_fallthru
      _
    // Predicated region
    $region50: #{tpu_custom_call.1} parent=1 // pred_check
      _
    $region51: #{tpu_custom_call.1} parent=1 // pred_check_branch
      %111 = sbr.rel (0) target = $region53
    $region52: #{tpu_custom_call.1} parent=1 // pred_region
      %112 = dma.done [#allocation9], 128
    $region53: #{tpu_custom_call.1} parent=1 // pred_fallthru
      _
    // Predicated region
    $region54: #{tpu_custom_call.1} parent=1 // pred_check
      _
    $region55: #{tpu_custom_call.1} parent=1 // pred_check_branch
      %114 = sbr.rel (0) target = $region57
    $region56: #{tpu_custom_call.1} parent=1 // pred_region
      %115 = dma.done [#allocation12], 128
    $region57: #{tpu_custom_call.1} parent=1 // pred_fallthru
      _
    // Predicated region
    $region58: #{tpu_custom_call.1} parent=1 // pred_check
      _
    $region59: #{tpu_custom_call.1} parent=1 // pred_check_branch
      %117 = sbr.rel (0) target = $region61
    $region60: #{tpu_custom_call.1} parent=1 // pred_region
      %118 = dma.done [#allocation12], 512
    $region61: #{tpu_custom_call.1} parent=1 // pred_fallthru
      _
    %v119 = vld [vmem:[#allocation13] sm:$0xff]
    %v120 = vld [vmem:[#allocation13 + $0x8] sm:$0xff]
    %v121 = vld [vmem:[#allocation13 + $0x10] sm:$0x1]
    %v122 = vld [vmem:[#allocation13 + $0x18] sm:$0x1]
    %v123 = vld [vmem:[#allocation8] sm:$0xff]
    %v124 = vld [vmem:[#allocation10] sm:$0xff]
    %v125 = vld [vmem:[%s5] sm:$0xff]
    %v126 = vld [vmem:[#allocation11] sm:$0xff]
    %v127 = vld [vmem:[#allocation2] sm:$0xff]
    %v128 = vld [vmem:[#allocation2 + $0x8] sm:$0xff]
    %v129 = vld [vmem:[#allocation5] sm:$0xff]
    %v130 = vld [vmem:[#allocation5 + $0x8] sm:$0xff]
    %v131 = vld [vmem:[#allocation7] sm:$0xff]
    %v132 = vld [vmem:[#allocation7 + $0x8] sm:$0xff]
    %vm133 = vcmask 64512
    %v135 = vsel %vm133, %v123, 0
    %137 = vmatprep.subr.mxu0 0.0
    %138 = vmatpush1.msra.mxu0 0.0
    %139 = vmatprep.subr.mxu0 0.0
    %140 = vmatpush1.msra.mxu0 0.0
    %141 = vmatprep.subr.mxu0 0.0
    %142 = vmatpush1.msra.mxu0 0.0
    %143 = vmatprep.subr.mxu0 0.0
    %144 = vmatpush1.msra.mxu0 0.0
    %145 = vmatprep.subr.mxu0 0.0
    %146 = vmatpush1.msra.mxu0 0.0
    %147 = vmatprep.subr.mxu0 0.0
    %148 = vmatpush1.msra.mxu0 0.0
    %149 = vmatprep.subr.mxu0 0.0
    %150 = vmatpush1.msra.mxu0 0.0
    %151 = vmatprep.subr.mxu0 0.0
    %152 = vmatpush1.msra.mxu0 0.0
    %153 = vmatprep.subr.mxu0 0.0
    %154 = vmatpush1.msra.mxu0 0.0
    %155 = vmatprep.subr.mxu0 0.0
    %156 = vmatpush1.msra.mxu0 0.0
    %157 = vmatprep.subr.mxu0 0.0
    %158 = vmatpush1.msra.mxu0 0.0
    %159 = vmatprep.subr.mxu0 0.0
    %160 = vmatpush1.msra.mxu0 0.0
    %161 = vmatprep.subr.mxu0 0.0
    %162 = vmatpush1.msra.mxu0 0.0
    %163 = vmatprep.subr.mxu0 0.0
    %164 = vmatpush1.msra.mxu0 0.0
    %165 = vmatprep.subr.mxu0 0.0
    %166 = vmatpush1.msra.mxu0 0.0
    %167 = vmatprep.subr.mxu0 %v128
    %168 = vmatpush1.msra.mxu0 %v127
    %169 = vmatprep.subr.mxu0 0.0
    %170 = vmatpush2.msra.mxu0 0.0
    %171 = vmatprep.subr.mxu0 0.0
    %172 = vmatpush2.msra.mxu0 0.0
    %173 = vmatprep.subr.mxu0 0.0
    %174 = vmatpush2.msra.mxu0 0.0
    %175 = vmatprep.subr.mxu0 0.0
    %176 = vmatpush2.msra.mxu0 0.0
    %177 = vmatprep.subr.mxu0 0.0
    %178 = vmatpush2.msra.mxu0 0.0
    %179 = vmatprep.subr.mxu0 0.0
    %180 = vmatpush2.msra.mxu0 0.0
    %181 = vmatprep.subr.mxu0 0.0
    %182 = vmatpush2.msra.mxu0 0.0
    %183 = vmatprep.subr.mxu0 0.0
    %184 = vmatpush2.msra.mxu0 0.0
    %185 = vmatprep.subr.mxu0 0.0
    %186 = vmatpush2.msra.mxu0 0.0
    %187 = vmatprep.subr.mxu0 0.0
    %188 = vmatpush2.msra.mxu0 0.0
    %189 = vmatprep.subr.mxu0 0.0
    %190 = vmatpush2.msra.mxu0 0.0
    %191 = vmatprep.subr.mxu0 0.0
    %192 = vmatpush2.msra.mxu0 0.0
    %193 = vmatprep.subr.mxu0 0.0
    %194 = vmatpush2.msra.mxu0 0.0
    %195 = vmatprep.subr.mxu0 0.0
    %196 = vmatpush2.msra.mxu0 0.0
    %197 = vmatprep.subr.mxu0 0.0
    %198 = vmatpush2.msra.mxu0 0.0
    %199 = vmatprep.subr.mxu0 0.0
    %200 = vmatpush2.msra.mxu0 0.0
    %201 = vmatprep.mubr.f32.mxu0 0.0
    %202 = vmatmul.mubr.f32.gmra.mxu0 %v135
    %v203 = vpop.f32.mrf.mxu0
    %v204 = vadd.f32 0.0, %v203
    %v205 = vpop.f32.mrf.mxu0
    %v206 = vadd.f32 0.0, %v205
    %207 = vdwg.mxu0
    %v209 = vsel %vm133, %v124, 0
    %211 = vmatprep.subr.mxu0 0.0
    %212 = vmatpush1.msra.mxu0 0.0
    %213 = vmatprep.subr.mxu0 0.0
    %214 = vmatpush1.msra.mxu0 0.0
    %215 = vmatprep.subr.mxu0 0.0
    %216 = vmatpush1.msra.mxu0 0.0
    %217 = vmatprep.subr.mxu0 0.0
    %218 = vmatpush1.msra.mxu0 0.0
    %219 = vmatprep.subr.mxu0 0.0
    %220 = vmatpush1.msra.mxu0 0.0
    %221 = vmatprep.subr.mxu0 0.0
    %222 = vmatpush1.msra.mxu0 0.0
    %223 = vmatprep.subr.mxu0 0.0
    %224 = vmatpush1.msra.mxu0 0.0
    %225 = vmatprep.subr.mxu0 0.0
    %226 = vmatpush1.msra.mxu0 0.0
    %227 = vmatprep.subr.mxu0 0.0
    %228 = vmatpush1.msra.mxu0 0.0
    %229 = vmatprep.subr.mxu0 0.0
    %230 = vmatpush1.msra.mxu0 0.0
    %231 = vmatprep.subr.mxu0 0.0
    %232 = vmatpush1.msra.mxu0 0.0
    %233 = vmatprep.subr.mxu0 0.0
    %234 = vmatpush1.msra.mxu0 0.0
    %235 = vmatprep.subr.mxu0 0.0
    %236 = vmatpush1.msra.mxu0 0.0
    %237 = vmatprep.subr.mxu0 0.0
    %238 = vmatpush1.msra.mxu0 0.0
    %239 = vmatprep.subr.mxu0 0.0
    %240 = vmatpush1.msra.mxu0 0.0
    %241 = vmatprep.subr.mxu0 %v130
    %242 = vmatpush1.msra.mxu0 %v129
    %243 = vmatprep.subr.mxu0 0.0
    %244 = vmatpush2.msra.mxu0 0.0
    %245 = vmatprep.subr.mxu0 0.0
    %246 = vmatpush2.msra.mxu0 0.0
    %247 = vmatprep.subr.mxu0 0.0
    %248 = vmatpush2.msra.mxu0 0.0
    %249 = vmatprep.subr.mxu0 0.0
    %250 = vmatpush2.msra.mxu0 0.0
    %251 = vmatprep.subr.mxu0 0.0
    %252 = vmatpush2.msra.mxu0 0.0
    %253 = vmatprep.subr.mxu0 0.0
    %254 = vmatpush2.msra.mxu0 0.0
    %255 = vmatprep.subr.mxu0 0.0
    %256 = vmatpush2.msra.mxu0 0.0
    %257 = vmatprep.subr.mxu0 0.0
    %258 = vmatpush2.msra.mxu0 0.0
    %259 = vmatprep.subr.mxu0 0.0
    %260 = vmatpush2.msra.mxu0 0.0
    %261 = vmatprep.subr.mxu0 0.0
    %262 = vmatpush2.msra.mxu0 0.0
    %263 = vmatprep.subr.mxu0 0.0
    %264 = vmatpush2.msra.mxu0 0.0
    %265 = vmatprep.subr.mxu0 0.0
    %266 = vmatpush2.msra.mxu0 0.0
    %267 = vmatprep.subr.mxu0 0.0
    %268 = vmatpush2.msra.mxu0 0.0
    %269 = vmatprep.subr.mxu0 0.0
    %270 = vmatpush2.msra.mxu0 0.0
    %271 = vmatprep.subr.mxu0 0.0
    %272 = vmatpush2.msra.mxu0 0.0
    %273 = vmatprep.subr.mxu0 0.0
    %274 = vmatpush2.msra.mxu0 0.0
    %275 = vmatprep.mubr.f32.mxu0 0.0
    %276 = vmatmul.mubr.f32.gmra.mxu0 %v209
    %v277 = vpop.f32.mrf.mxu0
    %v278 = vadd.f32 0.0, %v277
    %v279 = vpop.f32.mrf.mxu0
    %v280 = vadd.f32 0.0, %v279
    %281 = vdwg.mxu0
    %v283 = vsel %vm133, %v125, 0
    %285 = vmatprep.subr.mxu0 0.0
    %286 = vmatpush1.msra.mxu0 0.0
    %287 = vmatprep.subr.mxu0 0.0
    %288 = vmatpush1.msra.mxu0 0.0
    %289 = vmatprep.subr.mxu0 0.0
    %290 = vmatpush1.msra.mxu0 0.0
    %291 = vmatprep.subr.mxu0 0.0
    %292 = vmatpush1.msra.mxu0 0.0
    %293 = vmatprep.subr.mxu0 0.0
    %294 = vmatpush1.msra.mxu0 0.0
    %295 = vmatprep.subr.mxu0 0.0
    %296 = vmatpush1.msra.mxu0 0.0
    %297 = vmatprep.subr.mxu0 0.0
    %298 = vmatpush1.msra.mxu0 0.0
    %299 = vmatprep.subr.mxu0 0.0
    %300 = vmatpush1.msra.mxu0 0.0
    %301 = vmatprep.subr.mxu0 0.0
    %302 = vmatpush1.msra.mxu0 0.0
    %303 = vmatprep.subr.mxu0 0.0
    %304 = vmatpush1.msra.mxu0 0.0
    %305 = vmatprep.subr.mxu0 0.0
    %306 = vmatpush1.msra.mxu0 0.0
    %307 = vmatprep.subr.mxu0 0.0
    %308 = vmatpush1.msra.mxu0 0.0
    %309 = vmatprep.subr.mxu0 0.0
    %310 = vmatpush1.msra.mxu0 0.0
    %311 = vmatprep.subr.mxu0 0.0
    %312 = vmatpush1.msra.mxu0 0.0
    %313 = vmatprep.subr.mxu0 0.0
    %314 = vmatpush1.msra.mxu0 0.0
    %315 = vmatprep.subr.mxu0 %v132
    %316 = vmatpush1.msra.mxu0 %v131
    %317 = vmatprep.subr.mxu0 0.0
    %318 = vmatpush2.msra.mxu0 0.0
    %319 = vmatprep.subr.mxu0 0.0
    %320 = vmatpush2.msra.mxu0 0.0
    %321 = vmatprep.subr.mxu0 0.0
    %322 = vmatpush2.msra.mxu0 0.0
    %323 = vmatprep.subr.mxu0 0.0
    %324 = vmatpush2.msra.mxu0 0.0
    %325 = vmatprep.subr.mxu0 0.0
    %326 = vmatpush2.msra.mxu0 0.0
    %327 = vmatprep.subr.mxu0 0.0
    %328 = vmatpush2.msra.mxu0 0.0
    %329 = vmatprep.subr.mxu0 0.0
    %330 = vmatpush2.msra.mxu0 0.0
    %331 = vmatprep.subr.mxu0 0.0
    %332 = vmatpush2.msra.mxu0 0.0
    %333 = vmatprep.subr.mxu0 0.0
    %334 = vmatpush2.msra.mxu0 0.0
    %335 = vmatprep.subr.mxu0 0.0
    %336 = vmatpush2.msra.mxu0 0.0
    %337 = vmatprep.subr.mxu0 0.0
    %338 = vmatpush2.msra.mxu0 0.0
    %339 = vmatprep.subr.mxu0 0.0
    %340 = vmatpush2.msra.mxu0 0.0
    %341 = vmatprep.subr.mxu0 0.0
    %342 = vmatpush2.msra.mxu0 0.0
    %343 = vmatprep.subr.mxu0 0.0
    %344 = vmatpush2.msra.mxu0 0.0
    %345 = vmatprep.subr.mxu0 0.0
    %346 = vmatpush2.msra.mxu0 0.0
    %347 = vmatprep.subr.mxu0 0.0
    %348 = vmatpush2.msra.mxu0 0.0
    %349 = vmatprep.mubr.f32.mxu0 0.0
    %350 = vmatmul.mubr.f32.gmra.mxu0 %v283
    %v351 = vpop.f32.mrf.mxu0
    %v352 = vadd.f32 0.0, %v351
    %v353 = vpop.f32.mrf.mxu0
    %v354 = vadd.f32 0.0, %v353
    %355 = vdwg.mxu0
    %356 = vrot.lane.b32.xlu0 %v278, 17
    %v357 = vpop.permute.xlu0 %356
    %358 = vrot.lane.b32.xlu0 %v280, 17
    %v359 = vpop.permute.xlu0 %358
    %v360 = vlaneseq
    %v361 = vand.u32 %v360, 127
    %vm362 = vcmp.lt.s32.totalorder %v361, 17
    %v363 = vsel %vm362, %v357, %v359
    %v364 = vsel %vm362, %v359, %v357
    %v365 = vmul.f32 %v204, %v364
    %v366 = vmul.f32 %v206, %v363
    %vm367 = vcmask 1043456
    %v368 = vsel %vm367, %v365, 0.0
    %v369 = vrot.slane %v368, 4
    %v370 = vadd.f32 %v368, %v369
    %v371 = vrot.slane %v370, 2
    %v372 = vadd.f32 %v370, %v371
    %v373 = vrot.slane %v372, 1
    %v374 = vadd.f32 %v372, %v373
    %v375 = vsel %vm367, %v366, 0.0
    %v376 = vrot.slane %v375, 4
    %v377 = vadd.f32 %v375, %v376
    %v378 = vrot.slane %v377, 2
    %v379 = vadd.f32 %v377, %v378
    %v380 = vrot.slane %v379, 1
    %v381 = vadd.f32 %v379, %v380
    %382 = vrot.lane.b32.xlu0 %v278, 16
    %v383 = vpop.permute.xlu0 %382
    %384 = vrot.lane.b32.xlu0 %v280, 16
    %v385 = vpop.permute.xlu0 %384
    %vm386 = vcmp.lt.s32.totalorder %v361, 16
    %v387 = vsel %vm386, %v383, %v385
    %v388 = vsel %vm386, %v385, %v383
    %v389 = vmul.f32 %v204, %v388
    %v390 = vmul.f32 %v206, %v387
    %v391 = vsel %vm367, %v389, 0.0
    %v392 = vrot.slane %v391, 4
    %v393 = vadd.f32 %v391, %v392
    %v394 = vrot.slane %v393, 2
    %v395 = vadd.f32 %v393, %v394
    %v396 = vrot.slane %v395, 1
    %v397 = vadd.f32 %v395, %v396
    %v398 = vsel %vm367, %v390, 0.0
    %v399 = vrot.slane %v398, 4
    %v400 = vadd.f32 %v398, %v399
    %v401 = vrot.slane %v400, 2
    %v402 = vadd.f32 %v400, %v401
    %v403 = vrot.slane %v402, 1
    %v404 = vadd.f32 %v402, %v403
    %405 = vrot.lane.b32.xlu0 %v278, 15
    %v406 = vpop.permute.xlu0 %405
    %407 = vrot.lane.b32.xlu0 %v280, 15
    %v408 = vpop.permute.xlu0 %407
    %vm409 = vcmp.lt.s32.totalorder %v361, 15
    %v410 = vsel %vm409, %v406, %v408
    %v411 = vsel %vm409, %v408, %v406
    %v412 = vmul.f32 %v204, %v411
    %v413 = vmul.f32 %v206, %v410
    %v414 = vsel %vm367, %v412, 0.0
    %v415 = vrot.slane %v414, 4
    %v416 = vadd.f32 %v414, %v415
    %v417 = vrot.slane %v416, 2
    %v418 = vadd.f32 %v416, %v417
    %v419 = vrot.slane %v418, 1
    %v420 = vadd.f32 %v418, %v419
    %v421 = vsel %vm367, %v413, 0.0
    %v422 = vrot.slane %v421, 4
    %v423 = vadd.f32 %v421, %v422
    %v424 = vrot.slane %v423, 2
    %v425 = vadd.f32 %v423, %v424
    %v426 = vrot.slane %v425, 1
    %v427 = vadd.f32 %v425, %v426
    %428 = vrot.lane.b32.xlu0 %v278, 1
    %v429 = vpop.permute.xlu0 %428
    %430 = vrot.lane.b32.xlu0 %v280, 1
    %v431 = vpop.permute.xlu0 %430
    %vm432 = vcmp.lt.s32.totalorder %v361, 1
    %v433 = vsel %vm432, %v429, %v431
    %v434 = vsel %vm432, %v431, %v429
    %v435 = vmul.f32 %v204, %v434
    %v436 = vmul.f32 %v206, %v433
    %v437 = vsel %vm367, %v435, 0.0
    %v438 = vrot.slane %v437, 4
    %v439 = vadd.f32 %v437, %v438
    %v440 = vrot.slane %v439, 2
    %v441 = vadd.f32 %v439, %v440
    %v442 = vrot.slane %v441, 1
    %v443 = vadd.f32 %v441, %v442
    %v444 = vsel %vm367, %v436, 0.0
    %v445 = vrot.slane %v444, 4
    %v446 = vadd.f32 %v444, %v445
    %v447 = vrot.slane %v446, 2
    %v448 = vadd.f32 %v446, %v447
    %v449 = vrot.slane %v448, 1
    %v450 = vadd.f32 %v448, %v449
    %v451 = vmul.f32 %v204, %v278
    %v452 = vmul.f32 %v206, %v280
    %v453 = vsel %vm367, %v451, 0.0
    %v454 = vrot.slane %v453, 4
    %v455 = vadd.f32 %v453, %v454
    %v456 = vrot.slane %v455, 2
    %v457 = vadd.f32 %v455, %v456
    %v458 = vrot.slane %v457, 1
    %v459 = vadd.f32 %v457, %v458
    %v460 = vsel %vm367, %v452, 0.0
    %v461 = vrot.slane %v460, 4
    %v462 = vadd.f32 %v460, %v461
    %v463 = vrot.slane %v462, 2
    %v464 = vadd.f32 %v462, %v463
    %v465 = vrot.slane %v464, 1
    %v466 = vadd.f32 %v464, %v465
    %467 = vrot.lane.b32.xlu0 %v278, 127
    %v468 = vpop.permute.xlu0 %467
    %469 = vrot.lane.b32.xlu0 %v280, 127
    %v470 = vpop.permute.xlu0 %469
    %vm471 = vcmp.lt.s32.totalorder %v361, 127
    %v472 = vsel %vm471, %v468, %v470
    %v473 = vsel %vm471, %v470, %v468
    %v474 = vmul.f32 %v204, %v472
    %v475 = vmul.f32 %v206, %v473
    %v476 = vsel %vm367, %v474, 0.0
    %v477 = vrot.slane %v476, 4
    %v478 = vadd.f32 %v476, %v477
    %v479 = vrot.slane %v478, 2
    %v480 = vadd.f32 %v478, %v479
    %v481 = vrot.slane %v480, 1
    %v482 = vadd.f32 %v480, %v481
    %v483 = vsel %vm367, %v475, 0.0
    %v484 = vrot.slane %v483, 4
    %v485 = vadd.f32 %v483, %v484
    %v486 = vrot.slane %v485, 2
    %v487 = vadd.f32 %v485, %v486
    %v488 = vrot.slane %v487, 1
    %v489 = vadd.f32 %v487, %v488
    %490 = vrot.lane.b32.xlu0 %v278, 113
    %v491 = vpop.permute.xlu0 %490
    %492 = vrot.lane.b32.xlu0 %v280, 113
    %v493 = vpop.permute.xlu0 %492
    %vm494 = vcmp.lt.s32.totalorder %v361, 113
    %v495 = vsel %vm494, %v491, %v493
    %v496 = vsel %vm494, %v493, %v491
    %v497 = vmul.f32 %v204, %v495
    %v498 = vmul.f32 %v206, %v496
    %v499 = vsel %vm367, %v497, 0.0
    %v500 = vrot.slane %v499, 4
    %v501 = vadd.f32 %v499, %v500
    %v502 = vrot.slane %v501, 2
    %v503 = vadd.f32 %v501, %v502
    %v504 = vrot.slane %v503, 1
    %v505 = vadd.f32 %v503, %v504
    %v506 = vsel %vm367, %v498, 0.0
    %v507 = vrot.slane %v506, 4
    %v508 = vadd.f32 %v506, %v507
    %v509 = vrot.slane %v508, 2
    %v510 = vadd.f32 %v508, %v509
    %v511 = vrot.slane %v510, 1
    %v512 = vadd.f32 %v510, %v511
    %513 = vrot.lane.b32.xlu0 %v278, 112
    %v514 = vpop.permute.xlu0 %513
    %515 = vrot.lane.b32.xlu0 %v280, 112
    %v516 = vpop.permute.xlu0 %515
    %vm517 = vcmp.lt.s32.totalorder %v361, 112
    %v518 = vsel %vm517, %v514, %v516
    %v519 = vsel %vm517, %v516, %v514
    %v520 = vmul.f32 %v204, %v518
    %v521 = vmul.f32 %v206, %v519
    %v522 = vsel %vm367, %v520, 0.0
    %v523 = vrot.slane %v522, 4
    %v524 = vadd.f32 %v522, %v523
    %v525 = vrot.slane %v524, 2
    %v526 = vadd.f32 %v524, %v525
    %v527 = vrot.slane %v526, 1
    %v528 = vadd.f32 %v526, %v527
    %v529 = vsel %vm367, %v521, 0.0
    %v530 = vrot.slane %v529, 4
    %v531 = vadd.f32 %v529, %v530
    %v532 = vrot.slane %v531, 2
    %v533 = vadd.f32 %v531, %v532
    %v534 = vrot.slane %v533, 1
    %v535 = vadd.f32 %v533, %v534
    %536 = vrot.lane.b32.xlu0 %v278, 111
    %v537 = vpop.permute.xlu0 %536
    %538 = vrot.lane.b32.xlu0 %v280, 111
    %v539 = vpop.permute.xlu0 %538
    %vm540 = vcmp.lt.s32.totalorder %v361, 111
    %v541 = vsel %vm540, %v537, %v539
    %v542 = vsel %vm540, %v539, %v537
    %v543 = vmul.f32 %v204, %v541
    %v544 = vmul.f32 %v206, %v542
    %v545 = vsel %vm367, %v543, 0.0
    %v546 = vrot.slane %v545, 4
    %v547 = vadd.f32 %v545, %v546
    %v548 = vrot.slane %v547, 2
    %v549 = vadd.f32 %v547, %v548
    %v550 = vrot.slane %v549, 1
    %v551 = vadd.f32 %v549, %v550
    %v552 = vsel %vm367, %v544, 0.0
    %v553 = vrot.slane %v552, 4
    %v554 = vadd.f32 %v552, %v553
    %v555 = vrot.slane %v554, 2
    %v556 = vadd.f32 %v554, %v555
    %v557 = vrot.slane %v556, 1
    %v558 = vadd.f32 %v556, %v557
    %vm559 = vcmask 1040384
    %v560 = vsel %vm559, %v374, %v397
    %v561 = vsel %vm559, %v381, %v404
    %vm562 = vcmask 1041408
    %v563 = vsel %vm562, %v560, %v420
    %v564 = vsel %vm562, %v561, %v427
    %vm565 = vcmask 1042432
    %v566 = vsel %vm565, %v563, %v443
    %v567 = vsel %vm565, %v564, %v450
    %v568 = vsel %vm367, %v566, %v459
    %v569 = vsel %vm367, %v567, %v466
    %vm570 = vcmask 1044480
    %v571 = vsel %vm570, %v568, %v482
    %v572 = vsel %vm570, %v569, %v489
    %vm573 = vcmask 1045504
    %v574 = vsel %vm573, %v571, %v505
    %v575 = vsel %vm573, %v572, %v512
    %vm576 = vcmask 1046528
    %v577 = vsel %vm576, %v574, %v528
    %v578 = vsel %vm576, %v575, %v535
    %v579 = vmul.f32 %v577, %v119
    %v580 = vmul.f32 %v578, %v120
    %v581 = vmul.f32 %v551, %v121
    %v582 = vmul.f32 %v558, %v122
    %v583 = vsel %vm559, %v581, -inf
    %v584 = vmax.f32 %v579, %v583
    %v585 = vrot.slane %v584, 4
    %v586 = vmax.f32 %v584, %v585
    %v587 = vrot.slane %v586, 2
    %v588 = vmax.f32 %v586, %v587
    %v589 = vrot.slane %v588, 1
    %v590 = vmax.f32 %v588, %v589
    %v591 = vsel %vm559, %v582, -inf
    %v592 = vmax.f32 %v580, %v591
    %v593 = vrot.slane %v592, 4
    %v594 = vmax.f32 %v592, %v593
    %v595 = vrot.slane %v594, 2
    %v596 = vmax.f32 %v594, %v595
    %v597 = vrot.slane %v596, 1
    %v598 = vmax.f32 %v596, %v597
    %v599 = vsub.f32 %v579, %v590
    %v600 = vsub.f32 %v580, %v598
    %v601 = vsub.f32 %v581, %v590
    %v602 = vsub.f32 %v582, %v598
    %v603 = vmul.f32 %v599, 1.442695
    %v604 = vpow.pop %v603
    %v605 = vmul.f32 %v600, 1.442695
    %v606 = vpow.pop %v605
    %v607 = vmul.f32 %v601, 1.442695
    %v608 = vpow.pop %v607
    %v609 = vmul.f32 %v602, 1.442695
    %v610 = vpow.pop %v609
    %v611 = vsel %vm559, %v608, 0.0
    %v612 = vadd.f32 %v604, %v611
    %v613 = vrot.slane %v612, 4
    %v614 = vadd.f32 %v612, %v613
    %v615 = vrot.slane %v614, 2
    %v616 = vadd.f32 %v614, %v615
    %v617 = vrot.slane %v616, 1
    %v618 = vadd.f32 %v616, %v617
    %v619 = vsel %vm559, %v610, 0.0
    %v620 = vadd.f32 %v606, %v619
    %v621 = vrot.slane %v620, 4
    %v622 = vadd.f32 %v620, %v621
    %v623 = vrot.slane %v622, 2
    %v624 = vadd.f32 %v622, %v623
    %v625 = vrot.slane %v624, 1
    %v626 = vadd.f32 %v624, %v625
    %v627 = vrcp.pop %v618
    %v628 = vrcp.pop %v626
    %v629 = vmul.f32 %v618, %v627
    %v630 = vmul.f32 %v626, %v628
    %v631 = vsub.f32 2.0, %v629
    %v632 = vsub.f32 2.0, %v630
    %v633 = vmul.f32 %v627, %v631
    %v634 = vmul.f32 %v628, %v632
    %v635 = vmul.f32 %v633, %v119
    %v636 = vmul.f32 %v634, %v120
    %v637 = vmul.f32 %v633, %v121
    %v638 = vmul.f32 %v634, %v122
    %v639 = vmul.f32 %v604, %v635
    %v640 = vmul.f32 %v606, %v636
    %v641 = vmul.f32 %v608, %v637
    %v642 = vmul.f32 %v610, %v638
    %643 = vrot.lane.b32.xlu0 %v352, 17
    %v644 = vpop.permute.xlu0 %643
    %645 = vrot.lane.b32.xlu0 %v354, 17
    %v646 = vpop.permute.xlu0 %645
    %v647 = vsel %vm362, %v644, %v646
    %v648 = vsel %vm362, %v646, %v644
    %v649 = vlaneseq
    %v650 = vshrl.u32 %v649, 7
    %v651 = vsub.s32 0, %v650
    %v652 = vrot.slane %v639, %v651
    %v653 = vlaneseq
    %v654 = vshrl.u32 %v653, 7
    %v655 = vsub.s32 0, %v654
    %v656 = vrot.slane %v640, %v655
    %v657 = vmul.f32 %v652, %v648
    %v658 = vmul.f32 %v656, %v647
    %659 = vrot.lane.b32.xlu0 %v352, 16
    %v660 = vpop.permute.xlu0 %659
    %661 = vrot.lane.b32.xlu0 %v354, 16
    %v662 = vpop.permute.xlu0 %661
    %v663 = vsel %vm386, %v660, %v662
    %v664 = vsel %vm386, %v662, %v660
    %v665 = vlaneseq
    %v666 = vshrl.u32 %v665, 7
    %v667 = vsub.s32 1, %v666
    %v668 = vrot.slane %v639, %v667
    %v669 = vlaneseq
    %v670 = vshrl.u32 %v669, 7
    %v671 = vsub.s32 1, %v670
    %v672 = vrot.slane %v640, %v671
    %v673 = vmul.f32 %v668, %v664
    %v674 = vmul.f32 %v672, %v663
    %v675 = vadd.f32 %v657, %v673
    %v676 = vadd.f32 %v658, %v674
    %677 = vrot.lane.b32.xlu0 %v352, 15
    %v678 = vpop.permute.xlu0 %677
    %679 = vrot.lane.b32.xlu0 %v354, 15
    %v680 = vpop.permute.xlu0 %679
    %v681 = vsel %vm409, %v678, %v680
    %v682 = vsel %vm409, %v680, %v678
    %v683 = vlaneseq
    %v684 = vshrl.u32 %v683, 7
    %v685 = vsub.s32 2, %v684
    %v686 = vrot.slane %v639, %v685
    %v687 = vlaneseq
    %v688 = vshrl.u32 %v687, 7
    %v689 = vsub.s32 2, %v688
    %v690 = vrot.slane %v640, %v689
    %v691 = vmul.f32 %v686, %v682
    %v692 = vmul.f32 %v690, %v681
    %v693 = vadd.f32 %v675, %v691
    %v694 = vadd.f32 %v676, %v692
    %695 = vrot.lane.b32.xlu0 %v352, 1
    %v696 = vpop.permute.xlu0 %695
    %697 = vrot.lane.b32.xlu0 %v354, 1
    %v698 = vpop.permute.xlu0 %697
    %v699 = vsel %vm432, %v696, %v698
    %v700 = vsel %vm432, %v698, %v696
    %v701 = vlaneseq
    %v702 = vshrl.u32 %v701, 7
    %v703 = vsub.s32 3, %v702
    %v704 = vrot.slane %v639, %v703
    %v705 = vlaneseq
    %v706 = vshrl.u32 %v705, 7
    %v707 = vsub.s32 3, %v706
    %v708 = vrot.slane %v640, %v707
    %v709 = vmul.f32 %v704, %v700
    %v710 = vmul.f32 %v708, %v699
    %v711 = vadd.f32 %v693, %v709
    %v712 = vadd.f32 %v694, %v710
    %v713 = vlaneseq
    %v714 = vshrl.u32 %v713, 7
    %v715 = vsub.s32 4, %v714
    %v716 = vrot.slane %v639, %v715
    %v717 = vlaneseq
    %v718 = vshrl.u32 %v717, 7
    %v719 = vsub.s32 4, %v718
    %v720 = vrot.slane %v640, %v719
    %v721 = vmul.f32 %v716, %v352
    %v722 = vmul.f32 %v720, %v354
    %v723 = vadd.f32 %v711, %v721
    %v724 = vadd.f32 %v712, %v722
    %725 = vrot.lane.b32.xlu0 %v352, 127
    %v726 = vpop.permute.xlu0 %725
    %727 = vrot.lane.b32.xlu0 %v354, 127
    %v728 = vpop.permute.xlu0 %727
    %v729 = vsel %vm471, %v726, %v728
    %v730 = vsel %vm471, %v728, %v726
    %v731 = vlaneseq
    %v732 = vshrl.u32 %v731, 7
    %v733 = vsub.s32 5, %v732
    %v734 = vrot.slane %v639, %v733
    %v735 = vlaneseq
    %v736 = vshrl.u32 %v735, 7
    %v737 = vsub.s32 5, %v736
    %v738 = vrot.slane %v640, %v737
    %v739 = vmul.f32 %v734, %v729
    %v740 = vmul.f32 %v738, %v730
    %v741 = vadd.f32 %v723, %v739
    %v742 = vadd.f32 %v724, %v740
    %743 = vrot.lane.b32.xlu0 %v352, 113
    %v744 = vpop.permute.xlu0 %743
    %745 = vrot.lane.b32.xlu0 %v354, 113
    %v746 = vpop.permute.xlu0 %745
    %v747 = vsel %vm494, %v744, %v746
    %v748 = vsel %vm494, %v746, %v744
    %v749 = vlaneseq
    %v750 = vshrl.u32 %v749, 7
    %v751 = vsub.s32 6, %v750
    %v752 = vrot.slane %v639, %v751
    %v753 = vlaneseq
    %v754 = vshrl.u32 %v753, 7
    %v755 = vsub.s32 6, %v754
    %v756 = vrot.slane %v640, %v755
    %v757 = vmul.f32 %v752, %v747
    %v758 = vmul.f32 %v756, %v748
    %v759 = vadd.f32 %v741, %v757
    %v760 = vadd.f32 %v742, %v758
    %761 = vrot.lane.b32.xlu0 %v352, 112
    %v762 = vpop.permute.xlu0 %761
    %763 = vrot.lane.b32.xlu0 %v354, 112
    %v764 = vpop.permute.xlu0 %763
    %v765 = vsel %vm517, %v762, %v764
    %v766 = vsel %vm517, %v764, %v762
    %v767 = vlaneseq
    %v768 = vshrl.u32 %v767, 7
    %v769 = vsub.s32 7, %v768
    %v770 = vrot.slane %v639, %v769
    %v771 = vlaneseq
    %v772 = vshrl.u32 %v771, 7
    %v773 = vsub.s32 7, %v772
    %v774 = vrot.slane %v640, %v773
    %v775 = vmul.f32 %v770, %v765
    %v776 = vmul.f32 %v774, %v766
    %v777 = vadd.f32 %v759, %v775
    %v778 = vadd.f32 %v760, %v776
    %779 = vrot.lane.b32.xlu0 %v352, 111
    %v780 = vpop.permute.xlu0 %779
    %781 = vrot.lane.b32.xlu0 %v354, 111
    %v782 = vpop.permute.xlu0 %781
    %v783 = vsel %vm540, %v780, %v782
    %v784 = vsel %vm540, %v782, %v780
    %v785 = vlaneseq
    %v786 = vshrl.u32 %v785, 7
    %v787 = vsub.s32 0, %v786
    %v788 = vrot.slane %v641, %v787
    %v789 = vlaneseq
    %v790 = vshrl.u32 %v789, 7
    %v791 = vsub.s32 0, %v790
    %v792 = vrot.slane %v642, %v791
    %v793 = vmul.f32 %v788, %v783
    %v794 = vmul.f32 %v792, %v784
    %v795 = vadd.f32 %v777, %v793
    %v796 = vadd.f32 %v778, %v794
    %v799 = vrot.slane %v278, 4
    %v800 = vrot.slane %v280, 4
    %803 = vrot.lane.b32.xlu0 %v799, 17
    %v804 = vpop.permute.xlu0 %803
    %805 = vrot.lane.b32.xlu0 %v800, 17
    %v806 = vpop.permute.xlu0 %805
    %v807 = vsel %vm362, %v804, %v806
    %v808 = vsel %vm362, %v806, %v804
    %v811 = vrot.slane %v808, 4
    %v812 = vrot.slane %v807, 4
    %v815 = vmul.f32 %v204, %v811
    %v816 = vmul.f32 %v206, %v812
    %v819 = vrot.slane %v815, 4
    %v820 = vrot.slane %v816, 4
    %v823 = vsel %vm367, %v819, 0.0
    %v824 = vrot.slane %v823, 4
    %v825 = vadd.f32 %v823, %v824
    %v826 = vrot.slane %v825, 2
    %v827 = vadd.f32 %v825, %v826
    %v828 = vrot.slane %v827, 1
    %v829 = vadd.f32 %v827, %v828
    %v830 = vsel %vm367, %v820, 0.0
    %v831 = vrot.slane %v830, 4
    %v832 = vadd.f32 %v830, %v831
    %v833 = vrot.slane %v832, 2
    %v834 = vadd.f32 %v832, %v833
    %v835 = vrot.slane %v834, 1
    %v836 = vadd.f32 %v834, %v835
    %837 = vrot.lane.b32.xlu0 %v799, 16
    %v838 = vpop.permute.xlu0 %837
    %839 = vrot.lane.b32.xlu0 %v800, 16
    %v840 = vpop.permute.xlu0 %839
    %v841 = vsel %vm386, %v838, %v840
    %v842 = vsel %vm386, %v840, %v838
    %v845 = vrot.slane %v842, 4
    %v846 = vrot.slane %v841, 4
    %v849 = vmul.f32 %v204, %v845
    %v850 = vmul.f32 %v206, %v846
    %v853 = vrot.slane %v849, 4
    %v854 = vrot.slane %v850, 4
    %v857 = vsel %vm367, %v853, 0.0
    %v858 = vrot.slane %v857, 4
    %v859 = vadd.f32 %v857, %v858
    %v860 = vrot.slane %v859, 2
    %v861 = vadd.f32 %v859, %v860
    %v862 = vrot.slane %v861, 1
    %v863 = vadd.f32 %v861, %v862
    %v864 = vsel %vm367, %v854, 0.0
    %v865 = vrot.slane %v864, 4
    %v866 = vadd.f32 %v864, %v865
    %v867 = vrot.slane %v866, 2
    %v868 = vadd.f32 %v866, %v867
    %v869 = vrot.slane %v868, 1
    %v870 = vadd.f32 %v868, %v869
    %871 = vrot.lane.b32.xlu0 %v799, 15
    %v872 = vpop.permute.xlu0 %871
    %873 = vrot.lane.b32.xlu0 %v800, 15
    %v874 = vpop.permute.xlu0 %873
    %v875 = vsel %vm409, %v872, %v874
    %v876 = vsel %vm409, %v874, %v872
    %v879 = vrot.slane %v876, 4
    %v880 = vrot.slane %v875, 4
    %v883 = vmul.f32 %v204, %v879
    %v884 = vmul.f32 %v206, %v880
    %v887 = vrot.slane %v883, 4
    %v888 = vrot.slane %v884, 4
    %v891 = vsel %vm367, %v887, 0.0
    %v892 = vrot.slane %v891, 4
    %v893 = vadd.f32 %v891, %v892
    %v894 = vrot.slane %v893, 2
    %v895 = vadd.f32 %v893, %v894
    %v896 = vrot.slane %v895, 1
    %v897 = vadd.f32 %v895, %v896
    %v898 = vsel %vm367, %v888, 0.0
    %v899 = vrot.slane %v898, 4
    %v900 = vadd.f32 %v898, %v899
    %v901 = vrot.slane %v900, 2
    %v902 = vadd.f32 %v900, %v901
    %v903 = vrot.slane %v902, 1
    %v904 = vadd.f32 %v902, %v903
    %905 = vrot.lane.b32.xlu0 %v799, 1
    %v906 = vpop.permute.xlu0 %905
    %907 = vrot.lane.b32.xlu0 %v800, 1
    %v908 = vpop.permute.xlu0 %907
    %v909 = vsel %vm432, %v906, %v908
    %v910 = vsel %vm432, %v908, %v906
    %v913 = vrot.slane %v910, 4
    %v914 = vrot.slane %v909, 4
    %v917 = vmul.f32 %v204, %v913
    %v918 = vmul.f32 %v206, %v914
    %v921 = vrot.slane %v917, 4
    %v922 = vrot.slane %v918, 4
    %v925 = vsel %vm367, %v921, 0.0
    %v926 = vrot.slane %v925, 4
    %v927 = vadd.f32 %v925, %v926
    %v928 = vrot.slane %v927, 2
    %v929 = vadd.f32 %v927, %v928
    %v930 = vrot.slane %v929, 1
    %v931 = vadd.f32 %v929, %v930
    %v932 = vsel %vm367, %v922, 0.0
    %v933 = vrot.slane %v932, 4
    %v934 = vadd.f32 %v932, %v933
    %v935 = vrot.slane %v934, 2
    %v936 = vadd.f32 %v934, %v935
    %v937 = vrot.slane %v936, 1
    %v938 = vadd.f32 %v936, %v937
    %v941 = vrot.slane %v451, 4
    %v942 = vrot.slane %v452, 4
    %v945 = vsel %vm367, %v941, 0.0
    %v946 = vrot.slane %v945, 4
    %v947 = vadd.f32 %v945, %v946
    %v948 = vrot.slane %v947, 2
    %v949 = vadd.f32 %v947, %v948
    %v950 = vrot.slane %v949, 1
    %v951 = vadd.f32 %v949, %v950
    %v952 = vsel %vm367, %v942, 0.0
    %v953 = vrot.slane %v952, 4
    %v954 = vadd.f32 %v952, %v953
    %v955 = vrot.slane %v954, 2
    %v956 = vadd.f32 %v954, %v955
    %v957 = vrot.slane %v956, 1
    %v958 = vadd.f32 %v956, %v957
    %959 = vrot.lane.b32.xlu0 %v799, 127
    %v960 = vpop.permute.xlu0 %959
    %961 = vrot.lane.b32.xlu0 %v800, 127
    %v962 = vpop.permute.xlu0 %961
    %v963 = vsel %vm471, %v960, %v962
    %v964 = vsel %vm471, %v962, %v960
    %v967 = vrot.slane %v963, 4
    %v968 = vrot.slane %v964, 4
    %v971 = vmul.f32 %v204, %v967
    %v972 = vmul.f32 %v206, %v968
    %v975 = vrot.slane %v971, 4
    %v976 = vrot.slane %v972, 4
    %v979 = vsel %vm367, %v975, 0.0
    %v980 = vrot.slane %v979, 4
    %v981 = vadd.f32 %v979, %v980
    %v982 = vrot.slane %v981, 2
    %v983 = vadd.f32 %v981, %v982
    %v984 = vrot.slane %v983, 1
    %v985 = vadd.f32 %v983, %v984
    %v986 = vsel %vm367, %v976, 0.0
    %v987 = vrot.slane %v986, 4
    %v988 = vadd.f32 %v986, %v987
    %v989 = vrot.slane %v988, 2
    %v990 = vadd.f32 %v988, %v989
    %v991 = vrot.slane %v990, 1
    %v992 = vadd.f32 %v990, %v991
    %993 = vrot.lane.b32.xlu0 %v799, 113
    %v994 = vpop.permute.xlu0 %993
    %995 = vrot.lane.b32.xlu0 %v800, 113
    %v996 = vpop.permute.xlu0 %995
    %v997 = vsel %vm494, %v994, %v996
    %v998 = vsel %vm494, %v996, %v994
    %v1001 = vrot.slane %v997, 4
    %v1002 = vrot.slane %v998, 4
    %v1005 = vmul.f32 %v204, %v1001
    %v1006 = vmul.f32 %v206, %v1002
    %v1009 = vrot.slane %v1005, 4
    %v1010 = vrot.slane %v1006, 4
    %v1013 = vsel %vm367, %v1009, 0.0
    %v1014 = vrot.slane %v1013, 4
    %v1015 = vadd.f32 %v1013, %v1014
    %v1016 = vrot.slane %v1015, 2
    %v1017 = vadd.f32 %v1015, %v1016
    %v1018 = vrot.slane %v1017, 1
    %v1019 = vadd.f32 %v1017, %v1018
    %v1020 = vsel %vm367, %v1010, 0.0
    %v1021 = vrot.slane %v1020, 4
    %v1022 = vadd.f32 %v1020, %v1021
    %v1023 = vrot.slane %v1022, 2
    %v1024 = vadd.f32 %v1022, %v1023
    %v1025 = vrot.slane %v1024, 1
    %v1026 = vadd.f32 %v1024, %v1025
    %1027 = vrot.lane.b32.xlu0 %v799, 112
    %v1028 = vpop.permute.xlu0 %1027
    %1029 = vrot.lane.b32.xlu0 %v800, 112
    %v1030 = vpop.permute.xlu0 %1029
    %v1031 = vsel %vm517, %v1028, %v1030
    %v1032 = vsel %vm517, %v1030, %v1028
    %v1035 = vrot.slane %v1031, 4
    %v1036 = vrot.slane %v1032, 4
    %v1039 = vmul.f32 %v204, %v1035
    %v1040 = vmul.f32 %v206, %v1036
    %v1043 = vrot.slane %v1039, 4
    %v1044 = vrot.slane %v1040, 4
    %v1047 = vsel %vm367, %v1043, 0.0
    %v1048 = vrot.slane %v1047, 4
    %v1049 = vadd.f32 %v1047, %v1048
    %v1050 = vrot.slane %v1049, 2
    %v1051 = vadd.f32 %v1049, %v1050
    %v1052 = vrot.slane %v1051, 1
    %v1053 = vadd.f32 %v1051, %v1052
    %v1054 = vsel %vm367, %v1044, 0.0
    %v1055 = vrot.slane %v1054, 4
    %v1056 = vadd.f32 %v1054, %v1055
    %v1057 = vrot.slane %v1056, 2
    %v1058 = vadd.f32 %v1056, %v1057
    %v1059 = vrot.slane %v1058, 1
    %v1060 = vadd.f32 %v1058, %v1059
    %1061 = vrot.lane.b32.xlu0 %v799, 111
    %v1062 = vpop.permute.xlu0 %1061
    %1063 = vrot.lane.b32.xlu0 %v800, 111
    %v1064 = vpop.permute.xlu0 %1063
    %v1065 = vsel %vm540, %v1062, %v1064
    %v1066 = vsel %vm540, %v1064, %v1062
    %v1069 = vrot.slane %v1065, 4
    %v1070 = vrot.slane %v1066, 4
    %v1073 = vmul.f32 %v204, %v1069
    %v1074 = vmul.f32 %v206, %v1070
    %v1077 = vrot.slane %v1073, 4
    %v1078 = vrot.slane %v1074, 4
    %v1081 = vsel %vm367, %v1077, 0.0
    %v1082 = vrot.slane %v1081, 4
    %v1083 = vadd.f32 %v1081, %v1082
    %v1084 = vrot.slane %v1083, 2
    %v1085 = vadd.f32 %v1083, %v1084
    %v1086 = vrot.slane %v1085, 1
    %v1087 = vadd.f32 %v1085, %v1086
    %v1088 = vsel %vm367, %v1078, 0.0
    %v1089 = vrot.slane %v1088, 4
    %v1090 = vadd.f32 %v1088, %v1089
    %v1091 = vrot.slane %v1090, 2
    %v1092 = vadd.f32 %v1090, %v1091
    %v1093 = vrot.slane %v1092, 1
    %v1094 = vadd.f32 %v1092, %v1093
    %v1095 = vsel %vm559, %v829, %v863
    %v1096 = vsel %vm559, %v836, %v870
    %v1097 = vsel %vm562, %v1095, %v897
    %v1098 = vsel %vm562, %v1096, %v904
    %v1099 = vsel %vm565, %v1097, %v931
    %v1100 = vsel %vm565, %v1098, %v938
    %v1101 = vsel %vm367, %v1099, %v951
    %v1102 = vsel %vm367, %v1100, %v958
    %v1103 = vsel %vm570, %v1101, %v985
    %v1104 = vsel %vm570, %v1102, %v992
    %v1105 = vsel %vm573, %v1103, %v1019
    %v1106 = vsel %vm573, %v1104, %v1026
    %v1107 = vsel %vm576, %v1105, %v1053
    %v1108 = vsel %vm576, %v1106, %v1060
    %v1109 = vmul.f32 %v1107, %v119
    %v1110 = vmul.f32 %v1108, %v120
    %v1111 = vmul.f32 %v1087, %v121
    %v1112 = vmul.f32 %v1094, %v122
    %v1113 = vsel %vm559, %v1111, -inf
    %v1114 = vmax.f32 %v1109, %v1113
    %v1115 = vrot.slane %v1114, 4
    %v1116 = vmax.f32 %v1114, %v1115
    %v1117 = vrot.slane %v1116, 2
    %v1118 = vmax.f32 %v1116, %v1117
    %v1119 = vrot.slane %v1118, 1
    %v1120 = vmax.f32 %v1118, %v1119
    %v1121 = vsel %vm559, %v1112, -inf
    %v1122 = vmax.f32 %v1110, %v1121
    %v1123 = vrot.slane %v1122, 4
    %v1124 = vmax.f32 %v1122, %v1123
    %v1125 = vrot.slane %v1124, 2
    %v1126 = vmax.f32 %v1124, %v1125
    %v1127 = vrot.slane %v1126, 1
    %v1128 = vmax.f32 %v1126, %v1127
    %v1129 = vsub.f32 %v1109, %v1120
    %v1130 = vsub.f32 %v1110, %v1128
    %v1131 = vsub.f32 %v1111, %v1120
    %v1132 = vsub.f32 %v1112, %v1128
    %v1133 = vmul.f32 %v1129, 1.442695
    %v1134 = vpow.pop %v1133
    %v1135 = vmul.f32 %v1130, 1.442695
    %v1136 = vpow.pop %v1135
    %v1137 = vmul.f32 %v1131, 1.442695
    %v1138 = vpow.pop %v1137
    %v1139 = vmul.f32 %v1132, 1.442695
    %v1140 = vpow.pop %v1139
    %v1141 = vsel %vm559, %v1138, 0.0
    %v1142 = vadd.f32 %v1134, %v1141
    %v1143 = vrot.slane %v1142, 4
    %v1144 = vadd.f32 %v1142, %v1143
    %v1145 = vrot.slane %v1144, 2
    %v1146 = vadd.f32 %v1144, %v1145
    %v1147 = vrot.slane %v1146, 1
    %v1148 = vadd.f32 %v1146, %v1147
    %v1149 = vsel %vm559, %v1140, 0.0
    %v1150 = vadd.f32 %v1136, %v1149
    %v1151 = vrot.slane %v1150, 4
    %v1152 = vadd.f32 %v1150, %v1151
    %v1153 = vrot.slane %v1152, 2
    %v1154 = vadd.f32 %v1152, %v1153
    %v1155 = vrot.slane %v1154, 1
    %v1156 = vadd.f32 %v1154, %v1155
    %v1157 = vrcp.pop %v1148
    %v1158 = vrcp.pop %v1156
    %v1159 = vmul.f32 %v1148, %v1157
    %v1160 = vmul.f32 %v1156, %v1158
    %v1161 = vsub.f32 2.0, %v1159
    %v1162 = vsub.f32 2.0, %v1160
    %v1163 = vmul.f32 %v1157, %v1161
    %v1164 = vmul.f32 %v1158, %v1162
    %v1165 = vmul.f32 %v1163, %v119
    %v1166 = vmul.f32 %v1164, %v120
    %v1167 = vmul.f32 %v1163, %v121
    %v1168 = vmul.f32 %v1164, %v122
    %v1169 = vmul.f32 %v1134, %v1165
    %v1170 = vmul.f32 %v1136, %v1166
    %v1171 = vmul.f32 %v1138, %v1167
    %v1172 = vmul.f32 %v1140, %v1168
    %v1175 = vrot.slane %v352, 4
    %v1176 = vrot.slane %v354, 4
    %1179 = vrot.lane.b32.xlu0 %v1175, 17
    %v1180 = vpop.permute.xlu0 %1179
    %1181 = vrot.lane.b32.xlu0 %v1176, 17
    %v1182 = vpop.permute.xlu0 %1181
    %v1183 = vsel %vm362, %v1180, %v1182
    %v1184 = vsel %vm362, %v1182, %v1180
    %v1185 = vlaneseq
    %v1186 = vshrl.u32 %v1185, 7
    %v1187 = vsub.s32 0, %v1186
    %v1188 = vrot.slane %v1169, %v1187
    %v1189 = vlaneseq
    %v1190 = vshrl.u32 %v1189, 7
    %v1191 = vsub.s32 0, %v1190
    %v1192 = vrot.slane %v1170, %v1191
    %v1193 = vmul.f32 %v1188, %v1184
    %v1194 = vmul.f32 %v1192, %v1183
    %1195 = vrot.lane.b32.xlu0 %v1175, 16
    %v1196 = vpop.permute.xlu0 %1195
    %1197 = vrot.lane.b32.xlu0 %v1176, 16
    %v1198 = vpop.permute.xlu0 %1197
    %v1199 = vsel %vm386, %v1196, %v1198
    %v1200 = vsel %vm386, %v1198, %v1196
    %v1201 = vlaneseq
    %v1202 = vshrl.u32 %v1201, 7
    %v1203 = vsub.s32 1, %v1202
    %v1204 = vrot.slane %v1169, %v1203
    %v1205 = vlaneseq
    %v1206 = vshrl.u32 %v1205, 7
    %v1207 = vsub.s32 1, %v1206
    %v1208 = vrot.slane %v1170, %v1207
    %v1209 = vmul.f32 %v1204, %v1200
    %v1210 = vmul.f32 %v1208, %v1199
    %v1211 = vadd.f32 %v1193, %v1209
    %v1212 = vadd.f32 %v1194, %v1210
    %1213 = vrot.lane.b32.xlu0 %v1175, 15
    %v1214 = vpop.permute.xlu0 %1213
    %1215 = vrot.lane.b32.xlu0 %v1176, 15
    %v1216 = vpop.permute.xlu0 %1215
    %v1217 = vsel %vm409, %v1214, %v1216
    %v1218 = vsel %vm409, %v1216, %v1214
    %v1219 = vlaneseq
    %v1220 = vshrl.u32 %v1219, 7
    %v1221 = vsub.s32 2, %v1220
    %v1222 = vrot.slane %v1169, %v1221
    %v1223 = vlaneseq
    %v1224 = vshrl.u32 %v1223, 7
    %v1225 = vsub.s32 2, %v1224
    %v1226 = vrot.slane %v1170, %v1225
    %v1227 = vmul.f32 %v1222, %v1218
    %v1228 = vmul.f32 %v1226, %v1217
    %v1229 = vadd.f32 %v1211, %v1227
    %v1230 = vadd.f32 %v1212, %v1228
    %1231 = vrot.lane.b32.xlu0 %v1175, 1
    %v1232 = vpop.permute.xlu0 %1231
    %1233 = vrot.lane.b32.xlu0 %v1176, 1
    %v1234 = vpop.permute.xlu0 %1233
    %v1235 = vsel %vm432, %v1232, %v1234
    %v1236 = vsel %vm432, %v1234, %v1232
    %v1237 = vlaneseq
    %v1238 = vshrl.u32 %v1237, 7
    %v1239 = vsub.s32 3, %v1238
    %v1240 = vrot.slane %v1169, %v1239
    %v1241 = vlaneseq
    %v1242 = vshrl.u32 %v1241, 7
    %v1243 = vsub.s32 3, %v1242
    %v1244 = vrot.slane %v1170, %v1243
    %v1245 = vmul.f32 %v1240, %v1236
    %v1246 = vmul.f32 %v1244, %v1235
    %v1247 = vadd.f32 %v1229, %v1245
    %v1248 = vadd.f32 %v1230, %v1246
    %v1249 = vlaneseq
    %v1250 = vshrl.u32 %v1249, 7
    %v1251 = vsub.s32 4, %v1250
    %v1252 = vrot.slane %v1169, %v1251
    %v1253 = vlaneseq
    %v1254 = vshrl.u32 %v1253, 7
    %v1255 = vsub.s32 4, %v1254
    %v1256 = vrot.slane %v1170, %v1255
    %v1257 = vmul.f32 %v1252, %v352
    %v1258 = vmul.f32 %v1256, %v354
    %v1261 = vrot.slane %v1257, 4
    %v1262 = vrot.slane %v1258, 4
    %v1265 = vadd.f32 %v1247, %v1261
    %v1266 = vadd.f32 %v1248, %v1262
    %1267 = vrot.lane.b32.xlu0 %v1175, 127
    %v1268 = vpop.permute.xlu0 %1267
    %1269 = vrot.lane.b32.xlu0 %v1176, 127
    %v1270 = vpop.permute.xlu0 %1269
    %v1271 = vsel %vm471, %v1268, %v1270
    %v1272 = vsel %vm471, %v1270, %v1268
    %v1273 = vlaneseq
    %v1274 = vshrl.u32 %v1273, 7
    %v1275 = vsub.s32 5, %v1274
    %v1276 = vrot.slane %v1169, %v1275
    %v1277 = vlaneseq
    %v1278 = vshrl.u32 %v1277, 7
    %v1279 = vsub.s32 5, %v1278
    %v1280 = vrot.slane %v1170, %v1279
    %v1281 = vmul.f32 %v1276, %v1271
    %v1282 = vmul.f32 %v1280, %v1272
    %v1283 = vadd.f32 %v1265, %v1281
    %v1284 = vadd.f32 %v1266, %v1282
    %1285 = vrot.lane.b32.xlu0 %v1175, 113
    %v1286 = vpop.permute.xlu0 %1285
    %1287 = vrot.lane.b32.xlu0 %v1176, 113
    %v1288 = vpop.permute.xlu0 %1287
    %v1289 = vsel %vm494, %v1286, %v1288
    %v1290 = vsel %vm494, %v1288, %v1286
    %v1291 = vlaneseq
    %v1292 = vshrl.u32 %v1291, 7
    %v1293 = vsub.s32 6, %v1292
    %v1294 = vrot.slane %v1169, %v1293
    %v1295 = vlaneseq
    %v1296 = vshrl.u32 %v1295, 7
    %v1297 = vsub.s32 6, %v1296
    %v1298 = vrot.slane %v1170, %v1297
    %v1299 = vmul.f32 %v1294, %v1289
    %v1300 = vmul.f32 %v1298, %v1290
    %v1301 = vadd.f32 %v1283, %v1299
    %v1302 = vadd.f32 %v1284, %v1300
    %1303 = vrot.lane.b32.xlu0 %v1175, 112
    %v1304 = vpop.permute.xlu0 %1303
    %1305 = vrot.lane.b32.xlu0 %v1176, 112
    %v1306 = vpop.permute.xlu0 %1305
    %v1307 = vsel %vm517, %v1304, %v1306
    %v1308 = vsel %vm517, %v1306, %v1304
    %v1309 = vlaneseq
    %v1310 = vshrl.u32 %v1309, 7
    %v1311 = vsub.s32 7, %v1310
    %v1312 = vrot.slane %v1169, %v1311
    %v1313 = vlaneseq
    %v1314 = vshrl.u32 %v1313, 7
    %v1315 = vsub.s32 7, %v1314
    %v1316 = vrot.slane %v1170, %v1315
    %v1317 = vmul.f32 %v1312, %v1307
    %v1318 = vmul.f32 %v1316, %v1308
    %v1319 = vadd.f32 %v1301, %v1317
    %v1320 = vadd.f32 %v1302, %v1318
    %1321 = vrot.lane.b32.xlu0 %v1175, 111
    %v1322 = vpop.permute.xlu0 %1321
    %1323 = vrot.lane.b32.xlu0 %v1176, 111
    %v1324 = vpop.permute.xlu0 %1323
    %v1325 = vsel %vm540, %v1322, %v1324
    %v1326 = vsel %vm540, %v1324, %v1322
    %v1327 = vlaneseq
    %v1328 = vshrl.u32 %v1327, 7
    %v1329 = vsub.s32 0, %v1328
    %v1330 = vrot.slane %v1171, %v1329
    %v1331 = vlaneseq
    %v1332 = vshrl.u32 %v1331, 7
    %v1333 = vsub.s32 0, %v1332
    %v1334 = vrot.slane %v1172, %v1333
    %v1335 = vmul.f32 %v1330, %v1325
    %v1336 = vmul.f32 %v1334, %v1326
    %v1337 = vadd.f32 %v1319, %v1335
    %v1338 = vadd.f32 %v1320, %v1336
    %v1341 = vrot.slane %v1337, 4
    %v1342 = vrot.slane %v1338, 4
    %v1345 = vsel %vm367, %v795, %v1341
    %v1346 = vsel %vm367, %v796, %v1342
    %v1348 = vsel %vm133, %v126, 0
    %1350 = vmatprep.subr.mxu0 0.0
    %1351 = vmatpush1.msra.mxu0 0.0
    %1352 = vmatprep.subr.mxu0 0.0
    %1353 = vmatpush1.msra.mxu0 0.0
    %1354 = vmatprep.subr.mxu0 0.0
    %1355 = vmatpush1.msra.mxu0 0.0
    %1356 = vmatprep.subr.mxu0 0.0
    %1357 = vmatpush1.msra.mxu0 0.0
    %1358 = vmatprep.subr.mxu0 0.0
    %1359 = vmatpush1.msra.mxu0 0.0
    %1360 = vmatprep.subr.mxu0 0.0
    %1361 = vmatpush1.msra.mxu0 0.0
    %1362 = vmatprep.subr.mxu0 0.0
    %1363 = vmatpush1.msra.mxu0 0.0
    %1364 = vmatprep.subr.mxu0 0.0
    %1365 = vmatpush1.msra.mxu0 0.0
    %1366 = vmatprep.subr.mxu0 0.0
    %1367 = vmatpush1.msra.mxu0 0.0
    %1368 = vmatprep.subr.mxu0 0.0
    %1369 = vmatpush1.msra.mxu0 0.0
    %1370 = vmatprep.subr.mxu0 0.0
    %1371 = vmatpush1.msra.mxu0 0.0
    %1372 = vmatprep.subr.mxu0 0.0
    %1373 = vmatpush1.msra.mxu0 0.0
    %1374 = vmatprep.subr.mxu0 0.0
    %1375 = vmatpush1.msra.mxu0 0.0
    %1376 = vmatprep.subr.mxu0 0.0
    %1377 = vmatpush1.msra.mxu0 0.0
    %1378 = vmatprep.subr.mxu0 0.0
    %1379 = vmatpush1.msra.mxu0 0.0
    %1380 = vmatprep.subr.mxu0 %v1346
    %1381 = vmatpush1.msra.mxu0 %v1345
    %1382 = vmatprep.subr.mxu0 0.0
    %1383 = vmatpush2.msra.mxu0 0.0
    %1384 = vmatprep.subr.mxu0 0.0
    %1385 = vmatpush2.msra.mxu0 0.0
    %1386 = vmatprep.subr.mxu0 0.0
    %1387 = vmatpush2.msra.mxu0 0.0
    %1388 = vmatprep.subr.mxu0 0.0
    %1389 = vmatpush2.msra.mxu0 0.0
    %1390 = vmatprep.subr.mxu0 0.0
    %1391 = vmatpush2.msra.mxu0 0.0
    %1392 = vmatprep.subr.mxu0 0.0
    %1393 = vmatpush2.msra.mxu0 0.0
    %1394 = vmatprep.subr.mxu0 0.0
    %1395 = vmatpush2.msra.mxu0 0.0
    %1396 = vmatprep.subr.mxu0 0.0
    %1397 = vmatpush2.msra.mxu0 0.0
    %1398 = vmatprep.subr.mxu0 0.0
    %1399 = vmatpush2.msra.mxu0 0.0
    %1400 = vmatprep.subr.mxu0 0.0
    %1401 = vmatpush2.msra.mxu0 0.0
    %1402 = vmatprep.subr.mxu0 0.0
    %1403 = vmatpush2.msra.mxu0 0.0
    %1404 = vmatprep.subr.mxu0 0.0
    %1405 = vmatpush2.msra.mxu0 0.0
    %1406 = vmatprep.subr.mxu0 0.0
    %1407 = vmatpush2.msra.mxu0 0.0
    %1408 = vmatprep.subr.mxu0 0.0
    %1409 = vmatpush2.msra.mxu0 0.0
    %1410 = vmatprep.subr.mxu0 0.0
    %1411 = vmatpush2.msra.mxu0 0.0
    %1412 = vmatprep.subr.mxu0 0.0
    %1413 = vmatpush2.msra.mxu0 0.0
    %1414 = vmatprep.mubr.f32.mxu0 0.0
    %1415 = vmatmul.mubr.f32.gmra.mxu0 %v1348
    %v1416 = vpop.f32.mrf.mxu0
    %v1417 = vadd.f32 0.0, %v1416
    %v1418 = vpop.f32.mrf.mxu0
    %v1419 = vadd.f32 0.0, %v1418
    %1420 = vdwg.mxu0
    %v1421 = vadd.f32 %v127, %v1417
    %v1422 = vadd.f32 %v128, %v1419
    %1423 = vst [vmem:[#allocation14] sm:$0xff] %v1421
    %1424 = vst [vmem:[#allocation14 + $0x8] sm:$0xff] %v1422
    %s1425 = scalar_lea.vmem [#allocation2], 16
    %v1426 = vld [vmem:[%s1425] sm:$0xff]
    %v1427 = vld [vmem:[%s1425 + $0x8] sm:$0xff]
    %s1428 = scalar_lea.vmem [#allocation5], 16
    %v1429 = vld [vmem:[%s1428] sm:$0xff]
    %v1430 = vld [vmem:[%s1428 + $0x8] sm:$0xff]
    %s1431 = scalar_lea.vmem [#allocation7], 16
    %v1432 = vld [vmem:[%s1431] sm:$0xff]
    %v1433 = vld [vmem:[%s1431 + $0x8] sm:$0xff]
    %1434 = vmatprep.subr.mxu0 0.0
    %1435 = vmatpush1.msra.mxu0 0.0
    %1436 = vmatprep.subr.mxu0 0.0
    %1437 = vmatpush1.msra.mxu0 0.0
    %1438 = vmatprep.subr.mxu0 0.0
    %1439 = vmatpush1.msra.mxu0 0.0
    %1440 = vmatprep.subr.mxu0 0.0
    %1441 = vmatpush1.msra.mxu0 0.0
    %1442 = vmatprep.subr.mxu0 0.0
    %1443 = vmatpush1.msra.mxu0 0.0
    %1444 = vmatprep.subr.mxu0 0.0
    %1445 = vmatpush1.msra.mxu0 0.0
    %1446 = vmatprep.subr.mxu0 0.0
    %1447 = vmatpush1.msra.mxu0 0.0
    %1448 = vmatprep.subr.mxu0 0.0
    %1449 = vmatpush1.msra.mxu0 0.0
    %1450 = vmatprep.subr.mxu0 0.0
    %1451 = vmatpush1.msra.mxu0 0.0
    %1452 = vmatprep.subr.mxu0 0.0
    %1453 = vmatpush1.msra.mxu0 0.0
    %1454 = vmatprep.subr.mxu0 0.0
    %1455 = vmatpush1.msra.mxu0 0.0
    %1456 = vmatprep.subr.mxu0 0.0
    %1457 = vmatpush1.msra.mxu0 0.0
    %1458 = vmatprep.subr.mxu0 0.0
    %1459 = vmatpush1.msra.mxu0 0.0
    %1460 = vmatprep.subr.mxu0 0.0
    %1461 = vmatpush1.msra.mxu0 0.0
    %1462 = vmatprep.subr.mxu0 0.0
    %1463 = vmatpush1.msra.mxu0 0.0
    %1464 = vmatprep.subr.mxu0 %v1427
    %1465 = vmatpush1.msra.mxu0 %v1426
    %1466 = vmatprep.subr.mxu0 0.0
    %1467 = vmatpush2.msra.mxu0 0.0
    %1468 = vmatprep.subr.mxu0 0.0
    %1469 = vmatpush2.msra.mxu0 0.0
    %1470 = vmatprep.subr.mxu0 0.0
    %1471 = vmatpush2.msra.mxu0 0.0
    %1472 = vmatprep.subr.mxu0 0.0
    %1473 = vmatpush2.msra.mxu0 0.0
    %1474 = vmatprep.subr.mxu0 0.0
    %1475 = vmatpush2.msra.mxu0 0.0
    %1476 = vmatprep.subr.mxu0 0.0
    %1477 = vmatpush2.msra.mxu0 0.0
    %1478 = vmatprep.subr.mxu0 0.0
    %1479 = vmatpush2.msra.mxu0 0.0
    %1480 = vmatprep.subr.mxu0 0.0
    %1481 = vmatpush2.msra.mxu0 0.0
    %1482 = vmatprep.subr.mxu0 0.0
    %1483 = vmatpush2.msra.mxu0 0.0
    %1484 = vmatprep.subr.mxu0 0.0
    %1485 = vmatpush2.msra.mxu0 0.0
    %1486 = vmatprep.subr.mxu0 0.0
    %1487 = vmatpush2.msra.mxu0 0.0
    %1488 = vmatprep.subr.mxu0 0.0
    %1489 = vmatpush2.msra.mxu0 0.0
    %1490 = vmatprep.subr.mxu0 0.0
    %1491 = vmatpush2.msra.mxu0 0.0
    %1492 = vmatprep.subr.mxu0 0.0
    %1493 = vmatpush2.msra.mxu0 0.0
    %1494 = vmatprep.subr.mxu0 0.0
    %1495 = vmatpush2.msra.mxu0 0.0
    %1496 = vmatprep.subr.mxu0 0.0
    %1497 = vmatpush2.msra.mxu0 0.0
    %1498 = vmatprep.mubr.f32.mxu0 0.0
    %1499 = vmatmul.mubr.f32.gmra.mxu0 %v135
    %v1500 = vpop.f32.mrf.mxu0
    %v1501 = vadd.f32 0.0, %v1500
    %v1502 = vpop.f32.mrf.mxu0
    %v1503 = vadd.f32 0.0, %v1502
    %1504 = vdwg.mxu0
    %1505 = vmatprep.subr.mxu0 0.0
    %1506 = vmatpush1.msra.mxu0 0.0
    %1507 = vmatprep.subr.mxu0 0.0
    %1508 = vmatpush1.msra.mxu0 0.0
    %1509 = vmatprep.subr.mxu0 0.0
    %1510 = vmatpush1.msra.mxu0 0.0
    %1511 = vmatprep.subr.mxu0 0.0
    %1512 = vmatpush1.msra.mxu0 0.0
    %1513 = vmatprep.subr.mxu0 0.0
    %1514 = vmatpush1.msra.mxu0 0.0
    %1515 = vmatprep.subr.mxu0 0.0
    %1516 = vmatpush1.msra.mxu0 0.0
    %1517 = vmatprep.subr.mxu0 0.0
    %1518 = vmatpush1.msra.mxu0 0.0
    %1519 = vmatprep.subr.mxu0 0.0
    %1520 = vmatpush1.msra.mxu0 0.0
    %1521 = vmatprep.subr.mxu0 0.0
    %1522 = vmatpush1.msra.mxu0 0.0
    %1523 = vmatprep.subr.mxu0 0.0
    %1524 = vmatpush1.msra.mxu0 0.0
    %1525 = vmatprep.subr.mxu0 0.0
    %1526 = vmatpush1.msra.mxu0 0.0
    %1527 = vmatprep.subr.mxu0 0.0
    %1528 = vmatpush1.msra.mxu0 0.0
    %1529 = vmatprep.subr.mxu0 0.0
    %1530 = vmatpush1.msra.mxu0 0.0
    %1531 = vmatprep.subr.mxu0 0.0
    %1532 = vmatpush1.msra.mxu0 0.0
    %1533 = vmatprep.subr.mxu0 0.0
    %1534 = vmatpush1.msra.mxu0 0.0
    %1535 = vmatprep.subr.mxu0 %v1430
    %1536 = vmatpush1.msra.mxu0 %v1429
    %1537 = vmatprep.subr.mxu0 0.0
    %1538 = vmatpush2.msra.mxu0 0.0
    %1539 = vmatprep.subr.mxu0 0.0
    %1540 = vmatpush2.msra.mxu0 0.0
    %1541 = vmatprep.subr.mxu0 0.0
    %1542 = vmatpush2.msra.mxu0 0.0
    %1543 = vmatprep.subr.mxu0 0.0
    %1544 = vmatpush2.msra.mxu0 0.0
    %1545 = vmatprep.subr.mxu0 0.0
    %1546 = vmatpush2.msra.mxu0 0.0
    %1547 = vmatprep.subr.mxu0 0.0
    %1548 = vmatpush2.msra.mxu0 0.0
    %1549 = vmatprep.subr.mxu0 0.0
    %1550 = vmatpush2.msra.mxu0 0.0
    %1551 = vmatprep.subr.mxu0 0.0
    %1552 = vmatpush2.msra.mxu0 0.0
    %1553 = vmatprep.subr.mxu0 0.0
    %1554 = vmatpush2.msra.mxu0 0.0
    %1555 = vmatprep.subr.mxu0 0.0
    %1556 = vmatpush2.msra.mxu0 0.0
    %1557 = vmatprep.subr.mxu0 0.0
    %1558 = vmatpush2.msra.mxu0 0.0
    %1559 = vmatprep.subr.mxu0 0.0
    %1560 = vmatpush2.msra.mxu0 0.0
    %1561 = vmatprep.subr.mxu0 0.0
    %1562 = vmatpush2.msra.mxu0 0.0
    %1563 = vmatprep.subr.mxu0 0.0
    %1564 = vmatpush2.msra.mxu0 0.0
    %1565 = vmatprep.subr.mxu0 0.0
    %1566 = vmatpush2.msra.mxu0 0.0
    %1567 = vmatprep.subr.mxu0 0.0
    %1568 = vmatpush2.msra.mxu0 0.0
    %1569 = vmatprep.mubr.f32.mxu0 0.0
    %1570 = vmatmul.mubr.f32.gmra.mxu0 %v209
    %v1571 = vpop.f32.mrf.mxu0
    %v1572 = vadd.f32 0.0, %v1571
    %v1573 = vpop.f32.mrf.mxu0
    %v1574 = vadd.f32 0.0, %v1573
    %1575 = vdwg.mxu0
    %1576 = vmatprep.subr.mxu0 0.0
    %1577 = vmatpush1.msra.mxu0 0.0
    %1578 = vmatprep.subr.mxu0 0.0
    %1579 = vmatpush1.msra.mxu0 0.0
    %1580 = vmatprep.subr.mxu0 0.0
    %1581 = vmatpush1.msra.mxu0 0.0
    %1582 = vmatprep.subr.mxu0 0.0
    %1583 = vmatpush1.msra.mxu0 0.0
    %1584 = vmatprep.subr.mxu0 0.0
    %1585 = vmatpush1.msra.mxu0 0.0
    %1586 = vmatprep.subr.mxu0 0.0
    %1587 = vmatpush1.msra.mxu0 0.0
    %1588 = vmatprep.subr.mxu0 0.0
    %1589 = vmatpush1.msra.mxu0 0.0
    %1590 = vmatprep.subr.mxu0 0.0
    %1591 = vmatpush1.msra.mxu0 0.0
    %1592 = vmatprep.subr.mxu0 0.0
    %1593 = vmatpush1.msra.mxu0 0.0
    %1594 = vmatprep.subr.mxu0 0.0
    %1595 = vmatpush1.msra.mxu0 0.0
    %1596 = vmatprep.subr.mxu0 0.0
    %1597 = vmatpush1.msra.mxu0 0.0
    %1598 = vmatprep.subr.mxu0 0.0
    %1599 = vmatpush1.msra.mxu0 0.0
    %1600 = vmatprep.subr.mxu0 0.0
    %1601 = vmatpush1.msra.mxu0 0.0
    %1602 = vmatprep.subr.mxu0 0.0
    %1603 = vmatpush1.msra.mxu0 0.0
    %1604 = vmatprep.subr.mxu0 0.0
    %1605 = vmatpush1.msra.mxu0 0.0
    %1606 = vmatprep.subr.mxu0 %v1433
    %1607 = vmatpush1.msra.mxu0 %v1432
    %1608 = vmatprep.subr.mxu0 0.0
    %1609 = vmatpush2.msra.mxu0 0.0
    %1610 = vmatprep.subr.mxu0 0.0
    %1611 = vmatpush2.msra.mxu0 0.0
    %1612 = vmatprep.subr.mxu0 0.0
    %1613 = vmatpush2.msra.mxu0 0.0
    %1614 = vmatprep.subr.mxu0 0.0
    %1615 = vmatpush2.msra.mxu0 0.0
    %1616 = vmatprep.subr.mxu0 0.0
    %1617 = vmatpush2.msra.mxu0 0.0
    %1618 = vmatprep.subr.mxu0 0.0
    %1619 = vmatpush2.msra.mxu0 0.0
    %1620 = vmatprep.subr.mxu0 0.0
    %1621 = vmatpush2.msra.mxu0 0.0
    %1622 = vmatprep.subr.mxu0 0.0
    %1623 = vmatpush2.msra.mxu0 0.0
    %1624 = vmatprep.subr.mxu0 0.0
    %1625 = vmatpush2.msra.mxu0 0.0
    %1626 = vmatprep.subr.mxu0 0.0
    %1627 = vmatpush2.msra.mxu0 0.0
    %1628 = vmatprep.subr.mxu0 0.0
    %1629 = vmatpush2.msra.mxu0 0.0
    %1630 = vmatprep.subr.mxu0 0.0
    %1631 = vmatpush2.msra.mxu0 0.0
    %1632 = vmatprep.subr.mxu0 0.0
    %1633 = vmatpush2.msra.mxu0 0.0
    %1634 = vmatprep.subr.mxu0 0.0
    %1635 = vmatpush2.msra.mxu0 0.0
    %1636 = vmatprep.subr.mxu0 0.0
    %1637 = vmatpush2.msra.mxu0 0.0
    %1638 = vmatprep.subr.mxu0 0.0
    %1639 = vmatpush2.msra.mxu0 0.0
    %1640 = vmatprep.mubr.f32.mxu0 0.0
    %1641 = vmatmul.mubr.f32.gmra.mxu0 %v283
    %v1642 = vpop.f32.mrf.mxu0
    %v1643 = vadd.f32 0.0, %v1642
    %v1644 = vpop.f32.mrf.mxu0
    %v1645 = vadd.f32 0.0, %v1644
    %1646 = vdwg.mxu0
    %1647 = vrot.lane.b32.xlu0 %v1572, 17
    %v1648 = vpop.permute.xlu0 %1647
    %1649 = vrot.lane.b32.xlu0 %v1574, 17
    %v1650 = vpop.permute.xlu0 %1649
    %v1651 = vsel %vm362, %v1648, %v1650
    %v1652 = vsel %vm362, %v1650, %v1648
    %v1653 = vmul.f32 %v1501, %v1652
    %v1654 = vmul.f32 %v1503, %v1651
    %v1655 = vsel %vm367, %v1653, 0.0
    %v1656 = vrot.slane %v1655, 4
    %v1657 = vadd.f32 %v1655, %v1656
    %v1658 = vrot.slane %v1657, 2
    %v1659 = vadd.f32 %v1657, %v1658
    %v1660 = vrot.slane %v1659, 1
    %v1661 = vadd.f32 %v1659, %v1660
    %v1662 = vsel %vm367, %v1654, 0.0
    %v1663 = vrot.slane %v1662, 4
    %v1664 = vadd.f32 %v1662, %v1663
    %v1665 = vrot.slane %v1664, 2
    %v1666 = vadd.f32 %v1664, %v1665
    %v1667 = vrot.slane %v1666, 1
    %v1668 = vadd.f32 %v1666, %v1667
    %1669 = vrot.lane.b32.xlu0 %v1572, 16
    %v1670 = vpop.permute.xlu0 %1669
    %1671 = vrot.lane.b32.xlu0 %v1574, 16
    %v1672 = vpop.permute.xlu0 %1671
    %v1673 = vsel %vm386, %v1670, %v1672
    %v1674 = vsel %vm386, %v1672, %v1670
    %v1675 = vmul.f32 %v1501, %v1674
    %v1676 = vmul.f32 %v1503, %v1673
    %v1677 = vsel %vm367, %v1675, 0.0
    %v1678 = vrot.slane %v1677, 4
    %v1679 = vadd.f32 %v1677, %v1678
    %v1680 = vrot.slane %v1679, 2
    %v1681 = vadd.f32 %v1679, %v1680
    %v1682 = vrot.slane %v1681, 1
    %v1683 = vadd.f32 %v1681, %v1682
    %v1684 = vsel %vm367, %v1676, 0.0
    %v1685 = vrot.slane %v1684, 4
    %v1686 = vadd.f32 %v1684, %v1685
    %v1687 = vrot.slane %v1686, 2
    %v1688 = vadd.f32 %v1686, %v1687
    %v1689 = vrot.slane %v1688, 1
    %v1690 = vadd.f32 %v1688, %v1689
    %1691 = vrot.lane.b32.xlu0 %v1572, 15
    %v1692 = vpop.permute.xlu0 %1691
    %1693 = vrot.lane.b32.xlu0 %v1574, 15
    %v1694 = vpop.permute.xlu0 %1693
    %v1695 = vsel %vm409, %v1692, %v1694
    %v1696 = vsel %vm409, %v1694, %v1692
    %v1697 = vmul.f32 %v1501, %v1696
    %v1698 = vmul.f32 %v1503, %v1695
    %v1699 = vsel %vm367, %v1697, 0.0
    %v1700 = vrot.slane %v1699, 4
    %v1701 = vadd.f32 %v1699, %v1700
    %v1702 = vrot.slane %v1701, 2
    %v1703 = vadd.f32 %v1701, %v1702
    %v1704 = vrot.slane %v1703, 1
    %v1705 = vadd.f32 %v1703, %v1704
    %v1706 = vsel %vm367, %v1698, 0.0
    %v1707 = vrot.slane %v1706, 4
    %v1708 = vadd.f32 %v1706, %v1707
    %v1709 = vrot.slane %v1708, 2
    %v1710 = vadd.f32 %v1708, %v1709
    %v1711 = vrot.slane %v1710, 1
    %v1712 = vadd.f32 %v1710, %v1711
    %1713 = vrot.lane.b32.xlu0 %v1572, 1
    %v1714 = vpop.permute.xlu0 %1713
    %1715 = vrot.lane.b32.xlu0 %v1574, 1
    %v1716 = vpop.permute.xlu0 %1715
    %v1717 = vsel %vm432, %v1714, %v1716
    %v1718 = vsel %vm432, %v1716, %v1714
    %v1719 = vmul.f32 %v1501, %v1718
    %v1720 = vmul.f32 %v1503, %v1717
    %v1721 = vsel %vm367, %v1719, 0.0
    %v1722 = vrot.slane %v1721, 4
    %v1723 = vadd.f32 %v1721, %v1722
    %v1724 = vrot.slane %v1723, 2
    %v1725 = vadd.f32 %v1723, %v1724
    %v1726 = vrot.slane %v1725, 1
    %v1727 = vadd.f32 %v1725, %v1726
    %v1728 = vsel %vm367, %v1720, 0.0
    %v1729 = vrot.slane %v1728, 4
    %v1730 = vadd.f32 %v1728, %v1729
    %v1731 = vrot.slane %v1730, 2
    %v1732 = vadd.f32 %v1730, %v1731
    %v1733 = vrot.slane %v1732, 1
    %v1734 = vadd.f32 %v1732, %v1733
    %v1735 = vmul.f32 %v1501, %v1572
    %v1736 = vmul.f32 %v1503, %v1574
    %v1737 = vsel %vm367, %v1735, 0.0
    %v1738 = vrot.slane %v1737, 4
    %v1739 = vadd.f32 %v1737, %v1738
    %v1740 = vrot.slane %v1739, 2
    %v1741 = vadd.f32 %v1739, %v1740
    %v1742 = vrot.slane %v1741, 1
    %v1743 = vadd.f32 %v1741, %v1742
    %v1744 = vsel %vm367, %v1736, 0.0
    %v1745 = vrot.slane %v1744, 4
    %v1746 = vadd.f32 %v1744, %v1745
    %v1747 = vrot.slane %v1746, 2
    %v1748 = vadd.f32 %v1746, %v1747
    %v1749 = vrot.slane %v1748, 1
    %v1750 = vadd.f32 %v1748, %v1749
    %1751 = vrot.lane.b32.xlu0 %v1572, 127
    %v1752 = vpop.permute.xlu0 %1751
    %1753 = vrot.lane.b32.xlu0 %v1574, 127
    %v1754 = vpop.permute.xlu0 %1753
    %v1755 = vsel %vm471, %v1752, %v1754
    %v1756 = vsel %vm471, %v1754, %v1752
    %v1757 = vmul.f32 %v1501, %v1755
    %v1758 = vmul.f32 %v1503, %v1756
    %v1759 = vsel %vm367, %v1757, 0.0
    %v1760 = vrot.slane %v1759, 4
    %v1761 = vadd.f32 %v1759, %v1760
    %v1762 = vrot.slane %v1761, 2
    %v1763 = vadd.f32 %v1761, %v1762
    %v1764 = vrot.slane %v1763, 1
    %v1765 = vadd.f32 %v1763, %v1764
    %v1766 = vsel %vm367, %v1758, 0.0
    %v1767 = vrot.slane %v1766, 4
    %v1768 = vadd.f32 %v1766, %v1767
    %v1769 = vrot.slane %v1768, 2
    %v1770 = vadd.f32 %v1768, %v1769
    %v1771 = vrot.slane %v1770, 1
    %v1772 = vadd.f32 %v1770, %v1771
    %1773 = vrot.lane.b32.xlu0 %v1572, 113
    %v1774 = vpop.permute.xlu0 %1773
    %1775 = vrot.lane.b32.xlu0 %v1574, 113
    %v1776 = vpop.permute.xlu0 %1775
    %v1777 = vsel %vm494, %v1774, %v1776
    %v1778 = vsel %vm494, %v1776, %v1774
    %v1779 = vmul.f32 %v1501, %v1777
    %v1780 = vmul.f32 %v1503, %v1778
    %v1781 = vsel %vm367, %v1779, 0.0
    %v1782 = vrot.slane %v1781, 4
    %v1783 = vadd.f32 %v1781, %v1782
    %v1784 = vrot.slane %v1783, 2
    %v1785 = vadd.f32 %v1783, %v1784
    %v1786 = vrot.slane %v1785, 1
    %v1787 = vadd.f32 %v1785, %v1786
    %v1788 = vsel %vm367, %v1780, 0.0
    %v1789 = vrot.slane %v1788, 4
    %v1790 = vadd.f32 %v1788, %v1789
    %v1791 = vrot.slane %v1790, 2
    %v1792 = vadd.f32 %v1790, %v1791
    %v1793 = vrot.slane %v1792, 1
    %v1794 = vadd.f32 %v1792, %v1793
    %1795 = vrot.lane.b32.xlu0 %v1572, 112
    %v1796 = vpop.permute.xlu0 %1795
    %1797 = vrot.lane.b32.xlu0 %v1574, 112
    %v1798 = vpop.permute.xlu0 %1797
    %v1799 = vsel %vm517, %v1796, %v1798
    %v1800 = vsel %vm517, %v1798, %v1796
    %v1801 = vmul.f32 %v1501, %v1799
    %v1802 = vmul.f32 %v1503, %v1800
    %v1803 = vsel %vm367, %v1801, 0.0
    %v1804 = vrot.slane %v1803, 4
    %v1805 = vadd.f32 %v1803, %v1804
    %v1806 = vrot.slane %v1805, 2
    %v1807 = vadd.f32 %v1805, %v1806
    %v1808 = vrot.slane %v1807, 1
    %v1809 = vadd.f32 %v1807, %v1808
    %v1810 = vsel %vm367, %v1802, 0.0
    %v1811 = vrot.slane %v1810, 4
    %v1812 = vadd.f32 %v1810, %v1811
    %v1813 = vrot.slane %v1812, 2
    %v1814 = vadd.f32 %v1812, %v1813
    %v1815 = vrot.slane %v1814, 1
    %v1816 = vadd.f32 %v1814, %v1815
    %1817 = vrot.lane.b32.xlu0 %v1572, 111
    %v1818 = vpop.permute.xlu0 %1817
    %1819 = vrot.lane.b32.xlu0 %v1574, 111
    %v1820 = vpop.permute.xlu0 %1819
    %v1821 = vsel %vm540, %v1818, %v1820
    %v1822 = vsel %vm540, %v1820, %v1818
    %v1823 = vmul.f32 %v1501, %v1821
    %v1824 = vmul.f32 %v1503, %v1822
    %v1825 = vsel %vm367, %v1823, 0.0
    %v1826 = vrot.slane %v1825, 4
    %v1827 = vadd.f32 %v1825, %v1826
    %v1828 = vrot.slane %v1827, 2
    %v1829 = vadd.f32 %v1827, %v1828
    %v1830 = vrot.slane %v1829, 1
    %v1831 = vadd.f32 %v1829, %v1830
    %v1832 = vsel %vm367, %v1824, 0.0
    %v1833 = vrot.slane %v1832, 4
    %v1834 = vadd.f32 %v1832, %v1833
    %v1835 = vrot.slane %v1834, 2
    %v1836 = vadd.f32 %v1834, %v1835
    %v1837 = vrot.slane %v1836, 1
    %v1838 = vadd.f32 %v1836, %v1837
    %v1839 = vsel %vm559, %v1661, %v1683
    %v1840 = vsel %vm559, %v1668, %v1690
    %v1841 = vsel %vm562, %v1839, %v1705
    %v1842 = vsel %vm562, %v1840, %v1712
    %v1843 = vsel %vm565, %v1841, %v1727
    %v1844 = vsel %vm565, %v1842, %v1734
    %v1845 = vsel %vm367, %v1843, %v1743
    %v1846 = vsel %vm367, %v1844, %v1750
    %v1847 = vsel %vm570, %v1845, %v1765
    %v1848 = vsel %vm570, %v1846, %v1772
    %v1849 = vsel %vm573, %v1847, %v1787
    %v1850 = vsel %vm573, %v1848, %v1794
    %v1851 = vsel %vm576, %v1849, %v1809
    %v1852 = vsel %vm576, %v1850, %v1816
    %v1853 = vmul.f32 %v1851, %v119
    %v1854 = vmul.f32 %v1852, %v120
    %v1855 = vmul.f32 %v1831, %v121
    %v1856 = vmul.f32 %v1838, %v122
    %v1857 = vsel %vm559, %v1855, -inf
    %v1858 = vmax.f32 %v1853, %v1857
    %v1859 = vrot.slane %v1858, 4
    %v1860 = vmax.f32 %v1858, %v1859
    %v1861 = vrot.slane %v1860, 2
    %v1862 = vmax.f32 %v1860, %v1861
    %v1863 = vrot.slane %v1862, 1
    %v1864 = vmax.f32 %v1862, %v1863
    %v1865 = vsel %vm559, %v1856, -inf
    %v1866 = vmax.f32 %v1854, %v1865
    %v1867 = vrot.slane %v1866, 4
    %v1868 = vmax.f32 %v1866, %v1867
    %v1869 = vrot.slane %v1868, 2
    %v1870 = vmax.f32 %v1868, %v1869
    %v1871 = vrot.slane %v1870, 1
    %v1872 = vmax.f32 %v1870, %v1871
    %v1873 = vsub.f32 %v1853, %v1864
    %v1874 = vsub.f32 %v1854, %v1872
    %v1875 = vsub.f32 %v1855, %v1864
    %v1876 = vsub.f32 %v1856, %v1872
    %v1877 = vmul.f32 %v1873, 1.442695
    %v1878 = vpow.pop %v1877
    %v1879 = vmul.f32 %v1874, 1.442695
    %v1880 = vpow.pop %v1879
    %v1881 = vmul.f32 %v1875, 1.442695
    %v1882 = vpow.pop %v1881
    %v1883 = vmul.f32 %v1876, 1.442695
    %v1884 = vpow.pop %v1883
    %v1885 = vsel %vm559, %v1882, 0.0
    %v1886 = vadd.f32 %v1878, %v1885
    %v1887 = vrot.slane %v1886, 4
    %v1888 = vadd.f32 %v1886, %v1887
    %v1889 = vrot.slane %v1888, 2
    %v1890 = vadd.f32 %v1888, %v1889
    %v1891 = vrot.slane %v1890, 1
    %v1892 = vadd.f32 %v1890, %v1891
    %v1893 = vsel %vm559, %v1884, 0.0
    %v1894 = vadd.f32 %v1880, %v1893
    %v1895 = vrot.slane %v1894, 4
    %v1896 = vadd.f32 %v1894, %v1895
    %v1897 = vrot.slane %v1896, 2
    %v1898 = vadd.f32 %v1896, %v1897
    %v1899 = vrot.slane %v1898, 1
    %v1900 = vadd.f32 %v1898, %v1899
    %v1901 = vrcp.pop %v1892
    %v1902 = vrcp.pop %v1900
    %v1903 = vmul.f32 %v1892, %v1901
    %v1904 = vmul.f32 %v1900, %v1902
    %v1905 = vsub.f32 2.0, %v1903
    %v1906 = vsub.f32 2.0, %v1904
    %v1907 = vmul.f32 %v1901, %v1905
    %v1908 = vmul.f32 %v1902, %v1906
    %v1909 = vmul.f32 %v1907, %v119
    %v1910 = vmul.f32 %v1908, %v120
    %v1911 = vmul.f32 %v1907, %v121
    %v1912 = vmul.f32 %v1908, %v122
    %v1913 = vmul.f32 %v1878, %v1909
    %v1914 = vmul.f32 %v1880, %v1910
    %v1915 = vmul.f32 %v1882, %v1911
    %v1916 = vmul.f32 %v1884, %v1912
    %1917 = vrot.lane.b32.xlu0 %v1643, 17
    %v1918 = vpop.permute.xlu0 %1917
    %1919 = vrot.lane.b32.xlu0 %v1645, 17
    %v1920 = vpop.permute.xlu0 %1919
    %v1921 = vsel %vm362, %v1918, %v1920
    %v1922 = vsel %vm362, %v1920, %v1918
    %v1923 = vlaneseq
    %v1924 = vshrl.u32 %v1923, 7
    %v1925 = vsub.s32 0, %v1924
    %v1926 = vrot.slane %v1913, %v1925
    %v1927 = vlaneseq
    %v1928 = vshrl.u32 %v1927, 7
    %v1929 = vsub.s32 0, %v1928
    %v1930 = vrot.slane %v1914, %v1929
    %v1931 = vmul.f32 %v1926, %v1922
    %v1932 = vmul.f32 %v1930, %v1921
    %1933 = vrot.lane.b32.xlu0 %v1643, 16
    %v1934 = vpop.permute.xlu0 %1933
    %1935 = vrot.lane.b32.xlu0 %v1645, 16
    %v1936 = vpop.permute.xlu0 %1935
    %v1937 = vsel %vm386, %v1934, %v1936
    %v1938 = vsel %vm386, %v1936, %v1934
    %v1939 = vlaneseq
    %v1940 = vshrl.u32 %v1939, 7
    %v1941 = vsub.s32 1, %v1940
    %v1942 = vrot.slane %v1913, %v1941
    %v1943 = vlaneseq
    %v1944 = vshrl.u32 %v1943, 7
    %v1945 = vsub.s32 1, %v1944
    %v1946 = vrot.slane %v1914, %v1945
    %v1947 = vmul.f32 %v1942, %v1938
    %v1948 = vmul.f32 %v1946, %v1937
    %v1949 = vadd.f32 %v1931, %v1947
    %v1950 = vadd.f32 %v1932, %v1948
    %1951 = vrot.lane.b32.xlu0 %v1643, 15
    %v1952 = vpop.permute.xlu0 %1951
    %1953 = vrot.lane.b32.xlu0 %v1645, 15
    %v1954 = vpop.permute.xlu0 %1953
    %v1955 = vsel %vm409, %v1952, %v1954
    %v1956 = vsel %vm409, %v1954, %v1952
    %v1957 = vlaneseq
    %v1958 = vshrl.u32 %v1957, 7
    %v1959 = vsub.s32 2, %v1958
    %v1960 = vrot.slane %v1913, %v1959
    %v1961 = vlaneseq
    %v1962 = vshrl.u32 %v1961, 7
    %v1963 = vsub.s32 2, %v1962
    %v1964 = vrot.slane %v1914, %v1963
    %v1965 = vmul.f32 %v1960, %v1956
    %v1966 = vmul.f32 %v1964, %v1955
    %v1967 = vadd.f32 %v1949, %v1965
    %v1968 = vadd.f32 %v1950, %v1966
    %1969 = vrot.lane.b32.xlu0 %v1643, 1
    %v1970 = vpop.permute.xlu0 %1969
    %1971 = vrot.lane.b32.xlu0 %v1645, 1
    %v1972 = vpop.permute.xlu0 %1971
    %v1973 = vsel %vm432, %v1970, %v1972
    %v1974 = vsel %vm432, %v1972, %v1970
    %v1975 = vlaneseq
    %v1976 = vshrl.u32 %v1975, 7
    %v1977 = vsub.s32 3, %v1976
    %v1978 = vrot.slane %v1913, %v1977
    %v1979 = vlaneseq
    %v1980 = vshrl.u32 %v1979, 7
    %v1981 = vsub.s32 3, %v1980
    %v1982 = vrot.slane %v1914, %v1981
    %v1983 = vmul.f32 %v1978, %v1974
    %v1984 = vmul.f32 %v1982, %v1973
    %v1985 = vadd.f32 %v1967, %v1983
    %v1986 = vadd.f32 %v1968, %v1984
    %v1987 = vlaneseq
    %v1988 = vshrl.u32 %v1987, 7
    %v1989 = vsub.s32 4, %v1988
    %v1990 = vrot.slane %v1913, %v1989
    %v1991 = vlaneseq
    %v1992 = vshrl.u32 %v1991, 7
    %v1993 = vsub.s32 4, %v1992
    %v1994 = vrot.slane %v1914, %v1993
    %v1995 = vmul.f32 %v1990, %v1643
    %v1996 = vmul.f32 %v1994, %v1645
    %v1997 = vadd.f32 %v1985, %v1995
    %v1998 = vadd.f32 %v1986, %v1996
    %1999 = vrot.lane.b32.xlu0 %v1643, 127
    %v2000 = vpop.permute.xlu0 %1999
    %2001 = vrot.lane.b32.xlu0 %v1645, 127
    %v2002 = vpop.permute.xlu0 %2001
    %v2003 = vsel %vm471, %v2000, %v2002
    %v2004 = vsel %vm471, %v2002, %v2000
    %v2005 = vlaneseq
    %v2006 = vshrl.u32 %v2005, 7
    %v2007 = vsub.s32 5, %v2006
    %v2008 = vrot.slane %v1913, %v2007
    %v2009 = vlaneseq
    %v2010 = vshrl.u32 %v2009, 7
    %v2011 = vsub.s32 5, %v2010
    %v2012 = vrot.slane %v1914, %v2011
    %v2013 = vmul.f32 %v2008, %v2003
    %v2014 = vmul.f32 %v2012, %v2004
    %v2015 = vadd.f32 %v1997, %v2013
    %v2016 = vadd.f32 %v1998, %v2014
    %2017 = vrot.lane.b32.xlu0 %v1643, 113
    %v2018 = vpop.permute.xlu0 %2017
    %2019 = vrot.lane.b32.xlu0 %v1645, 113
    %v2020 = vpop.permute.xlu0 %2019
    %v2021 = vsel %vm494, %v2018, %v2020
    %v2022 = vsel %vm494, %v2020, %v2018
    %v2023 = vlaneseq
    %v2024 = vshrl.u32 %v2023, 7
    %v2025 = vsub.s32 6, %v2024
    %v2026 = vrot.slane %v1913, %v2025
    %v2027 = vlaneseq
    %v2028 = vshrl.u32 %v2027, 7
    %v2029 = vsub.s32 6, %v2028
    %v2030 = vrot.slane %v1914, %v2029
    %v2031 = vmul.f32 %v2026, %v2021
    %v2032 = vmul.f32 %v2030, %v2022
    %v2033 = vadd.f32 %v2015, %v2031
    %v2034 = vadd.f32 %v2016, %v2032
    %2035 = vrot.lane.b32.xlu0 %v1643, 112
    %v2036 = vpop.permute.xlu0 %2035
    %2037 = vrot.lane.b32.xlu0 %v1645, 112
    %v2038 = vpop.permute.xlu0 %2037
    %v2039 = vsel %vm517, %v2036, %v2038
    %v2040 = vsel %vm517, %v2038, %v2036
    %v2041 = vlaneseq
    %v2042 = vshrl.u32 %v2041, 7
    %v2043 = vsub.s32 7, %v2042
    %v2044 = vrot.slane %v1913, %v2043
    %v2045 = vlaneseq
    %v2046 = vshrl.u32 %v2045, 7
    %v2047 = vsub.s32 7, %v2046
    %v2048 = vrot.slane %v1914, %v2047
    %v2049 = vmul.f32 %v2044, %v2039
    %v2050 = vmul.f32 %v2048, %v2040
    %v2051 = vadd.f32 %v2033, %v2049
    %v2052 = vadd.f32 %v2034, %v2050
    %2053 = vrot.lane.b32.xlu0 %v1643, 111
    %v2054 = vpop.permute.xlu0 %2053
    %2055 = vrot.lane.b32.xlu0 %v1645, 111
    %v2056 = vpop.permute.xlu0 %2055
    %v2057 = vsel %vm540, %v2054, %v2056
    %v2058 = vsel %vm540, %v2056, %v2054
    %v2059 = vlaneseq
    %v2060 = vshrl.u32 %v2059, 7
    %v2061 = vsub.s32 0, %v2060
    %v2062 = vrot.slane %v1915, %v2061
    %v2063 = vlaneseq
    %v2064 = vshrl.u32 %v2063, 7
    %v2065 = vsub.s32 0, %v2064
    %v2066 = vrot.slane %v1916, %v2065
    %v2067 = vmul.f32 %v2062, %v2057
    %v2068 = vmul.f32 %v2066, %v2058
    %v2069 = vadd.f32 %v2051, %v2067
    %v2070 = vadd.f32 %v2052, %v2068
    %v2073 = vrot.slane %v1572, 4
    %v2074 = vrot.slane %v1574, 4
    %2077 = vrot.lane.b32.xlu0 %v2073, 17
    %v2078 = vpop.permute.xlu0 %2077
    %2079 = vrot.lane.b32.xlu0 %v2074, 17
    %v2080 = vpop.permute.xlu0 %2079
    %v2081 = vsel %vm362, %v2078, %v2080
    %v2082 = vsel %vm362, %v2080, %v2078
    %v2085 = vrot.slane %v2082, 4
    %v2086 = vrot.slane %v2081, 4
    %v2089 = vmul.f32 %v1501, %v2085
    %v2090 = vmul.f32 %v1503, %v2086
    %v2093 = vrot.slane %v2089, 4
    %v2094 = vrot.slane %v2090, 4
    %v2097 = vsel %vm367, %v2093, 0.0
    %v2098 = vrot.slane %v2097, 4
    %v2099 = vadd.f32 %v2097, %v2098
    %v2100 = vrot.slane %v2099, 2
    %v2101 = vadd.f32 %v2099, %v2100
    %v2102 = vrot.slane %v2101, 1
    %v2103 = vadd.f32 %v2101, %v2102
    %v2104 = vsel %vm367, %v2094, 0.0
    %v2105 = vrot.slane %v2104, 4
    %v2106 = vadd.f32 %v2104, %v2105
    %v2107 = vrot.slane %v2106, 2
    %v2108 = vadd.f32 %v2106, %v2107
    %v2109 = vrot.slane %v2108, 1
    %v2110 = vadd.f32 %v2108, %v2109
    %2111 = vrot.lane.b32.xlu0 %v2073, 16
    %v2112 = vpop.permute.xlu0 %2111
    %2113 = vrot.lane.b32.xlu0 %v2074, 16
    %v2114 = vpop.permute.xlu0 %2113
    %v2115 = vsel %vm386, %v2112, %v2114
    %v2116 = vsel %vm386, %v2114, %v2112
    %v2119 = vrot.slane %v2116, 4
    %v2120 = vrot.slane %v2115, 4
    %v2123 = vmul.f32 %v1501, %v2119
    %v2124 = vmul.f32 %v1503, %v2120
    %v2127 = vrot.slane %v2123, 4
    %v2128 = vrot.slane %v2124, 4
    %v2131 = vsel %vm367, %v2127, 0.0
    %v2132 = vrot.slane %v2131, 4
    %v2133 = vadd.f32 %v2131, %v2132
    %v2134 = vrot.slane %v2133, 2
    %v2135 = vadd.f32 %v2133, %v2134
    %v2136 = vrot.slane %v2135, 1
    %v2137 = vadd.f32 %v2135, %v2136
    %v2138 = vsel %vm367, %v2128, 0.0
    %v2139 = vrot.slane %v2138, 4
    %v2140 = vadd.f32 %v2138, %v2139
    %v2141 = vrot.slane %v2140, 2
    %v2142 = vadd.f32 %v2140, %v2141
    %v2143 = vrot.slane %v2142, 1
    %v2144 = vadd.f32 %v2142, %v2143
    %2145 = vrot.lane.b32.xlu0 %v2073, 15
    %v2146 = vpop.permute.xlu0 %2145
    %2147 = vrot.lane.b32.xlu0 %v2074, 15
    %v2148 = vpop.permute.xlu0 %2147
    %v2149 = vsel %vm409, %v2146, %v2148
    %v2150 = vsel %vm409, %v2148, %v2146
    %v2153 = vrot.slane %v2150, 4
    %v2154 = vrot.slane %v2149, 4
    %v2157 = vmul.f32 %v1501, %v2153
    %v2158 = vmul.f32 %v1503, %v2154
    %v2161 = vrot.slane %v2157, 4
    %v2162 = vrot.slane %v2158, 4
    %v2165 = vsel %vm367, %v2161, 0.0
    %v2166 = vrot.slane %v2165, 4
    %v2167 = vadd.f32 %v2165, %v2166
    %v2168 = vrot.slane %v2167, 2
    %v2169 = vadd.f32 %v2167, %v2168
    %v2170 = vrot.slane %v2169, 1
    %v2171 = vadd.f32 %v2169, %v2170
    %v2172 = vsel %vm367, %v2162, 0.0
    %v2173 = vrot.slane %v2172, 4
    %v2174 = vadd.f32 %v2172, %v2173
    %v2175 = vrot.slane %v2174, 2
    %v2176 = vadd.f32 %v2174, %v2175
    %v2177 = vrot.slane %v2176, 1
    %v2178 = vadd.f32 %v2176, %v2177
    %2179 = vrot.lane.b32.xlu0 %v2073, 1
    %v2180 = vpop.permute.xlu0 %2179
    %2181 = vrot.lane.b32.xlu0 %v2074, 1
    %v2182 = vpop.permute.xlu0 %2181
    %v2183 = vsel %vm432, %v2180, %v2182
    %v2184 = vsel %vm432, %v2182, %v2180
    %v2187 = vrot.slane %v2184, 4
    %v2188 = vrot.slane %v2183, 4
    %v2191 = vmul.f32 %v1501, %v2187
    %v2192 = vmul.f32 %v1503, %v2188
    %v2195 = vrot.slane %v2191, 4
    %v2196 = vrot.slane %v2192, 4
    %v2199 = vsel %vm367, %v2195, 0.0
    %v2200 = vrot.slane %v2199, 4
    %v2201 = vadd.f32 %v2199, %v2200
    %v2202 = vrot.slane %v2201, 2
    %v2203 = vadd.f32 %v2201, %v2202
    %v2204 = vrot.slane %v2203, 1
    %v2205 = vadd.f32 %v2203, %v2204
    %v2206 = vsel %vm367, %v2196, 0.0
    %v2207 = vrot.slane %v2206, 4
    %v2208 = vadd.f32 %v2206, %v2207
    %v2209 = vrot.slane %v2208, 2
    %v2210 = vadd.f32 %v2208, %v2209
    %v2211 = vrot.slane %v2210, 1
    %v2212 = vadd.f32 %v2210, %v2211
    %v2215 = vrot.slane %v1735, 4
    %v2216 = vrot.slane %v1736, 4
    %v2219 = vsel %vm367, %v2215, 0.0
    %v2220 = vrot.slane %v2219, 4
    %v2221 = vadd.f32 %v2219, %v2220
    %v2222 = vrot.slane %v2221, 2
    %v2223 = vadd.f32 %v2221, %v2222
    %v2224 = vrot.slane %v2223, 1
    %v2225 = vadd.f32 %v2223, %v2224
    %v2226 = vsel %vm367, %v2216, 0.0
    %v2227 = vrot.slane %v2226, 4
    %v2228 = vadd.f32 %v2226, %v2227
    %v2229 = vrot.slane %v2228, 2
    %v2230 = vadd.f32 %v2228, %v2229
    %v2231 = vrot.slane %v2230, 1
    %v2232 = vadd.f32 %v2230, %v2231
    %2233 = vrot.lane.b32.xlu0 %v2073, 127
    %v2234 = vpop.permute.xlu0 %2233
    %2235 = vrot.lane.b32.xlu0 %v2074, 127
    %v2236 = vpop.permute.xlu0 %2235
    %v2237 = vsel %vm471, %v2234, %v2236
    %v2238 = vsel %vm471, %v2236, %v2234
    %v2241 = vrot.slane %v2237, 4
    %v2242 = vrot.slane %v2238, 4
    %v2245 = vmul.f32 %v1501, %v2241
    %v2246 = vmul.f32 %v1503, %v2242
    %v2249 = vrot.slane %v2245, 4
    %v2250 = vrot.slane %v2246, 4
    %v2253 = vsel %vm367, %v2249, 0.0
    %v2254 = vrot.slane %v2253, 4
    %v2255 = vadd.f32 %v2253, %v2254
    %v2256 = vrot.slane %v2255, 2
    %v2257 = vadd.f32 %v2255, %v2256
    %v2258 = vrot.slane %v2257, 1
    %v2259 = vadd.f32 %v2257, %v2258
    %v2260 = vsel %vm367, %v2250, 0.0
    %v2261 = vrot.slane %v2260, 4
    %v2262 = vadd.f32 %v2260, %v2261
    %v2263 = vrot.slane %v2262, 2
    %v2264 = vadd.f32 %v2262, %v2263
    %v2265 = vrot.slane %v2264, 1
    %v2266 = vadd.f32 %v2264, %v2265
    %2267 = vrot.lane.b32.xlu0 %v2073, 113
    %v2268 = vpop.permute.xlu0 %2267
    %2269 = vrot.lane.b32.xlu0 %v2074, 113
    %v2270 = vpop.permute.xlu0 %2269
    %v2271 = vsel %vm494, %v2268, %v2270
    %v2272 = vsel %vm494, %v2270, %v2268
    %v2275 = vrot.slane %v2271, 4
    %v2276 = vrot.slane %v2272, 4
    %v2279 = vmul.f32 %v1501, %v2275
    %v2280 = vmul.f32 %v1503, %v2276
    %v2283 = vrot.slane %v2279, 4
    %v2284 = vrot.slane %v2280, 4
    %v2287 = vsel %vm367, %v2283, 0.0
    %v2288 = vrot.slane %v2287, 4
    %v2289 = vadd.f32 %v2287, %v2288
    %v2290 = vrot.slane %v2289, 2
    %v2291 = vadd.f32 %v2289, %v2290
    %v2292 = vrot.slane %v2291, 1
    %v2293 = vadd.f32 %v2291, %v2292
    %v2294 = vsel %vm367, %v2284, 0.0
    %v2295 = vrot.slane %v2294, 4
    %v2296 = vadd.f32 %v2294, %v2295
    %v2297 = vrot.slane %v2296, 2
    %v2298 = vadd.f32 %v2296, %v2297
    %v2299 = vrot.slane %v2298, 1
    %v2300 = vadd.f32 %v2298, %v2299
    %2301 = vrot.lane.b32.xlu0 %v2073, 112
    %v2302 = vpop.permute.xlu0 %2301
    %2303 = vrot.lane.b32.xlu0 %v2074, 112
    %v2304 = vpop.permute.xlu0 %2303
    %v2305 = vsel %vm517, %v2302, %v2304
    %v2306 = vsel %vm517, %v2304, %v2302
    %v2309 = vrot.slane %v2305, 4
    %v2310 = vrot.slane %v2306, 4
    %v2313 = vmul.f32 %v1501, %v2309
    %v2314 = vmul.f32 %v1503, %v2310
    %v2317 = vrot.slane %v2313, 4
    %v2318 = vrot.slane %v2314, 4
    %v2321 = vsel %vm367, %v2317, 0.0
    %v2322 = vrot.slane %v2321, 4
    %v2323 = vadd.f32 %v2321, %v2322
    %v2324 = vrot.slane %v2323, 2
    %v2325 = vadd.f32 %v2323, %v2324
    %v2326 = vrot.slane %v2325, 1
    %v2327 = vadd.f32 %v2325, %v2326
    %v2328 = vsel %vm367, %v2318, 0.0
    %v2329 = vrot.slane %v2328, 4
    %v2330 = vadd.f32 %v2328, %v2329
    %v2331 = vrot.slane %v2330, 2
    %v2332 = vadd.f32 %v2330, %v2331
    %v2333 = vrot.slane %v2332, 1
    %v2334 = vadd.f32 %v2332, %v2333
    %2335 = vrot.lane.b32.xlu0 %v2073, 111
    %v2336 = vpop.permute.xlu0 %2335
    %2337 = vrot.lane.b32.xlu0 %v2074, 111
    %v2338 = vpop.permute.xlu0 %2337
    %v2339 = vsel %vm540, %v2336, %v2338
    %v2340 = vsel %vm540, %v2338, %v2336
    %v2343 = vrot.slane %v2339, 4
    %v2344 = vrot.slane %v2340, 4
    %v2347 = vmul.f32 %v1501, %v2343
    %v2348 = vmul.f32 %v1503, %v2344
    %v2351 = vrot.slane %v2347, 4
    %v2352 = vrot.slane %v2348, 4
    %v2355 = vsel %vm367, %v2351, 0.0
    %v2356 = vrot.slane %v2355, 4
    %v2357 = vadd.f32 %v2355, %v2356
    %v2358 = vrot.slane %v2357, 2
    %v2359 = vadd.f32 %v2357, %v2358
    %v2360 = vrot.slane %v2359, 1
    %v2361 = vadd.f32 %v2359, %v2360
    %v2362 = vsel %vm367, %v2352, 0.0
    %v2363 = vrot.slane %v2362, 4
    %v2364 = vadd.f32 %v2362, %v2363
    %v2365 = vrot.slane %v2364, 2
    %v2366 = vadd.f32 %v2364, %v2365
    %v2367 = vrot.slane %v2366, 1
    %v2368 = vadd.f32 %v2366, %v2367
    %v2369 = vsel %vm559, %v2103, %v2137
    %v2370 = vsel %vm559, %v2110, %v2144
    %v2371 = vsel %vm562, %v2369, %v2171
    %v2372 = vsel %vm562, %v2370, %v2178
    %v2373 = vsel %vm565, %v2371, %v2205
    %v2374 = vsel %vm565, %v2372, %v2212
    %v2375 = vsel %vm367, %v2373, %v2225
    %v2376 = vsel %vm367, %v2374, %v2232
    %v2377 = vsel %vm570, %v2375, %v2259
    %v2378 = vsel %vm570, %v2376, %v2266
    %v2379 = vsel %vm573, %v2377, %v2293
    %v2380 = vsel %vm573, %v2378, %v2300
    %v2381 = vsel %vm576, %v2379, %v2327
    %v2382 = vsel %vm576, %v2380, %v2334
    %v2383 = vmul.f32 %v2381, %v119
    %v2384 = vmul.f32 %v2382, %v120
    %v2385 = vmul.f32 %v2361, %v121
    %v2386 = vmul.f32 %v2368, %v122
    %v2387 = vsel %vm559, %v2385, -inf
    %v2388 = vmax.f32 %v2383, %v2387
    %v2389 = vrot.slane %v2388, 4
    %v2390 = vmax.f32 %v2388, %v2389
    %v2391 = vrot.slane %v2390, 2
    %v2392 = vmax.f32 %v2390, %v2391
    %v2393 = vrot.slane %v2392, 1
    %v2394 = vmax.f32 %v2392, %v2393
    %v2395 = vsel %vm559, %v2386, -inf
    %v2396 = vmax.f32 %v2384, %v2395
    %v2397 = vrot.slane %v2396, 4
    %v2398 = vmax.f32 %v2396, %v2397
    %v2399 = vrot.slane %v2398, 2
    %v2400 = vmax.f32 %v2398, %v2399
    %v2401 = vrot.slane %v2400, 1
    %v2402 = vmax.f32 %v2400, %v2401
    %v2403 = vsub.f32 %v2383, %v2394
    %v2404 = vsub.f32 %v2384, %v2402
    %v2405 = vsub.f32 %v2385, %v2394
    %v2406 = vsub.f32 %v2386, %v2402
    %v2407 = vmul.f32 %v2403, 1.442695
    %v2408 = vpow.pop %v2407
    %v2409 = vmul.f32 %v2404, 1.442695
    %v2410 = vpow.pop %v2409
    %v2411 = vmul.f32 %v2405, 1.442695
    %v2412 = vpow.pop %v2411
    %v2413 = vmul.f32 %v2406, 1.442695
    %v2414 = vpow.pop %v2413
    %v2415 = vsel %vm559, %v2412, 0.0
    %v2416 = vadd.f32 %v2408, %v2415
    %v2417 = vrot.slane %v2416, 4
    %v2418 = vadd.f32 %v2416, %v2417
    %v2419 = vrot.slane %v2418, 2
    %v2420 = vadd.f32 %v2418, %v2419
    %v2421 = vrot.slane %v2420, 1
    %v2422 = vadd.f32 %v2420, %v2421
    %v2423 = vsel %vm559, %v2414, 0.0
    %v2424 = vadd.f32 %v2410, %v2423
    %v2425 = vrot.slane %v2424, 4
    %v2426 = vadd.f32 %v2424, %v2425
    %v2427 = vrot.slane %v2426, 2
    %v2428 = vadd.f32 %v2426, %v2427
    %v2429 = vrot.slane %v2428, 1
    %v2430 = vadd.f32 %v2428, %v2429
    %v2431 = vrcp.pop %v2422
    %v2432 = vrcp.pop %v2430
    %v2433 = vmul.f32 %v2422, %v2431
    %v2434 = vmul.f32 %v2430, %v2432
    %v2435 = vsub.f32 2.0, %v2433
    %v2436 = vsub.f32 2.0, %v2434
    %v2437 = vmul.f32 %v2431, %v2435
    %v2438 = vmul.f32 %v2432, %v2436
    %v2439 = vmul.f32 %v2437, %v119
    %v2440 = vmul.f32 %v2438, %v120
    %v2441 = vmul.f32 %v2437, %v121
    %v2442 = vmul.f32 %v2438, %v122
    %v2443 = vmul.f32 %v2408, %v2439
    %v2444 = vmul.f32 %v2410, %v2440
    %v2445 = vmul.f32 %v2412, %v2441
    %v2446 = vmul.f32 %v2414, %v2442
    %v2449 = vrot.slane %v1643, 4
    %v2450 = vrot.slane %v1645, 4
    %2453 = vrot.lane.b32.xlu0 %v2449, 17
    %v2454 = vpop.permute.xlu0 %2453
    %2455 = vrot.lane.b32.xlu0 %v2450, 17
    %v2456 = vpop.permute.xlu0 %2455
    %v2457 = vsel %vm362, %v2454, %v2456
    %v2458 = vsel %vm362, %v2456, %v2454
    %v2459 = vlaneseq
    %v2460 = vshrl.u32 %v2459, 7
    %v2461 = vsub.s32 0, %v2460
    %v2462 = vrot.slane %v2443, %v2461
    %v2463 = vlaneseq
    %v2464 = vshrl.u32 %v2463, 7
    %v2465 = vsub.s32 0, %v2464
    %v2466 = vrot.slane %v2444, %v2465
    %v2467 = vmul.f32 %v2462, %v2458
    %v2468 = vmul.f32 %v2466, %v2457
    %2469 = vrot.lane.b32.xlu0 %v2449, 16
    %v2470 = vpop.permute.xlu0 %2469
    %2471 = vrot.lane.b32.xlu0 %v2450, 16
    %v2472 = vpop.permute.xlu0 %2471
    %v2473 = vsel %vm386, %v2470, %v2472
    %v2474 = vsel %vm386, %v2472, %v2470
    %v2475 = vlaneseq
    %v2476 = vshrl.u32 %v2475, 7
    %v2477 = vsub.s32 1, %v2476
    %v2478 = vrot.slane %v2443, %v2477
    %v2479 = vlaneseq
    %v2480 = vshrl.u32 %v2479, 7
    %v2481 = vsub.s32 1, %v2480
    %v2482 = vrot.slane %v2444, %v2481
    %v2483 = vmul.f32 %v2478, %v2474
    %v2484 = vmul.f32 %v2482, %v2473
    %v2485 = vadd.f32 %v2467, %v2483
    %v2486 = vadd.f32 %v2468, %v2484
    %2487 = vrot.lane.b32.xlu0 %v2449, 15
    %v2488 = vpop.permute.xlu0 %2487
    %2489 = vrot.lane.b32.xlu0 %v2450, 15
    %v2490 = vpop.permute.xlu0 %2489
    %v2491 = vsel %vm409, %v2488, %v2490
    %v2492 = vsel %vm409, %v2490, %v2488
    %v2493 = vlaneseq
    %v2494 = vshrl.u32 %v2493, 7
    %v2495 = vsub.s32 2, %v2494
    %v2496 = vrot.slane %v2443, %v2495
    %v2497 = vlaneseq
    %v2498 = vshrl.u32 %v2497, 7
    %v2499 = vsub.s32 2, %v2498
    %v2500 = vrot.slane %v2444, %v2499
    %v2501 = vmul.f32 %v2496, %v2492
    %v2502 = vmul.f32 %v2500, %v2491
    %v2503 = vadd.f32 %v2485, %v2501
    %v2504 = vadd.f32 %v2486, %v2502
    %2505 = vrot.lane.b32.xlu0 %v2449, 1
    %v2506 = vpop.permute.xlu0 %2505
    %2507 = vrot.lane.b32.xlu0 %v2450, 1
    %v2508 = vpop.permute.xlu0 %2507
    %v2509 = vsel %vm432, %v2506, %v2508
    %v2510 = vsel %vm432, %v2508, %v2506
    %v2511 = vlaneseq
    %v2512 = vshrl.u32 %v2511, 7
    %v2513 = vsub.s32 3, %v2512
    %v2514 = vrot.slane %v2443, %v2513
    %v2515 = vlaneseq
    %v2516 = vshrl.u32 %v2515, 7
    %v2517 = vsub.s32 3, %v2516
    %v2518 = vrot.slane %v2444, %v2517
    %v2519 = vmul.f32 %v2514, %v2510
    %v2520 = vmul.f32 %v2518, %v2509
    %v2521 = vadd.f32 %v2503, %v2519
    %v2522 = vadd.f32 %v2504, %v2520
    %v2523 = vlaneseq
    %v2524 = vshrl.u32 %v2523, 7
    %v2525 = vsub.s32 4, %v2524
    %v2526 = vrot.slane %v2443, %v2525
    %v2527 = vlaneseq
    %v2528 = vshrl.u32 %v2527, 7
    %v2529 = vsub.s32 4, %v2528
    %v2530 = vrot.slane %v2444, %v2529
    %v2531 = vmul.f32 %v2526, %v1643
    %v2532 = vmul.f32 %v2530, %v1645
    %v2535 = vrot.slane %v2531, 4
    %v2536 = vrot.slane %v2532, 4
    %v2539 = vadd.f32 %v2521, %v2535
    %v2540 = vadd.f32 %v2522, %v2536
    %2541 = vrot.lane.b32.xlu0 %v2449, 127
    %v2542 = vpop.permute.xlu0 %2541
    %2543 = vrot.lane.b32.xlu0 %v2450, 127
    %v2544 = vpop.permute.xlu0 %2543
    %v2545 = vsel %vm471, %v2542, %v2544
    %v2546 = vsel %vm471, %v2544, %v2542
    %v2547 = vlaneseq
    %v2548 = vshrl.u32 %v2547, 7
    %v2549 = vsub.s32 5, %v2548
    %v2550 = vrot.slane %v2443, %v2549
    %v2551 = vlaneseq
    %v2552 = vshrl.u32 %v2551, 7
    %v2553 = vsub.s32 5, %v2552
    %v2554 = vrot.slane %v2444, %v2553
    %v2555 = vmul.f32 %v2550, %v2545
    %v2556 = vmul.f32 %v2554, %v2546
    %v2557 = vadd.f32 %v2539, %v2555
    %v2558 = vadd.f32 %v2540, %v2556
    %2559 = vrot.lane.b32.xlu0 %v2449, 113
    %v2560 = vpop.permute.xlu0 %2559
    %2561 = vrot.lane.b32.xlu0 %v2450, 113
    %v2562 = vpop.permute.xlu0 %2561
    %v2563 = vsel %vm494, %v2560, %v2562
    %v2564 = vsel %vm494, %v2562, %v2560
    %v2565 = vlaneseq
    %v2566 = vshrl.u32 %v2565, 7
    %v2567 = vsub.s32 6, %v2566
    %v2568 = vrot.slane %v2443, %v2567
    %v2569 = vlaneseq
    %v2570 = vshrl.u32 %v2569, 7
    %v2571 = vsub.s32 6, %v2570
    %v2572 = vrot.slane %v2444, %v2571
    %v2573 = vmul.f32 %v2568, %v2563
    %v2574 = vmul.f32 %v2572, %v2564
    %v2575 = vadd.f32 %v2557, %v2573
    %v2576 = vadd.f32 %v2558, %v2574
    %2577 = vrot.lane.b32.xlu0 %v2449, 112
    %v2578 = vpop.permute.xlu0 %2577
    %2579 = vrot.lane.b32.xlu0 %v2450, 112
    %v2580 = vpop.permute.xlu0 %2579
    %v2581 = vsel %vm517, %v2578, %v2580
    %v2582 = vsel %vm517, %v2580, %v2578
    %v2583 = vlaneseq
    %v2584 = vshrl.u32 %v2583, 7
    %v2585 = vsub.s32 7, %v2584
    %v2586 = vrot.slane %v2443, %v2585
    %v2587 = vlaneseq
    %v2588 = vshrl.u32 %v2587, 7
    %v2589 = vsub.s32 7, %v2588
    %v2590 = vrot.slane %v2444, %v2589
    %v2591 = vmul.f32 %v2586, %v2581
    %v2592 = vmul.f32 %v2590, %v2582
    %v2593 = vadd.f32 %v2575, %v2591
    %v2594 = vadd.f32 %v2576, %v2592
    %2595 = vrot.lane.b32.xlu0 %v2449, 111
    %v2596 = vpop.permute.xlu0 %2595
    %2597 = vrot.lane.b32.xlu0 %v2450, 111
    %v2598 = vpop.permute.xlu0 %2597
    %v2599 = vsel %vm540, %v2596, %v2598
    %v2600 = vsel %vm540, %v2598, %v2596
    %v2601 = vlaneseq
    %v2602 = vshrl.u32 %v2601, 7
    %v2603 = vsub.s32 0, %v2602
    %v2604 = vrot.slane %v2445, %v2603
    %v2605 = vlaneseq
    %v2606 = vshrl.u32 %v2605, 7
    %v2607 = vsub.s32 0, %v2606
    %v2608 = vrot.slane %v2446, %v2607
    %v2609 = vmul.f32 %v2604, %v2599
    %v2610 = vmul.f32 %v2608, %v2600
    %v2611 = vadd.f32 %v2593, %v2609
    %v2612 = vadd.f32 %v2594, %v2610
    %v2615 = vrot.slane %v2611, 4
    %v2616 = vrot.slane %v2612, 4
    %v2619 = vsel %vm367, %v2069, %v2615
    %v2620 = vsel %vm367, %v2070, %v2616
    %2621 = vmatprep.subr.mxu0 0.0
    %2622 = vmatpush1.msra.mxu0 0.0
    %2623 = vmatprep.subr.mxu0 0.0
    %2624 = vmatpush1.msra.mxu0 0.0
    %2625 = vmatprep.subr.mxu0 0.0
    %2626 = vmatpush1.msra.mxu0 0.0
    %2627 = vmatprep.subr.mxu0 0.0
    %2628 = vmatpush1.msra.mxu0 0.0
    %2629 = vmatprep.subr.mxu0 0.0
    %2630 = vmatpush1.msra.mxu0 0.0
    %2631 = vmatprep.subr.mxu0 0.0
    %2632 = vmatpush1.msra.mxu0 0.0
    %2633 = vmatprep.subr.mxu0 0.0
    %2634 = vmatpush1.msra.mxu0 0.0
    %2635 = vmatprep.subr.mxu0 0.0
    %2636 = vmatpush1.msra.mxu0 0.0
    %2637 = vmatprep.subr.mxu0 0.0
    %2638 = vmatpush1.msra.mxu0 0.0
    %2639 = vmatprep.subr.mxu0 0.0
    %2640 = vmatpush1.msra.mxu0 0.0
    %2641 = vmatprep.subr.mxu0 0.0
    %2642 = vmatpush1.msra.mxu0 0.0
    %2643 = vmatprep.subr.mxu0 0.0
    %2644 = vmatpush1.msra.mxu0 0.0
    %2645 = vmatprep.subr.mxu0 0.0
    %2646 = vmatpush1.msra.mxu0 0.0
    %2647 = vmatprep.subr.mxu0 0.0
    %2648 = vmatpush1.msra.mxu0 0.0
    %2649 = vmatprep.subr.mxu0 0.0
    %2650 = vmatpush1.msra.mxu0 0.0
    %2651 = vmatprep.subr.mxu0 %v2620
    %2652 = vmatpush1.msra.mxu0 %v2619
    %2653 = vmatprep.subr.mxu0 0.0
    %2654 = vmatpush2.msra.mxu0 0.0
    %2655 = vmatprep.subr.mxu0 0.0
    %2656 = vmatpush2.msra.mxu0 0.0
    %2657 = vmatprep.subr.mxu0 0.0
    %2658 = vmatpush2.msra.mxu0 0.0
    %2659 = vmatprep.subr.mxu0 0.0
    %2660 = vmatpush2.msra.mxu0 0.0
    %2661 = vmatprep.subr.mxu0 0.0
    %2662 = vmatpush2.msra.mxu0 0.0
    %2663 = vmatprep.subr.mxu0 0.0
    %2664 = vmatpush2.msra.mxu0 0.0
    %2665 = vmatprep.subr.mxu0 0.0
    %2666 = vmatpush2.msra.mxu0 0.0
    %2667 = vmatprep.subr.mxu0 0.0
    %2668 = vmatpush2.msra.mxu0 0.0
    %2669 = vmatprep.subr.mxu0 0.0
    %2670 = vmatpush2.msra.mxu0 0.0
    %2671 = vmatprep.subr.mxu0 0.0
    %2672 = vmatpush2.msra.mxu0 0.0
    %2673 = vmatprep.subr.mxu0 0.0
    %2674 = vmatpush2.msra.mxu0 0.0
    %2675 = vmatprep.subr.mxu0 0.0
    %2676 = vmatpush2.msra.mxu0 0.0
    %2677 = vmatprep.subr.mxu0 0.0
    %2678 = vmatpush2.msra.mxu0 0.0
    %2679 = vmatprep.subr.mxu0 0.0
    %2680 = vmatpush2.msra.mxu0 0.0
    %2681 = vmatprep.subr.mxu0 0.0
    %2682 = vmatpush2.msra.mxu0 0.0
    %2683 = vmatprep.subr.mxu0 0.0
    %2684 = vmatpush2.msra.mxu0 0.0
    %2685 = vmatprep.mubr.f32.mxu0 0.0
    %2686 = vmatmul.mubr.f32.gmra.mxu0 %v1348
    %v2687 = vpop.f32.mrf.mxu0
    %v2688 = vadd.f32 0.0, %v2687
    %v2689 = vpop.f32.mrf.mxu0
    %v2690 = vadd.f32 0.0, %v2689
    %2691 = vdwg.mxu0
    %v2692 = vadd.f32 %v1426, %v2688
    %v2693 = vadd.f32 %v1427, %v2690
    %s2694 = scalar_lea.vmem [#allocation14], 16
    %2695 = vst [vmem:[%s2694] sm:$0xff] %v2692
    %2696 = vst [vmem:[%s2694 + $0x8] sm:$0xff] %v2693
    // Predicated region
    $region62: #{tpu_custom_call.1} parent=1 // pred_check
      _
    $region63: #{tpu_custom_call.1} parent=1 // pred_check_branch
      %2698 = sbr.rel (0) target = $region65
    $region64: #{tpu_custom_call.1} parent=1 // pred_region
      %s2700 = ssub.s32 512, 512
      %2701 = vsyncadd [#allocation4], %s2700
      %s2702 = sshll.u32 [#allocation14], 4
      %s2703 = int_to_ptr.vmem [resolvable:$true] %s2702
      %2708 = dma.vmem_to_hbm [thread:$0]  %s2703, 512, %s8, [#allocation4], 256, 256, 16
    $region65: #{tpu_custom_call.1} parent=1 // pred_fallthru
      _
    // Predicated region
    $region66: #{tpu_custom_call.1} parent=1 // pred_check
      _
    $region67: #{tpu_custom_call.1} parent=1 // pred_check_branch
      %2710 = sbr.rel (0) target = $region69
    $region68: #{tpu_custom_call.1} parent=1 // pred_region
      %2711 = dma.done [#allocation4], 512
    $region69: #{tpu_custom_call.1} parent=1 // pred_fallthru
      _
    %2712 = vsyncpa [#allocation3], 1
    %2713 = vsyncpa [#allocation6], 1
    %2714 = vsyncpa [#allocation9], 1
    %2715 = vsyncpa [#allocation12], 1
    %2716 = vsyncpa [#allocation4], 1

</llo_original>
